<compile_context>
chip_gen: v7x
topology: tpu7x:2x2x1
jax: 0.10.0
libtpu: 0.0.40
codegen_flags: <defaults>
</compile_context>

<pallas_src>
import numpy as np
import jax
import jax.numpy as jnp
from jax.experimental import pallas as pl
from jax.experimental.pallas import tpu as pltpu

# MXU operand dtype (accumulation is always f32 via preferred_element_type).
MXU_DTYPE = jnp.bfloat16


def _round_up(x, m):
    return (x + m - 1) // m * m


def _vmem_limit_bytes():
    """~3/4 of physical VMEM, capped at 100 MiB: ~96-100 MiB on v5e/v6e (128 MiB),
    ~48 MiB on v7x (64 MiB)."""
    cap = 128 * 1024 * 1024
    try:
        cap = int(pltpu.get_tpu_info().vmem_capacity_bytes)
    except Exception:
        pass
    return int(min(cap * 3 // 4, 100 * 1024 * 1024))


# ----------------------------------------------------------------------------
# Tiled linear kernel:  y = x @ W + b   (final vocab projection)
# ----------------------------------------------------------------------------
def linear_kernel(x_ref, w_ref, b_ref, o_ref):
    o_ref[...] = (jnp.dot(x_ref[...].astype(MXU_DTYPE), w_ref[...],
                          preferred_element_type=jnp.float32)
                  + b_ref[...])


def linear_proj(x, w_t, b, *, tn=256, tv=512):
    """y = x @ w_t + b, tiled over rows (tn) and output columns (tv).

    x   : (N, K) f32 (cast to bf16 inside the kernel)
    w_t : (K, V) bf16 (pre-cast once at init)
    b   : (1, V) f32
    Returns (N, V) f32.
    """
    N, K = x.shape
    V = w_t.shape[1]

    # Lane-dense, full-tile padding: rows padded to a tile multiple (no masked edge
    # blocks), vocab padded to a multiple of 128 so all output stores are unmasked.
    tn = min(tn, _round_up(N, 8))
    n_pad = _round_up(N, tn)
    tv = min(tv, _round_up(V, 128))
    v_pad = _round_up(V, tv)

    if n_pad != N:
        x = jnp.pad(x, ((0, n_pad - N), (0, 0)))
    if v_pad != V:
        w_t = jnp.pad(w_t, ((0, 0), (0, v_pad - V)))
        b = jnp.pad(b, ((0, 0), (0, v_pad - V)))

    grid = (n_pad // tn, v_pad // tv)

    # Weight streaming is HBM-bound at production vocab sizes: deepen its pipeline.
    w_spec = pl.BlockSpec((K, tv), lambda i, j: (0, j))
    if grid[1] >= 3:
        w_spec = pl.BlockSpec((K, tv), lambda i, j: (0, j),
                              pipeline_mode=pl.Buffered(3))

    out = pl.pallas_call(
        linear_kernel,
        out_shape=jax.ShapeDtypeStruct((n_pad, v_pad), jnp.float32),
        grid_spec=pltpu.PrefetchScalarGridSpec(
            num_scalar_prefetch=0,
            grid=grid,
            in_specs=[
                pl.BlockSpec((tn, K), lambda i, j: (i, 0)),
                w_spec,
                pl.BlockSpec((1, tv), lambda i, j: (0, j)),
            ],
            out_specs=pl.BlockSpec((tn, tv), lambda i, j: (i, j)),
        ),
        compiler_params=pltpu.CompilerParams(
            # both axes independent -> shard across v7x's 2 TensorCores
            dimension_semantics=("parallel", "parallel"),
            vmem_limit_bytes=_vmem_limit_bytes()),
    )(x, w_t, b.astype(jnp.float32))
    return out[:N, :V]


# ----------------------------------------------------------------------------
# Fused multi-layer LSTM kernel: time-chunked grid, h/c carried in VMEM scratch,
# input projections done in-kernel (one big matmul per layer per chunk).
# ----------------------------------------------------------------------------
def make_fused_lstm_kernel(num_layers, Tc, Bc, H):
    L = num_layers
    G = 4 * H

    def kernel(*refs):
        x_ref = refs[0]                                # (Tc, Bc, E)
        whh_refs = refs[1:1 + L]                       # (H, G) bf16
        wih_refs = refs[1 + L:1 + 2 * L]               # (E or H, G) bf16
        bias_refs = refs[1 + 2 * L:1 + 3 * L]          # (1, G) f32
        out_ref = refs[1 + 3 * L]                      # (Tc, Bc, H)
        h_scr = refs[2 + 3 * L]                        # (L, Bc, H) carried hidden
        c_scr = refs[3 + 3 * L]                        # (L, Bc, H) carried cell
        xproj = refs[4 + 3 * L]                        # (Tc*Bc, G)
        act = refs[5 + 3 * L] if L > 1 else None       # (Tc*Bc, H) inter-layer acts

        # Zero init of the carried state at the first time chunk of each batch chunk
        # (time is the fast/inner grid axis; batch-parallel axis is outer).
        @pl.when(pl.program_id(1) == 0)
        def _():
            h_scr[...] = jnp.zeros_like(h_scr)
            c_scr[...] = jnp.zeros_like(c_scr)

        # Collapse (Tc, Bc, E) -> (Tc*Bc, E): leading-dim merge only (Bc is a multiple
        # of 8), so this is a layout no-op.
        x2d = x_ref[...].reshape(Tc * Bc, x_ref.shape[-1])

        for l in range(L):
            # Hoisted input projection for the whole chunk: one big MXU matmul
            # (bias folded in); only h @ W_hh stays on the serial critical path.
            src = x2d if l == 0 else act[...]
            xproj[...] = (jnp.dot(src.astype(MXU_DTYPE), wih_refs[l][...],
                                  preferred_element_type=jnp.float32)
                          + bias_refs[l][...])

            whh = whh_refs[l][...]                     # hoisted weight load
            h = h_scr[l]
            c = c_scr[l]
            write_out = (l == L - 1)

            # TODO(synk): keep W_hh resident in the MXU across timesteps via
            # pltpu.matmul_push_rhs / matmul_acc_lhs / matmul_pop instead of jnp.dot
            # re-pushing the RHS every step.
            # Static unroll bounded by the time-chunk size (chunking caps instruction
            # count / vreg live ranges for long sequences).
            for t in range(Tc):
                gates = (xproj[pl.ds(t * Bc, Bc), :]
                         + jnp.dot(h.astype(MXU_DTYPE), whh,
                                   preferred_element_type=jnp.float32))
                # Gate columns ordered (i, f, o, g): one sigmoid on a contiguous
                # 3H slice, one tanh on the last H lanes (all slices 128-aligned
                # when H % 128 == 0).
                sig = jax.nn.sigmoid(gates[:, :3 * H])
                g = jnp.tanh(gates[:, 3 * H:])
                c = sig[:, H:2 * H] * c + sig[:, :H] * g
                h = sig[:, 2 * H:3 * H] * jnp.tanh(c)
                if write_out:
                    out_ref[t] = h                     # lane-dense (Bc, H) store
                else:
                    act[pl.ds(t * Bc, Bc), :] = h

            h_scr[l] = h
            c_scr[l] = c

    return kernel


def fused_lstm(x, whh_list, wih_list, bias_list, *, H, t_chunk, b_chunk=None):
    """All LSTM layers (including layer-0 input projection) in a single pallas_call.

    x         : (T_pad, B_pad, E) f32, time-major; T_pad % t_chunk == 0, B_pad % 8 == 0.
    whh_list  : per-layer (H, 4H) bf16 hidden->gate weights.
    wih_list  : per-layer (E or H, 4H) bf16 input->gate weights.
    bias_list : per-layer (1, 4H) f32 combined biases (b_ih + b_hh).
    Returns (T_pad, B_pad, H) f32 last-layer hidden states.
    """
    T_pad, B_pad, E = x.shape
    L = len(whh_list)
    G = 4 * H
    if b_chunk is None:
        b_chunk = B_pad
    assert T_pad % t_chunk == 0 and B_pad % b_chunk == 0 and b_chunk % 8 == 0
    Tc, Bc = t_chunk, b_chunk
    n_tc, n_bc = T_pad // Tc, B_pad // Bc

    def rep(shape):
        return pl.BlockSpec(shape, lambda b, t: (0,) * len(shape))

    in_specs = ([pl.BlockSpec((Tc, Bc, E), lambda b, t: (t, b, 0))]
                + [rep((H, G)) for _ in range(L)]
                + [rep((wih_list[l].shape[0], G)) for l in range(L)]
                + [rep((1, G)) for _ in range(L)])

    scratch = [pltpu.VMEM((L, Bc, H), jnp.float32),    # carried h per layer
               pltpu.VMEM((L, Bc, H), jnp.float32),    # carried c per layer
               pltpu.VMEM((Tc * Bc, G), jnp.float32)]  # per-layer input projection
    if L > 1:
        scratch.append(pltpu.VMEM((Tc * Bc, H), jnp.float32))  # inter-layer acts

    return pl.pallas_call(
        make_fused_lstm_kernel(L, Tc, Bc, H),
        out_shape=jax.ShapeDtypeStruct((T_pad, B_pad, H), jnp.float32),
        grid_spec=pltpu.PrefetchScalarGridSpec(
            num_scalar_prefetch=0,
            grid=(n_bc, n_tc),              # batch chunks (parallel), time chunks (serial)
            in_specs=in_specs,
            out_specs=pl.BlockSpec((Tc, Bc, H), lambda b, t: (t, b, 0)),
            scratch_shapes=scratch,
        ),
        compiler_params=pltpu.CompilerParams(
            dimension_semantics=("parallel", "arbitrary"),
            vmem_limit_bytes=_vmem_limit_bytes()),
    )(x, *whh_list, *wih_list, *bias_list)


# ----------------------------------------------------------------------------
# Forward pass (matches DecoderRNN.forward)
# ----------------------------------------------------------------------------
def decoder_rnn_forward(params, features, captions, lengths, *, t_chunk=16):
    """features: (B, E) f32; captions: (B, T) int32; lengths: python list, sorted desc,
    lengths[b] <= T + 1 (static -> retrace on change, matching pack_padded_sequence).
    Returns (sum(lengths), vocab) f32 in packed order."""
    B, T = captions.shape
    H = params["lstm"][0]["w_hh_t"].shape[0]
    T1 = T + 1
    B_pad = _round_up(B, 8)                 # sublane multiple for f32 state/gates
    T_pad = _round_up(T1, t_chunk)          # padded timesteps are trailing -> harmless

    # --- glue: embedding lookup + prepend image feature (plain JAX gather) ---
    emb = jnp.take(params["embed"], captions, axis=0)            # (B, T, E)
    seq = jnp.concatenate([features[:, None, :], emb], axis=1)   # (B, T1, E)
    seq = seq.astype(jnp.float32)
    seq = jnp.pad(seq, ((0, B_pad - B), (0, T_pad - T1), (0, 0)))
    x = jnp.transpose(seq, (1, 0, 2))                            # (T_pad, B_pad, E)

    # --- hot path 1: fused multi-layer LSTM (input projections + recurrence in-kernel,
    #     h/c carried across time chunks in VMEM scratch) ---
    whh_list = [l["w_hh_t"] for l in params["lstm"]]
    wih_list = [l["w_ih_t"] for l in params["lstm"]]
    bias_list = [l["bias"] for l in params["lstm"]]
    hiddens = fused_lstm(x, whh_list, wih_list, bias_list,
                         H=H, t_chunk=t_chunk)                   # (T_pad, B_pad, H)

    # --- glue: pack_padded_sequence ordering (time-major, then sorted batch) ---
    hid2d = hiddens.reshape(T_pad * B_pad, H)
    max_len = max(lengths)
    flat_idx = [t * B_pad + b
                for t in range(max_len)
                for b in range(B)
                if lengths[b] > t]
    packed = hid2d[jnp.array(flat_idx, dtype=jnp.int32)]         # (sum(lengths), H)

    # --- hot path 2: tiled, lane-dense final vocab projection ---
    return linear_proj(packed, params["linear_w_t"], params["linear_b"])


# ----------------------------------------------------------------------------
# Pure-JAX reference with the same bf16-operand / f32-accumulate numerics policy
# and the same (i, f, o, g) gate-column layout.
# ----------------------------------------------------------------------------
def decoder_rnn_reference(params, features, captions, lengths):
    def mm(a, b):
        return jnp.dot(a.astype(MXU_DTYPE), b.astype(MXU_DTYPE),
                       preferred_element_type=jnp.float32)

    B, T = captions.shape
    emb = jnp.take(params["embed"], captions, axis=0)
    seq = jnp.concatenate([features[:, None, :], emb], axis=1).astype(jnp.float32)
    x = jnp.transpose(seq, (1, 0, 2))                            # (T1, B, E)
    for layer in params["lstm"]:
        w_ih_t, w_hh_t, bias = layer["w_ih_t"], layer["w_hh_t"], layer["bias"]
        H = w_hh_t.shape[0]
        h = jnp.zeros((B, H), jnp.float32)
        c = jnp.zeros((B, H), jnp.float32)
        outs = []
        for t in range(x.shape[0]):
            gates = mm(x[t], w_ih_t) + mm(h, w_hh_t) + bias
            i = jax.nn.sigmoid(gates[:, 0 * H:1 * H])
            f = jax.nn.sigmoid(gates[:, 1 * H:2 * H])
            o = jax.nn.sigmoid(gates[:, 2 * H:3 * H])
            g = jnp.tanh(gates[:, 3 * H:4 * H])
            c = f * c + i * g
            h = o * jnp.tanh(c)
            outs.append(h)
        x = jnp.stack(outs, axis=0)
    max_len = max(lengths)
    flat_idx = [t * B + b for t in range(max_len) for b in range(B)
                if lengths[b] > t]
    packed = x.reshape((T + 1) * B, -1)[jnp.array(flat_idx)]
    return mm(packed, params["linear_w_t"]) + params["linear_b"]


# ----------------------------------------------------------------------------
# Deterministic parameter init + run
# ----------------------------------------------------------------------------
def init_params(key, embed_size, hidden_size, vocab_size, num_layers):
    keys = jax.random.split(key, 3 + 4 * num_layers)
    scale = 0.1
    params = {
        # Embedding table is a gather source (not an MXU operand): keep f32.
        "embed": scale * jax.random.normal(
            keys[0], (vocab_size, embed_size), jnp.float32),
        # MXU weights stored in bf16 ONCE (no per-call wrapper casts).
        "linear_w_t": (scale * jax.random.normal(
            keys[1], (hidden_size, vocab_size), jnp.float32)).astype(MXU_DTYPE),
        "linear_b": scale * jax.random.normal(
            keys[2], (1, vocab_size), jnp.float32),
        "lstm": [],
    }
    for l in range(num_layers):
        din = embed_size if l == 0 else hidden_size
        k0, k1, k2, k3 = keys[3 + 4 * l: 3 + 4 * (l + 1)]
        # Pre-transposed for (x @ W); gate columns ordered (i, f, o, g);
        # bias = b_ih + b_hh; weights pre-cast to bf16.
        params["lstm"].append({
            "w_ih_t": (scale * jax.random.normal(
                k0, (din, 4 * hidden_size), jnp.float32)).astype(MXU_DTYPE),
            "w_hh_t": (scale * jax.random.normal(
                k1, (hidden_size, 4 * hidden_size), jnp.float32)).astype(MXU_DTYPE),
            "bias": (scale * jax.random.normal(k2, (1, 4 * hidden_size), jnp.float32)
                     + scale * jax.random.normal(k3, (1, 4 * hidden_size), jnp.float32)),
        })
    return params


if __name__ == "__main__":
    # TODO(synk): greedy `sample()` decode is not implemented (only forward() is).
    B, T = 2, 8                      # batch, caption length
    embed_size, hidden_size = 128, 128   # lane-aligned (multiple of 128) per review
    vocab_size, num_layers = 256, 2
    lengths = [9, 6]                 # sorted descending, <= T + 1

    key = jax.random.PRNGKey(0)
    kp, kf, kc = jax.random.split(key, 3)

    params = init_params(kp, embed_size, hidden_size, vocab_size, num_layers)
    features = jax.random.normal(kf, (B, embed_size), jnp.float32)
    captions = jax.random.randint(kc, (B, T), 0, vocab_size, jnp.int32)

    # t_chunk=8 -> two time chunks, exercising the carried-h/c grid path.
    out = decoder_rnn_forward(params, features, captions, lengths, t_chunk=8)
    out = jax.block_until_ready(out)

    ref = decoder_rnn_reference(params, features, captions, lengths)
    assert out.shape == (sum(lengths), vocab_size), out.shape
    np.testing.assert_allclose(np.asarray(out), np.asarray(ref),
                               rtol=2e-3, atol=2e-3)

    print("KERNEL_OK")
</pallas_src>

<mosaic_0001>
module attributes {stable_mosaic.version = 11 : i64} {
  func.func @kernel(%arg0: i32, %arg1: i32, %arg2: memref<8x8x128xf32, #tpu.memory_space<vmem>>, %arg3: memref<128x512xbf16, #tpu.memory_space<vmem>>, %arg4: memref<128x512xbf16, #tpu.memory_space<vmem>>, %arg5: memref<128x512xbf16, #tpu.memory_space<vmem>>, %arg6: memref<128x512xbf16, #tpu.memory_space<vmem>>, %arg7: memref<1x512xf32, #tpu.memory_space<vmem>>, %arg8: memref<1x512xf32, #tpu.memory_space<vmem>>, %arg9: memref<8x8x128xf32, #tpu.memory_space<vmem>>, %arg10: memref<2x8x128xf32, #tpu.memory_space<vmem>>, %arg11: memref<2x8x128xf32, #tpu.memory_space<vmem>>, %arg12: memref<64x512xf32, #tpu.memory_space<vmem>>, %arg13: memref<64x128xf32, #tpu.memory_space<vmem>>) attributes {dimension_semantics = [#tpu.dimension_semantics<parallel>, #tpu.dimension_semantics<arbitrary>], iteration_bounds = array<i64: 1, 2>, scalar_prefetch = 0 : i64, scratch_operands = 4 : i64, tpu.core_type = #tpu.core_type<tc>, window_params = [{transform_indices = @transform_0, window_bounds = array<i64: 8, 8, 128>}, {pipeline_mode = #tpu.pipeline_mode<synchronous>, transform_indices = @transform_1, window_bounds = array<i64: 128, 512>}, {pipeline_mode = #tpu.pipeline_mode<synchronous>, transform_indices = @transform_2, window_bounds = array<i64: 128, 512>}, {pipeline_mode = #tpu.pipeline_mode<synchronous>, transform_indices = @transform_3, window_bounds = array<i64: 128, 512>}, {pipeline_mode = #tpu.pipeline_mode<synchronous>, transform_indices = @transform_4, window_bounds = array<i64: 128, 512>}, {pipeline_mode = #tpu.pipeline_mode<synchronous>, transform_indices = @transform_5, window_bounds = array<i64: 1, 512>}, {pipeline_mode = #tpu.pipeline_mode<synchronous>, transform_indices = @transform_6, window_bounds = array<i64: 1, 512>}, {transform_indices = @transform_7, window_bounds = array<i64: 8, 8, 128>}]} {
    %c0_i32 = arith.constant 0 : i32
    %0 = arith.cmpi eq, %arg1, %c0_i32 : i32
    %1 = arith.extui %0 : i1 to i32
    %c0_i32_0 = arith.constant 0 : i32
    %2 = arith.cmpi ne, %1, %c0_i32_0 : i32
    scf.if %2 {
      %cst_136 = arith.constant 0.000000e+00 : f32
      %394 = vector.broadcast %cst_136 : f32 to vector<2x8x128xf32>
      %c0_137 = arith.constant 0 : index
      %c0_138 = arith.constant 0 : index
      %c0_139 = arith.constant 0 : index
      %395 = vector.load %arg10[%c0_137, %c0_138, %c0_139] : memref<2x8x128xf32, #tpu.memory_space<vmem>>, vector<2x8x128xf32>
      tpu.vector_store %arg10[%c0_137, %c0_138, %c0_139], %394 {strides = array<i32>} : memref<2x8x128xf32, #tpu.memory_space<vmem>>, vector<2x8x128xf32>,
      %cst_140 = arith.constant 0.000000e+00 : f32
      %396 = vector.broadcast %cst_140 : f32 to vector<2x8x128xf32>
      %c0_141 = arith.constant 0 : index
      %c0_142 = arith.constant 0 : index
      %c0_143 = arith.constant 0 : index
      %397 = vector.load %arg11[%c0_141, %c0_142, %c0_143] : memref<2x8x128xf32, #tpu.memory_space<vmem>>, vector<2x8x128xf32>
      tpu.vector_store %arg11[%c0_141, %c0_142, %c0_143], %396 {strides = array<i32>} : memref<2x8x128xf32, #tpu.memory_space<vmem>>, vector<2x8x128xf32>,
    } else {
    }
    %c0 = arith.constant 0 : index
    %c0_1 = arith.constant 0 : index
    %c0_2 = arith.constant 0 : index
    %3 = vector.load %arg2[%c0, %c0_1, %c0_2] : memref<8x8x128xf32, #tpu.memory_space<vmem>>, vector<8x8x128xf32>
    %4 = vector.shape_cast %3 : vector<8x8x128xf32> to vector<64x128xf32>
    %5 = arith.truncf %4 : vector<64x128xf32> to vector<64x128xbf16>
    %c0_3 = arith.constant 0 : index
    %c0_4 = arith.constant 0 : index
    %6 = vector.load %arg5[%c0_3, %c0_4] : memref<128x512xbf16, #tpu.memory_space<vmem>>, vector<128x512xbf16>
    %cst = arith.constant dense<0.000000e+00> : vector<64x512xf32>
    %7 = tpu.matmul %5, %6, %cst {dimension_numbers = #tpu.dot_dimension_numbers<[1], [0], [0], [1], [0, 0, 1, 1], [], []>} : vector<64x128xbf16>, vector<128x512xbf16>, vector<64x512xf32> -> vector<64x512xf32>
    %c0_5 = arith.constant 0 : index
    %c0_6 = arith.constant 0 : index
    %8 = vector.load %arg7[%c0_5, %c0_6] : memref<1x512xf32, #tpu.memory_space<vmem>>, vector<1x512xf32>
    %9 = vector.broadcast %8 : vector<1x512xf32> to vector<64x512xf32>
    %10 = arith.addf %7, %9 : vector<64x512xf32>
    %c0_7 = arith.constant 0 : index
    %c0_8 = arith.constant 0 : index
    %11 = vector.load %arg12[%c0_7, %c0_8] : memref<64x512xf32, #tpu.memory_space<vmem>>, vector<64x512xf32>
    tpu.vector_store %arg12[%c0_7, %c0_8], %10 {strides = array<i32>} : memref<64x512xf32, #tpu.memory_space<vmem>>, vector<64x512xf32>,
    %c0_9 = arith.constant 0 : index
    %c0_10 = arith.constant 0 : index
    %12 = vector.load %arg3[%c0_9, %c0_10] : memref<128x512xbf16, #tpu.memory_space<vmem>>, vector<128x512xbf16>
    %c0_11 = arith.constant 0 : index
    %c0_12 = arith.constant 0 : index
    %c0_13 = arith.constant 0 : index
    %13 = vector.load %arg10[%c0_11, %c0_12, %c0_13] : memref<2x8x128xf32, #tpu.memory_space<vmem>>, vector<1x8x128xf32>
    %14 = vector.shape_cast %13 : vector<1x8x128xf32> to vector<8x128xf32>
    %c0_14 = arith.constant 0 : index
    %c0_15 = arith.constant 0 : index
    %c0_16 = arith.constant 0 : index
    %15 = vector.load %arg11[%c0_14, %c0_15, %c0_16] : memref<2x8x128xf32, #tpu.memory_space<vmem>>, vector<1x8x128xf32>
    %16 = vector.shape_cast %15 : vector<1x8x128xf32> to vector<8x128xf32>
    %c0_17 = arith.constant 0 : index
    %c0_18 = arith.constant 0 : index
    %17 = vector.load %arg12[%c0_17, %c0_18] : memref<64x512xf32, #tpu.memory_space<vmem>>, vector<8x512xf32>
    %18 = arith.truncf %14 : vector<8x128xf32> to vector<8x128xbf16>
    %cst_19 = arith.constant dense<0.000000e+00> : vector<8x512xf32>
    %19 = tpu.matmul %18, %12, %cst_19 {dimension_numbers = #tpu.dot_dimension_numbers<[1], [0], [0], [1], [0, 0, 1, 1], [], []>} : vector<8x128xbf16>, vector<128x512xbf16>, vector<8x512xf32> -> vector<8x512xf32>
    %20 = arith.addf %17, %19 : vector<8x512xf32>
    %21 = vector.extract_strided_slice %20 {offsets = [0, 0], sizes = [8, 384], strides = [1, 1]} : vector<8x512xf32> to vector<8x384xf32>
    %22 = arith.negf %21 : vector<8x384xf32>
    %23 = math.exp %22 : vector<8x384xf32>
    %cst_20 = arith.constant 1.000000e+00 : f32
    %24 = vector.broadcast %cst_20 : f32 to vector<8x384xf32>
    %25 = arith.addf %24, %23 : vector<8x384xf32>
    %26 = arith.divf %24, %25 : vector<8x384xf32>
    %27 = vector.extract_strided_slice %20 {offsets = [0, 384], sizes = [8, 128], strides = [1, 1]} : vector<8x512xf32> to vector<8x128xf32>
    %28 = math.tanh %27 : vector<8x128xf32>
    %29 = vector.extract_strided_slice %26 {offsets = [0, 128], sizes = [8, 128], strides = [1, 1]} : vector<8x384xf32> to vector<8x128xf32>
    %30 = arith.mulf %29, %16 : vector<8x128xf32>
    %31 = vector.extract_strided_slice %26 {offsets = [0, 0], sizes = [8, 128], strides = [1, 1]} : vector<8x384xf32> to vector<8x128xf32>
    %32 = arith.mulf %31, %28 : vector<8x128xf32>
    %33 = arith.addf %30, %32 : vector<8x128xf32>
    %34 = vector.extract_strided_slice %26 {offsets = [0, 256], sizes = [8, 128], strides = [1, 1]} : vector<8x384xf32> to vector<8x128xf32>
    %35 = math.tanh %33 : vector<8x128xf32>
    %36 = arith.mulf %34, %35 : vector<8x128xf32>
    %c0_21 = arith.constant 0 : index
    %c0_22 = arith.constant 0 : index
    %37 = vector.load %arg13[%c0_21, %c0_22] : memref<64x128xf32, #tpu.memory_space<vmem>>, vector<8x128xf32>
    tpu.vector_store %arg13[%c0_21, %c0_22], %36 {strides = array<i32>} : memref<64x128xf32, #tpu.memory_space<vmem>>, vector<8x128xf32>,
    %c8 = arith.constant 8 : index
    %c0_23 = arith.constant 0 : index
    %38 = vector.load %arg12[%c8, %c0_23] : memref<64x512xf32, #tpu.memory_space<vmem>>, vector<8x512xf32>
    %39 = arith.truncf %36 : vector<8x128xf32> to vector<8x128xbf16>
    %cst_24 = arith.constant dense<0.000000e+00> : vector<8x512xf32>
    %40 = tpu.matmul %39, %12, %cst_24 {dimension_numbers = #tpu.dot_dimension_numbers<[1], [0], [0], [1], [0, 0, 1, 1], [], []>} : vector<8x128xbf16>, vector<128x512xbf16>, vector<8x512xf32> -> vector<8x512xf32>
    %41 = arith.addf %38, %40 : vector<8x512xf32>
    %42 = vector.extract_strided_slice %41 {offsets = [0, 0], sizes = [8, 384], strides = [1, 1]} : vector<8x512xf32> to vector<8x384xf32>
    %43 = arith.negf %42 : vector<8x384xf32>
    %44 = math.exp %43 : vector<8x384xf32>
    %cst_25 = arith.constant 1.000000e+00 : f32
    %45 = vector.broadcast %cst_25 : f32 to vector<8x384xf32>
    %46 = arith.addf %45, %44 : vector<8x384xf32>
    %47 = arith.divf %45, %46 : vector<8x384xf32>
    %48 = vector.extract_strided_slice %41 {offsets = [0, 384], sizes = [8, 128], strides = [1, 1]} : vector<8x512xf32> to vector<8x128xf32>
    %49 = math.tanh %48 : vector<8x128xf32>
    %50 = vector.extract_strided_slice %47 {offsets = [0, 128], sizes = [8, 128], strides = [1, 1]} : vector<8x384xf32> to vector<8x128xf32>
    %51 = arith.mulf %50, %33 : vector<8x128xf32>
    %52 = vector.extract_strided_slice %47 {offsets = [0, 0], sizes = [8, 128], strides = [1, 1]} : vector<8x384xf32> to vector<8x128xf32>
    %53 = arith.mulf %52, %49 : vector<8x128xf32>
    %54 = arith.addf %51, %53 : vector<8x128xf32>
    %55 = vector.extract_strided_slice %47 {offsets = [0, 256], sizes = [8, 128], strides = [1, 1]} : vector<8x384xf32> to vector<8x128xf32>
    %56 = math.tanh %54 : vector<8x128xf32>
    %57 = arith.mulf %55, %56 : vector<8x128xf32>
    %c8_26 = arith.constant 8 : index
    %c0_27 = arith.constant 0 : index
    %58 = vector.load %arg13[%c8_26, %c0_27] : memref<64x128xf32, #tpu.memory_space<vmem>>, vector<8x128xf32>
    tpu.vector_store %arg13[%c8_26, %c0_27], %57 {strides = array<i32>} : memref<64x128xf32, #tpu.memory_space<vmem>>, vector<8x128xf32>,
    %c16 = arith.constant 16 : index
    %c0_28 = arith.constant 0 : index
    %59 = vector.load %arg12[%c16, %c0_28] : memref<64x512xf32, #tpu.memory_space<vmem>>, vector<8x512xf32>
    %60 = arith.truncf %57 : vector<8x128xf32> to vector<8x128xbf16>
    %cst_29 = arith.constant dense<0.000000e+00> : vector<8x512xf32>
    %61 = tpu.matmul %60, %12, %cst_29 {dimension_numbers = #tpu.dot_dimension_numbers<[1], [0], [0], [1], [0, 0, 1, 1], [], []>} : vector<8x128xbf16>, vector<128x512xbf16>, vector<8x512xf32> -> vector<8x512xf32>
    %62 = arith.addf %59, %61 : vector<8x512xf32>
    %63 = vector.extract_strided_slice %62 {offsets = [0, 0], sizes = [8, 384], strides = [1, 1]} : vector<8x512xf32> to vector<8x384xf32>
    %64 = arith.negf %63 : vector<8x384xf32>
    %65 = math.exp %64 : vector<8x384xf32>
    %cst_30 = arith.constant 1.000000e+00 : f32
    %66 = vector.broadcast %cst_30 : f32 to vector<8x384xf32>
    %67 = arith.addf %66, %65 : vector<8x384xf32>
    %68 = arith.divf %66, %67 : vector<8x384xf32>
    %69 = vector.extract_strided_slice %62 {offsets = [0, 384], sizes = [8, 128], strides = [1, 1]} : vector<8x512xf32> to vector<8x128xf32>
    %70 = math.tanh %69 : vector<8x128xf32>
    %71 = vector.extract_strided_slice %68 {offsets = [0, 128], sizes = [8, 128], strides = [1, 1]} : vector<8x384xf32> to vector<8x128xf32>
    %72 = arith.mulf %71, %54 : vector<8x128xf32>
    %73 = vector.extract_strided_slice %68 {offsets = [0, 0], sizes = [8, 128], strides = [1, 1]} : vector<8x384xf32> to vector<8x128xf32>
    %74 = arith.mulf %73, %70 : vector<8x128xf32>
    %75 = arith.addf %72, %74 : vector<8x128xf32>
    %76 = vector.extract_strided_slice %68 {offsets = [0, 256], sizes = [8, 128], strides = [1, 1]} : vector<8x384xf32> to vector<8x128xf32>
    %77 = math.tanh %75 : vector<8x128xf32>
    %78 = arith.mulf %76, %77 : vector<8x128xf32>
    %c16_31 = arith.constant 16 : index
    %c0_32 = arith.constant 0 : index
    %79 = vector.load %arg13[%c16_31, %c0_32] : memref<64x128xf32, #tpu.memory_space<vmem>>, vector<8x128xf32>
    tpu.vector_store %arg13[%c16_31, %c0_32], %78 {strides = array<i32>} : memref<64x128xf32, #tpu.memory_space<vmem>>, vector<8x128xf32>,
    %c24 = arith.constant 24 : index
    %c0_33 = arith.constant 0 : index
    %80 = vector.load %arg12[%c24, %c0_33] : memref<64x512xf32, #tpu.memory_space<vmem>>, vector<8x512xf32>
    %81 = arith.truncf %78 : vector<8x128xf32> to vector<8x128xbf16>
    %cst_34 = arith.constant dense<0.000000e+00> : vector<8x512xf32>
    %82 = tpu.matmul %81, %12, %cst_34 {dimension_numbers = #tpu.dot_dimension_numbers<[1], [0], [0], [1], [0, 0, 1, 1], [], []>} : vector<8x128xbf16>, vector<128x512xbf16>, vector<8x512xf32> -> vector<8x512xf32>
    %83 = arith.addf %80, %82 : vector<8x512xf32>
    %84 = vector.extract_strided_slice %83 {offsets = [0, 0], sizes = [8, 384], strides = [1, 1]} : vector<8x512xf32> to vector<8x384xf32>
    %85 = arith.negf %84 : vector<8x384xf32>
    %86 = math.exp %85 : vector<8x384xf32>
    %cst_35 = arith.constant 1.000000e+00 : f32
    %87 = vector.broadcast %cst_35 : f32 to vector<8x384xf32>
    %88 = arith.addf %87, %86 : vector<8x384xf32>
    %89 = arith.divf %87, %88 : vector<8x384xf32>
    %90 = vector.extract_strided_slice %83 {offsets = [0, 384], sizes = [8, 128], strides = [1, 1]} : vector<8x512xf32> to vector<8x128xf32>
    %91 = math.tanh %90 : vector<8x128xf32>
    %92 = vector.extract_strided_slice %89 {offsets = [0, 128], sizes = [8, 128], strides = [1, 1]} : vector<8x384xf32> to vector<8x128xf32>
    %93 = arith.mulf %92, %75 : vector<8x128xf32>
    %94 = vector.extract_strided_slice %89 {offsets = [0, 0], sizes = [8, 128], strides = [1, 1]} : vector<8x384xf32> to vector<8x128xf32>
    %95 = arith.mulf %94, %91 : vector<8x128xf32>
    %96 = arith.addf %93, %95 : vector<8x128xf32>
    %97 = vector.extract_strided_slice %89 {offsets = [0, 256], sizes = [8, 128], strides = [1, 1]} : vector<8x384xf32> to vector<8x128xf32>
    %98 = math.tanh %96 : vector<8x128xf32>
    %99 = arith.mulf %97, %98 : vector<8x128xf32>
    %c24_36 = arith.constant 24 : index
    %c0_37 = arith.constant 0 : index
    %100 = vector.load %arg13[%c24_36, %c0_37] : memref<64x128xf32, #tpu.memory_space<vmem>>, vector<8x128xf32>
    tpu.vector_store %arg13[%c24_36, %c0_37], %99 {strides = array<i32>} : memref<64x128xf32, #tpu.memory_space<vmem>>, vector<8x128xf32>,
    %c32 = arith.constant 32 : index
    %c0_38 = arith.constant 0 : index
    %101 = vector.load %arg12[%c32, %c0_38] : memref<64x512xf32, #tpu.memory_space<vmem>>, vector<8x512xf32>
    %102 = arith.truncf %99 : vector<8x128xf32> to vector<8x128xbf16>
    %cst_39 = arith.constant dense<0.000000e+00> : vector<8x512xf32>
    %103 = tpu.matmul %102, %12, %cst_39 {dimension_numbers = #tpu.dot_dimension_numbers<[1], [0], [0], [1], [0, 0, 1, 1], [], []>} : vector<8x128xbf16>, vector<128x512xbf16>, vector<8x512xf32> -> vector<8x512xf32>
    %104 = arith.addf %101, %103 : vector<8x512xf32>
    %105 = vector.extract_strided_slice %104 {offsets = [0, 0], sizes = [8, 384], strides = [1, 1]} : vector<8x512xf32> to vector<8x384xf32>
    %106 = arith.negf %105 : vector<8x384xf32>
    %107 = math.exp %106 : vector<8x384xf32>
    %cst_40 = arith.constant 1.000000e+00 : f32
    %108 = vector.broadcast %cst_40 : f32 to vector<8x384xf32>
    %109 = arith.addf %108, %107 : vector<8x384xf32>
    %110 = arith.divf %108, %109 : vector<8x384xf32>
    %111 = vector.extract_strided_slice %104 {offsets = [0, 384], sizes = [8, 128], strides = [1, 1]} : vector<8x512xf32> to vector<8x128xf32>
    %112 = math.tanh %111 : vector<8x128xf32>
    %113 = vector.extract_strided_slice %110 {offsets = [0, 128], sizes = [8, 128], strides = [1, 1]} : vector<8x384xf32> to vector<8x128xf32>
    %114 = arith.mulf %113, %96 : vector<8x128xf32>
    %115 = vector.extract_strided_slice %110 {offsets = [0, 0], sizes = [8, 128], strides = [1, 1]} : vector<8x384xf32> to vector<8x128xf32>
    %116 = arith.mulf %115, %112 : vector<8x128xf32>
    %117 = arith.addf %114, %116 : vector<8x128xf32>
    %118 = vector.extract_strided_slice %110 {offsets = [0, 256], sizes = [8, 128], strides = [1, 1]} : vector<8x384xf32> to vector<8x128xf32>
    %119 = math.tanh %117 : vector<8x128xf32>
    %120 = arith.mulf %118, %119 : vector<8x128xf32>
    %c32_41 = arith.constant 32 : index
    %c0_42 = arith.constant 0 : index
    %121 = vector.load %arg13[%c32_41, %c0_42] : memref<64x128xf32, #tpu.memory_space<vmem>>, vector<8x128xf32>
    tpu.vector_store %arg13[%c32_41, %c0_42], %120 {strides = array<i32>} : memref<64x128xf32, #tpu.memory_space<vmem>>, vector<8x128xf32>,
    %c40 = arith.constant 40 : index
    %c0_43 = arith.constant 0 : index
    %122 = vector.load %arg12[%c40, %c0_43] : memref<64x512xf32, #tpu.memory_space<vmem>>, vector<8x512xf32>
    %123 = arith.truncf %120 : vector<8x128xf32> to vector<8x128xbf16>
    %cst_44 = arith.constant dense<0.000000e+00> : vector<8x512xf32>
    %124 = tpu.matmul %123, %12, %cst_44 {dimension_numbers = #tpu.dot_dimension_numbers<[1], [0], [0], [1], [0, 0, 1, 1], [], []>} : vector<8x128xbf16>, vector<128x512xbf16>, vector<8x512xf32> -> vector<8x512xf32>
    %125 = arith.addf %122, %124 : vector<8x512xf32>
    %126 = vector.extract_strided_slice %125 {offsets = [0, 0], sizes = [8, 384], strides = [1, 1]} : vector<8x512xf32> to vector<8x384xf32>
    %127 = arith.negf %126 : vector<8x384xf32>
    %128 = math.exp %127 : vector<8x384xf32>
    %cst_45 = arith.constant 1.000000e+00 : f32
    %129 = vector.broadcast %cst_45 : f32 to vector<8x384xf32>
    %130 = arith.addf %129, %128 : vector<8x384xf32>
    %131 = arith.divf %129, %130 : vector<8x384xf32>
    %132 = vector.extract_strided_slice %125 {offsets = [0, 384], sizes = [8, 128], strides = [1, 1]} : vector<8x512xf32> to vector<8x128xf32>
    %133 = math.tanh %132 : vector<8x128xf32>
    %134 = vector.extract_strided_slice %131 {offsets = [0, 128], sizes = [8, 128], strides = [1, 1]} : vector<8x384xf32> to vector<8x128xf32>
    %135 = arith.mulf %134, %117 : vector<8x128xf32>
    %136 = vector.extract_strided_slice %131 {offsets = [0, 0], sizes = [8, 128], strides = [1, 1]} : vector<8x384xf32> to vector<8x128xf32>
    %137 = arith.mulf %136, %133 : vector<8x128xf32>
    %138 = arith.addf %135, %137 : vector<8x128xf32>
    %139 = vector.extract_strided_slice %131 {offsets = [0, 256], sizes = [8, 128], strides = [1, 1]} : vector<8x384xf32> to vector<8x128xf32>
    %140 = math.tanh %138 : vector<8x128xf32>
    %141 = arith.mulf %139, %140 : vector<8x128xf32>
    %c40_46 = arith.constant 40 : index
    %c0_47 = arith.constant 0 : index
    %142 = vector.load %arg13[%c40_46, %c0_47] : memref<64x128xf32, #tpu.memory_space<vmem>>, vector<8x128xf32>
    tpu.vector_store %arg13[%c40_46, %c0_47], %141 {strides = array<i32>} : memref<64x128xf32, #tpu.memory_space<vmem>>, vector<8x128xf32>,
    %c48 = arith.constant 48 : index
    %c0_48 = arith.constant 0 : index
    %143 = vector.load %arg12[%c48, %c0_48] : memref<64x512xf32, #tpu.memory_space<vmem>>, vector<8x512xf32>
    %144 = arith.truncf %141 : vector<8x128xf32> to vector<8x128xbf16>
    %cst_49 = arith.constant dense<0.000000e+00> : vector<8x512xf32>
    %145 = tpu.matmul %144, %12, %cst_49 {dimension_numbers = #tpu.dot_dimension_numbers<[1], [0], [0], [1], [0, 0, 1, 1], [], []>} : vector<8x128xbf16>, vector<128x512xbf16>, vector<8x512xf32> -> vector<8x512xf32>
    %146 = arith.addf %143, %145 : vector<8x512xf32>
    %147 = vector.extract_strided_slice %146 {offsets = [0, 0], sizes = [8, 384], strides = [1, 1]} : vector<8x512xf32> to vector<8x384xf32>
    %148 = arith.negf %147 : vector<8x384xf32>
    %149 = math.exp %148 : vector<8x384xf32>
    %cst_50 = arith.constant 1.000000e+00 : f32
    %150 = vector.broadcast %cst_50 : f32 to vector<8x384xf32>
    %151 = arith.addf %150, %149 : vector<8x384xf32>
    %152 = arith.divf %150, %151 : vector<8x384xf32>
    %153 = vector.extract_strided_slice %146 {offsets = [0, 384], sizes = [8, 128], strides = [1, 1]} : vector<8x512xf32> to vector<8x128xf32>
    %154 = math.tanh %153 : vector<8x128xf32>
    %155 = vector.extract_strided_slice %152 {offsets = [0, 128], sizes = [8, 128], strides = [1, 1]} : vector<8x384xf32> to vector<8x128xf32>
    %156 = arith.mulf %155, %138 : vector<8x128xf32>
    %157 = vector.extract_strided_slice %152 {offsets = [0, 0], sizes = [8, 128], strides = [1, 1]} : vector<8x384xf32> to vector<8x128xf32>
    %158 = arith.mulf %157, %154 : vector<8x128xf32>
    %159 = arith.addf %156, %158 : vector<8x128xf32>
    %160 = vector.extract_strided_slice %152 {offsets = [0, 256], sizes = [8, 128], strides = [1, 1]} : vector<8x384xf32> to vector<8x128xf32>
    %161 = math.tanh %159 : vector<8x128xf32>
    %162 = arith.mulf %160, %161 : vector<8x128xf32>
    %c48_51 = arith.constant 48 : index
    %c0_52 = arith.constant 0 : index
    %163 = vector.load %arg13[%c48_51, %c0_52] : memref<64x128xf32, #tpu.memory_space<vmem>>, vector<8x128xf32>
    tpu.vector_store %arg13[%c48_51, %c0_52], %162 {strides = array<i32>} : memref<64x128xf32, #tpu.memory_space<vmem>>, vector<8x128xf32>,
    %c56 = arith.constant 56 : index
    %c0_53 = arith.constant 0 : index
    %164 = vector.load %arg12[%c56, %c0_53] : memref<64x512xf32, #tpu.memory_space<vmem>>, vector<8x512xf32>
    %165 = arith.truncf %162 : vector<8x128xf32> to vector<8x128xbf16>
    %cst_54 = arith.constant dense<0.000000e+00> : vector<8x512xf32>
    %166 = tpu.matmul %165, %12, %cst_54 {dimension_numbers = #tpu.dot_dimension_numbers<[1], [0], [0], [1], [0, 0, 1, 1], [], []>} : vector<8x128xbf16>, vector<128x512xbf16>, vector<8x512xf32> -> vector<8x512xf32>
    %167 = arith.addf %164, %166 : vector<8x512xf32>
    %168 = vector.extract_strided_slice %167 {offsets = [0, 0], sizes = [8, 384], strides = [1, 1]} : vector<8x512xf32> to vector<8x384xf32>
    %169 = arith.negf %168 : vector<8x384xf32>
    %170 = math.exp %169 : vector<8x384xf32>
    %cst_55 = arith.constant 1.000000e+00 : f32
    %171 = vector.broadcast %cst_55 : f32 to vector<8x384xf32>
    %172 = arith.addf %171, %170 : vector<8x384xf32>
    %173 = arith.divf %171, %172 : vector<8x384xf32>
    %174 = vector.extract_strided_slice %167 {offsets = [0, 384], sizes = [8, 128], strides = [1, 1]} : vector<8x512xf32> to vector<8x128xf32>
    %175 = math.tanh %174 : vector<8x128xf32>
    %176 = vector.extract_strided_slice %173 {offsets = [0, 128], sizes = [8, 128], strides = [1, 1]} : vector<8x384xf32> to vector<8x128xf32>
    %177 = arith.mulf %176, %159 : vector<8x128xf32>
    %178 = vector.extract_strided_slice %173 {offsets = [0, 0], sizes = [8, 128], strides = [1, 1]} : vector<8x384xf32> to vector<8x128xf32>
    %179 = arith.mulf %178, %175 : vector<8x128xf32>
    %180 = arith.addf %177, %179 : vector<8x128xf32>
    %181 = vector.extract_strided_slice %173 {offsets = [0, 256], sizes = [8, 128], strides = [1, 1]} : vector<8x384xf32> to vector<8x128xf32>
    %182 = math.tanh %180 : vector<8x128xf32>
    %183 = arith.mulf %181, %182 : vector<8x128xf32>
    %c56_56 = arith.constant 56 : index
    %c0_57 = arith.constant 0 : index
    %184 = vector.load %arg13[%c56_56, %c0_57] : memref<64x128xf32, #tpu.memory_space<vmem>>, vector<8x128xf32>
    tpu.vector_store %arg13[%c56_56, %c0_57], %183 {strides = array<i32>} : memref<64x128xf32, #tpu.memory_space<vmem>>, vector<8x128xf32>,
    %c0_58 = arith.constant 0 : index
    %c0_59 = arith.constant 0 : index
    %c0_60 = arith.constant 0 : index
    %185 = vector.load %arg10[%c0_58, %c0_59, %c0_60] : memref<2x8x128xf32, #tpu.memory_space<vmem>>, vector<1x8x128xf32>
    %186 = vector.shape_cast %185 : vector<1x8x128xf32> to vector<8x128xf32>
    %187 = vector.shape_cast %183 : vector<8x128xf32> to vector<1x8x128xf32>
    tpu.vector_store %arg10[%c0_58, %c0_59, %c0_60], %187 {strides = array<i32>} : memref<2x8x128xf32, #tpu.memory_space<vmem>>, vector<1x8x128xf32>,
    %c0_61 = arith.constant 0 : index
    %c0_62 = arith.constant 0 : index
    %c0_63 = arith.constant 0 : index
    %188 = vector.load %arg11[%c0_61, %c0_62, %c0_63] : memref<2x8x128xf32, #tpu.memory_space<vmem>>, vector<1x8x128xf32>
    %189 = vector.shape_cast %188 : vector<1x8x128xf32> to vector<8x128xf32>
    %190 = vector.shape_cast %180 : vector<8x128xf32> to vector<1x8x128xf32>
    tpu.vector_store %arg11[%c0_61, %c0_62, %c0_63], %190 {strides = array<i32>} : memref<2x8x128xf32, #tpu.memory_space<vmem>>, vector<1x8x128xf32>,
    %c0_64 = arith.constant 0 : index
    %c0_65 = arith.constant 0 : index
    %191 = vector.load %arg13[%c0_64, %c0_65] : memref<64x128xf32, #tpu.memory_space<vmem>>, vector<64x128xf32>
    %192 = arith.truncf %191 : vector<64x128xf32> to vector<64x128xbf16>
    %c0_66 = arith.constant 0 : index
    %c0_67 = arith.constant 0 : index
    %193 = vector.load %arg6[%c0_66, %c0_67] : memref<128x512xbf16, #tpu.memory_space<vmem>>, vector<128x512xbf16>
    %cst_68 = arith.constant dense<0.000000e+00> : vector<64x512xf32>
    %194 = tpu.matmul %192, %193, %cst_68 {dimension_numbers = #tpu.dot_dimension_numbers<[1], [0], [0], [1], [0, 0, 1, 1], [], []>} : vector<64x128xbf16>, vector<128x512xbf16>, vector<64x512xf32> -> vector<64x512xf32>
    %c0_69 = arith.constant 0 : index
    %c0_70 = arith.constant 0 : index
    %195 = vector.load %arg8[%c0_69, %c0_70] : memref<1x512xf32, #tpu.memory_space<vmem>>, vector<1x512xf32>
    %196 = vector.broadcast %195 : vector<1x512xf32> to vector<64x512xf32>
    %197 = arith.addf %194, %196 : vector<64x512xf32>
    %c0_71 = arith.constant 0 : index
    %c0_72 = arith.constant 0 : index
    %198 = vector.load %arg12[%c0_71, %c0_72] : memref<64x512xf32, #tpu.memory_space<vmem>>, vector<64x512xf32>
    tpu.vector_store %arg12[%c0_71, %c0_72], %197 {strides = array<i32>} : memref<64x512xf32, #tpu.memory_space<vmem>>, vector<64x512xf32>,
    %c0_73 = arith.constant 0 : index
    %c0_74 = arith.constant 0 : index
    %199 = vector.load %arg4[%c0_73, %c0_74] : memref<128x512xbf16, #tpu.memory_space<vmem>>, vector<128x512xbf16>
    %c1 = arith.constant 1 : index
    %c0_75 = arith.constant 0 : index
    %c0_76 = arith.constant 0 : index
    %200 = vector.load %arg10[%c1, %c0_75, %c0_76] : memref<2x8x128xf32, #tpu.memory_space<vmem>>, vector<1x8x128xf32>
    %201 = vector.shape_cast %200 : vector<1x8x128xf32> to vector<8x128xf32>
    %c1_77 = arith.constant 1 : index
    %c0_78 = arith.constant 0 : index
    %c0_79 = arith.constant 0 : index
    %202 = vector.load %arg11[%c1_77, %c0_78, %c0_79] : memref<2x8x128xf32, #tpu.memory_space<vmem>>, vector<1x8x128xf32>
    %203 = vector.shape_cast %202 : vector<1x8x128xf32> to vector<8x128xf32>
    %c0_80 = arith.constant 0 : index
    %c0_81 = arith.constant 0 : index
    %204 = vector.load %arg12[%c0_80, %c0_81] : memref<64x512xf32, #tpu.memory_space<vmem>>, vector<8x512xf32>
    %205 = arith.truncf %201 : vector<8x128xf32> to vector<8x128xbf16>
    %cst_82 = arith.constant dense<0.000000e+00> : vector<8x512xf32>
    %206 = tpu.matmul %205, %199, %cst_82 {dimension_numbers = #tpu.dot_dimension_numbers<[1], [0], [0], [1], [0, 0, 1, 1], [], []>} : vector<8x128xbf16>, vector<128x512xbf16>, vector<8x512xf32> -> vector<8x512xf32>
    %207 = arith.addf %204, %206 : vector<8x512xf32>
    %208 = vector.extract_strided_slice %207 {offsets = [0, 0], sizes = [8, 384], strides = [1, 1]} : vector<8x512xf32> to vector<8x384xf32>
    %209 = arith.negf %208 : vector<8x384xf32>
    %210 = math.exp %209 : vector<8x384xf32>
    %cst_83 = arith.constant 1.000000e+00 : f32
    %211 = vector.broadcast %cst_83 : f32 to vector<8x384xf32>
    %212 = arith.addf %211, %210 : vector<8x384xf32>
    %213 = arith.divf %211, %212 : vector<8x384xf32>
    %214 = vector.extract_strided_slice %207 {offsets = [0, 384], sizes = [8, 128], strides = [1, 1]} : vector<8x512xf32> to vector<8x128xf32>
    %215 = math.tanh %214 : vector<8x128xf32>
    %216 = vector.extract_strided_slice %213 {offsets = [0, 128], sizes = [8, 128], strides = [1, 1]} : vector<8x384xf32> to vector<8x128xf32>
    %217 = arith.mulf %216, %203 : vector<8x128xf32>
    %218 = vector.extract_strided_slice %213 {offsets = [0, 0], sizes = [8, 128], strides = [1, 1]} : vector<8x384xf32> to vector<8x128xf32>
    %219 = arith.mulf %218, %215 : vector<8x128xf32>
    %220 = arith.addf %217, %219 : vector<8x128xf32>
    %221 = vector.extract_strided_slice %213 {offsets = [0, 256], sizes = [8, 128], strides = [1, 1]} : vector<8x384xf32> to vector<8x128xf32>
    %222 = math.tanh %220 : vector<8x128xf32>
    %223 = arith.mulf %221, %222 : vector<8x128xf32>
    %c0_84 = arith.constant 0 : index
    %c0_85 = arith.constant 0 : index
    %c0_86 = arith.constant 0 : index
    %224 = vector.load %arg9[%c0_84, %c0_85, %c0_86] : memref<8x8x128xf32, #tpu.memory_space<vmem>>, vector<1x8x128xf32>
    %225 = vector.shape_cast %224 : vector<1x8x128xf32> to vector<8x128xf32>
    %226 = vector.shape_cast %223 : vector<8x128xf32> to vector<1x8x128xf32>
    tpu.vector_store %arg9[%c0_84, %c0_85, %c0_86], %226 {strides = array<i32>} : memref<8x8x128xf32, #tpu.memory_space<vmem>>, vector<1x8x128xf32>,
    %c8_87 = arith.constant 8 : index
    %c0_88 = arith.constant 0 : index
    %227 = vector.load %arg12[%c8_87, %c0_88] : memref<64x512xf32, #tpu.memory_space<vmem>>, vector<8x512xf32>
    %228 = arith.truncf %223 : vector<8x128xf32> to vector<8x128xbf16>
    %cst_89 = arith.constant dense<0.000000e+00> : vector<8x512xf32>
    %229 = tpu.matmul %228, %199, %cst_89 {dimension_numbers = #tpu.dot_dimension_numbers<[1], [0], [0], [1], [0, 0, 1, 1], [], []>} : vector<8x128xbf16>, vector<128x512xbf16>, vector<8x512xf32> -> vector<8x512xf32>
    %230 = arith.addf %227, %229 : vector<8x512xf32>
    %231 = vector.extract_strided_slice %230 {offsets = [0, 0], sizes = [8, 384], strides = [1, 1]} : vector<8x512xf32> to vector<8x384xf32>
    %232 = arith.negf %231 : vector<8x384xf32>
    %233 = math.exp %232 : vector<8x384xf32>
    %cst_90 = arith.constant 1.000000e+00 : f32
    %234 = vector.broadcast %cst_90 : f32 to vector<8x384xf32>
    %235 = arith.addf %234, %233 : vector<8x384xf32>
    %236 = arith.divf %234, %235 : vector<8x384xf32>
    %237 = vector.extract_strided_slice %230 {offsets = [0, 384], sizes = [8, 128], strides = [1, 1]} : vector<8x512xf32> to vector<8x128xf32>
    %238 = math.tanh %237 : vector<8x128xf32>
    %239 = vector.extract_strided_slice %236 {offsets = [0, 128], sizes = [8, 128], strides = [1, 1]} : vector<8x384xf32> to vector<8x128xf32>
    %240 = arith.mulf %239, %220 : vector<8x128xf32>
    %241 = vector.extract_strided_slice %236 {offsets = [0, 0], sizes = [8, 128], strides = [1, 1]} : vector<8x384xf32> to vector<8x128xf32>
    %242 = arith.mulf %241, %238 : vector<8x128xf32>
    %243 = arith.addf %240, %242 : vector<8x128xf32>
    %244 = vector.extract_strided_slice %236 {offsets = [0, 256], sizes = [8, 128], strides = [1, 1]} : vector<8x384xf32> to vector<8x128xf32>
    %245 = math.tanh %243 : vector<8x128xf32>
    %246 = arith.mulf %244, %245 : vector<8x128xf32>
    %c1_91 = arith.constant 1 : index
    %c0_92 = arith.constant 0 : index
    %c0_93 = arith.constant 0 : index
    %247 = vector.load %arg9[%c1_91, %c0_92, %c0_93] : memref<8x8x128xf32, #tpu.memory_space<vmem>>, vector<1x8x128xf32>
    %248 = vector.shape_cast %247 : vector<1x8x128xf32> to vector<8x128xf32>
    %249 = vector.shape_cast %246 : vector<8x128xf32> to vector<1x8x128xf32>
    tpu.vector_store %arg9[%c1_91, %c0_92, %c0_93], %249 {strides = array<i32>} : memref<8x8x128xf32, #tpu.memory_space<vmem>>, vector<1x8x128xf32>,
    %c16_94 = arith.constant 16 : index
    %c0_95 = arith.constant 0 : index
    %250 = vector.load %arg12[%c16_94, %c0_95] : memref<64x512xf32, #tpu.memory_space<vmem>>, vector<8x512xf32>
    %251 = arith.truncf %246 : vector<8x128xf32> to vector<8x128xbf16>
    %cst_96 = arith.constant dense<0.000000e+00> : vector<8x512xf32>
    %252 = tpu.matmul %251, %199, %cst_96 {dimension_numbers = #tpu.dot_dimension_numbers<[1], [0], [0], [1], [0, 0, 1, 1], [], []>} : vector<8x128xbf16>, vector<128x512xbf16>, vector<8x512xf32> -> vector<8x512xf32>
    %253 = arith.addf %250, %252 : vector<8x512xf32>
    %254 = vector.extract_strided_slice %253 {offsets = [0, 0], sizes = [8, 384], strides = [1, 1]} : vector<8x512xf32> to vector<8x384xf32>
    %255 = arith.negf %254 : vector<8x384xf32>
    %256 = math.exp %255 : vector<8x384xf32>
    %cst_97 = arith.constant 1.000000e+00 : f32
    %257 = vector.broadcast %cst_97 : f32 to vector<8x384xf32>
    %258 = arith.addf %257, %256 : vector<8x384xf32>
    %259 = arith.divf %257, %258 : vector<8x384xf32>
    %260 = vector.extract_strided_slice %253 {offsets = [0, 384], sizes = [8, 128], strides = [1, 1]} : vector<8x512xf32> to vector<8x128xf32>
    %261 = math.tanh %260 : vector<8x128xf32>
    %262 = vector.extract_strided_slice %259 {offsets = [0, 128], sizes = [8, 128], strides = [1, 1]} : vector<8x384xf32> to vector<8x128xf32>
    %263 = arith.mulf %262, %243 : vector<8x128xf32>
    %264 = vector.extract_strided_slice %259 {offsets = [0, 0], sizes = [8, 128], strides = [1, 1]} : vector<8x384xf32> to vector<8x128xf32>
    %265 = arith.mulf %264, %261 : vector<8x128xf32>
    %266 = arith.addf %263, %265 : vector<8x128xf32>
    %267 = vector.extract_strided_slice %259 {offsets = [0, 256], sizes = [8, 128], strides = [1, 1]} : vector<8x384xf32> to vector<8x128xf32>
    %268 = math.tanh %266 : vector<8x128xf32>
    %269 = arith.mulf %267, %268 : vector<8x128xf32>
    %c2 = arith.constant 2 : index
    %c0_98 = arith.constant 0 : index
    %c0_99 = arith.constant 0 : index
    %270 = vector.load %arg9[%c2, %c0_98, %c0_99] : memref<8x8x128xf32, #tpu.memory_space<vmem>>, vector<1x8x128xf32>
    %271 = vector.shape_cast %270 : vector<1x8x128xf32> to vector<8x128xf32>
    %272 = vector.shape_cast %269 : vector<8x128xf32> to vector<1x8x128xf32>
    tpu.vector_store %arg9[%c2, %c0_98, %c0_99], %272 {strides = array<i32>} : memref<8x8x128xf32, #tpu.memory_space<vmem>>, vector<1x8x128xf32>,
    %c24_100 = arith.constant 24 : index
    %c0_101 = arith.constant 0 : index
    %273 = vector.load %arg12[%c24_100, %c0_101] : memref<64x512xf32, #tpu.memory_space<vmem>>, vector<8x512xf32>
    %274 = arith.truncf %269 : vector<8x128xf32> to vector<8x128xbf16>
    %cst_102 = arith.constant dense<0.000000e+00> : vector<8x512xf32>
    %275 = tpu.matmul %274, %199, %cst_102 {dimension_numbers = #tpu.dot_dimension_numbers<[1], [0], [0], [1], [0, 0, 1, 1], [], []>} : vector<8x128xbf16>, vector<128x512xbf16>, vector<8x512xf32> -> vector<8x512xf32>
    %276 = arith.addf %273, %275 : vector<8x512xf32>
    %277 = vector.extract_strided_slice %276 {offsets = [0, 0], sizes = [8, 384], strides = [1, 1]} : vector<8x512xf32> to vector<8x384xf32>
    %278 = arith.negf %277 : vector<8x384xf32>
    %279 = math.exp %278 : vector<8x384xf32>
    %cst_103 = arith.constant 1.000000e+00 : f32
    %280 = vector.broadcast %cst_103 : f32 to vector<8x384xf32>
    %281 = arith.addf %280, %279 : vector<8x384xf32>
    %282 = arith.divf %280, %281 : vector<8x384xf32>
    %283 = vector.extract_strided_slice %276 {offsets = [0, 384], sizes = [8, 128], strides = [1, 1]} : vector<8x512xf32> to vector<8x128xf32>
    %284 = math.tanh %283 : vector<8x128xf32>
    %285 = vector.extract_strided_slice %282 {offsets = [0, 128], sizes = [8, 128], strides = [1, 1]} : vector<8x384xf32> to vector<8x128xf32>
    %286 = arith.mulf %285, %266 : vector<8x128xf32>
    %287 = vector.extract_strided_slice %282 {offsets = [0, 0], sizes = [8, 128], strides = [1, 1]} : vector<8x384xf32> to vector<8x128xf32>
    %288 = arith.mulf %287, %284 : vector<8x128xf32>
    %289 = arith.addf %286, %288 : vector<8x128xf32>
    %290 = vector.extract_strided_slice %282 {offsets = [0, 256], sizes = [8, 128], strides = [1, 1]} : vector<8x384xf32> to vector<8x128xf32>
    %291 = math.tanh %289 : vector<8x128xf32>
    %292 = arith.mulf %290, %291 : vector<8x128xf32>
    %c3 = arith.constant 3 : index
    %c0_104 = arith.constant 0 : index
    %c0_105 = arith.constant 0 : index
    %293 = vector.load %arg9[%c3, %c0_104, %c0_105] : memref<8x8x128xf32, #tpu.memory_space<vmem>>, vector<1x8x128xf32>
    %294 = vector.shape_cast %293 : vector<1x8x128xf32> to vector<8x128xf32>
    %295 = vector.shape_cast %292 : vector<8x128xf32> to vector<1x8x128xf32>
    tpu.vector_store %arg9[%c3, %c0_104, %c0_105], %295 {strides = array<i32>} : memref<8x8x128xf32, #tpu.memory_space<vmem>>, vector<1x8x128xf32>,
    %c32_106 = arith.constant 32 : index
    %c0_107 = arith.constant 0 : index
    %296 = vector.load %arg12[%c32_106, %c0_107] : memref<64x512xf32, #tpu.memory_space<vmem>>, vector<8x512xf32>
    %297 = arith.truncf %292 : vector<8x128xf32> to vector<8x128xbf16>
    %cst_108 = arith.constant dense<0.000000e+00> : vector<8x512xf32>
    %298 = tpu.matmul %297, %199, %cst_108 {dimension_numbers = #tpu.dot_dimension_numbers<[1], [0], [0], [1], [0, 0, 1, 1], [], []>} : vector<8x128xbf16>, vector<128x512xbf16>, vector<8x512xf32> -> vector<8x512xf32>
    %299 = arith.addf %296, %298 : vector<8x512xf32>
    %300 = vector.extract_strided_slice %299 {offsets = [0, 0], sizes = [8, 384], strides = [1, 1]} : vector<8x512xf32> to vector<8x384xf32>
    %301 = arith.negf %300 : vector<8x384xf32>
    %302 = math.exp %301 : vector<8x384xf32>
    %cst_109 = arith.constant 1.000000e+00 : f32
    %303 = vector.broadcast %cst_109 : f32 to vector<8x384xf32>
    %304 = arith.addf %303, %302 : vector<8x384xf32>
    %305 = arith.divf %303, %304 : vector<8x384xf32>
    %306 = vector.extract_strided_slice %299 {offsets = [0, 384], sizes = [8, 128], strides = [1, 1]} : vector<8x512xf32> to vector<8x128xf32>
    %307 = math.tanh %306 : vector<8x128xf32>
    %308 = vector.extract_strided_slice %305 {offsets = [0, 128], sizes = [8, 128], strides = [1, 1]} : vector<8x384xf32> to vector<8x128xf32>
    %309 = arith.mulf %308, %289 : vector<8x128xf32>
    %310 = vector.extract_strided_slice %305 {offsets = [0, 0], sizes = [8, 128], strides = [1, 1]} : vector<8x384xf32> to vector<8x128xf32>
    %311 = arith.mulf %310, %307 : vector<8x128xf32>
    %312 = arith.addf %309, %311 : vector<8x128xf32>
    %313 = vector.extract_strided_slice %305 {offsets = [0, 256], sizes = [8, 128], strides = [1, 1]} : vector<8x384xf32> to vector<8x128xf32>
    %314 = math.tanh %312 : vector<8x128xf32>
    %315 = arith.mulf %313, %314 : vector<8x128xf32>
    %c4 = arith.constant 4 : index
    %c0_110 = arith.constant 0 : index
    %c0_111 = arith.constant 0 : index
    %316 = vector.load %arg9[%c4, %c0_110, %c0_111] : memref<8x8x128xf32, #tpu.memory_space<vmem>>, vector<1x8x128xf32>
    %317 = vector.shape_cast %316 : vector<1x8x128xf32> to vector<8x128xf32>
    %318 = vector.shape_cast %315 : vector<8x128xf32> to vector<1x8x128xf32>
    tpu.vector_store %arg9[%c4, %c0_110, %c0_111], %318 {strides = array<i32>} : memref<8x8x128xf32, #tpu.memory_space<vmem>>, vector<1x8x128xf32>,
    %c40_112 = arith.constant 40 : index
    %c0_113 = arith.constant 0 : index
    %319 = vector.load %arg12[%c40_112, %c0_113] : memref<64x512xf32, #tpu.memory_space<vmem>>, vector<8x512xf32>
    %320 = arith.truncf %315 : vector<8x128xf32> to vector<8x128xbf16>
    %cst_114 = arith.constant dense<0.000000e+00> : vector<8x512xf32>
    %321 = tpu.matmul %320, %199, %cst_114 {dimension_numbers = #tpu.dot_dimension_numbers<[1], [0], [0], [1], [0, 0, 1, 1], [], []>} : vector<8x128xbf16>, vector<128x512xbf16>, vector<8x512xf32> -> vector<8x512xf32>
    %322 = arith.addf %319, %321 : vector<8x512xf32>
    %323 = vector.extract_strided_slice %322 {offsets = [0, 0], sizes = [8, 384], strides = [1, 1]} : vector<8x512xf32> to vector<8x384xf32>
    %324 = arith.negf %323 : vector<8x384xf32>
    %325 = math.exp %324 : vector<8x384xf32>
    %cst_115 = arith.constant 1.000000e+00 : f32
    %326 = vector.broadcast %cst_115 : f32 to vector<8x384xf32>
    %327 = arith.addf %326, %325 : vector<8x384xf32>
    %328 = arith.divf %326, %327 : vector<8x384xf32>
    %329 = vector.extract_strided_slice %322 {offsets = [0, 384], sizes = [8, 128], strides = [1, 1]} : vector<8x512xf32> to vector<8x128xf32>
    %330 = math.tanh %329 : vector<8x128xf32>
    %331 = vector.extract_strided_slice %328 {offsets = [0, 128], sizes = [8, 128], strides = [1, 1]} : vector<8x384xf32> to vector<8x128xf32>
    %332 = arith.mulf %331, %312 : vector<8x128xf32>
    %333 = vector.extract_strided_slice %328 {offsets = [0, 0], sizes = [8, 128], strides = [1, 1]} : vector<8x384xf32> to vector<8x128xf32>
    %334 = arith.mulf %333, %330 : vector<8x128xf32>
    %335 = arith.addf %332, %334 : vector<8x128xf32>
    %336 = vector.extract_strided_slice %328 {offsets = [0, 256], sizes = [8, 128], strides = [1, 1]} : vector<8x384xf32> to vector<8x128xf32>
    %337 = math.tanh %335 : vector<8x128xf32>
    %338 = arith.mulf %336, %337 : vector<8x128xf32>
    %c5 = arith.constant 5 : index
    %c0_116 = arith.constant 0 : index
    %c0_117 = arith.constant 0 : index
    %339 = vector.load %arg9[%c5, %c0_116, %c0_117] : memref<8x8x128xf32, #tpu.memory_space<vmem>>, vector<1x8x128xf32>
    %340 = vector.shape_cast %339 : vector<1x8x128xf32> to vector<8x128xf32>
    %341 = vector.shape_cast %338 : vector<8x128xf32> to vector<1x8x128xf32>
    tpu.vector_store %arg9[%c5, %c0_116, %c0_117], %341 {strides = array<i32>} : memref<8x8x128xf32, #tpu.memory_space<vmem>>, vector<1x8x128xf32>,
    %c48_118 = arith.constant 48 : index
    %c0_119 = arith.constant 0 : index
    %342 = vector.load %arg12[%c48_118, %c0_119] : memref<64x512xf32, #tpu.memory_space<vmem>>, vector<8x512xf32>
    %343 = arith.truncf %338 : vector<8x128xf32> to vector<8x128xbf16>
    %cst_120 = arith.constant dense<0.000000e+00> : vector<8x512xf32>
    %344 = tpu.matmul %343, %199, %cst_120 {dimension_numbers = #tpu.dot_dimension_numbers<[1], [0], [0], [1], [0, 0, 1, 1], [], []>} : vector<8x128xbf16>, vector<128x512xbf16>, vector<8x512xf32> -> vector<8x512xf32>
    %345 = arith.addf %342, %344 : vector<8x512xf32>
    %346 = vector.extract_strided_slice %345 {offsets = [0, 0], sizes = [8, 384], strides = [1, 1]} : vector<8x512xf32> to vector<8x384xf32>
    %347 = arith.negf %346 : vector<8x384xf32>
    %348 = math.exp %347 : vector<8x384xf32>
    %cst_121 = arith.constant 1.000000e+00 : f32
    %349 = vector.broadcast %cst_121 : f32 to vector<8x384xf32>
    %350 = arith.addf %349, %348 : vector<8x384xf32>
    %351 = arith.divf %349, %350 : vector<8x384xf32>
    %352 = vector.extract_strided_slice %345 {offsets = [0, 384], sizes = [8, 128], strides = [1, 1]} : vector<8x512xf32> to vector<8x128xf32>
    %353 = math.tanh %352 : vector<8x128xf32>
    %354 = vector.extract_strided_slice %351 {offsets = [0, 128], sizes = [8, 128], strides = [1, 1]} : vector<8x384xf32> to vector<8x128xf32>
    %355 = arith.mulf %354, %335 : vector<8x128xf32>
    %356 = vector.extract_strided_slice %351 {offsets = [0, 0], sizes = [8, 128], strides = [1, 1]} : vector<8x384xf32> to vector<8x128xf32>
    %357 = arith.mulf %356, %353 : vector<8x128xf32>
    %358 = arith.addf %355, %357 : vector<8x128xf32>
    %359 = vector.extract_strided_slice %351 {offsets = [0, 256], sizes = [8, 128], strides = [1, 1]} : vector<8x384xf32> to vector<8x128xf32>
    %360 = math.tanh %358 : vector<8x128xf32>
    %361 = arith.mulf %359, %360 : vector<8x128xf32>
    %c6 = arith.constant 6 : index
    %c0_122 = arith.constant 0 : index
    %c0_123 = arith.constant 0 : index
    %362 = vector.load %arg9[%c6, %c0_122, %c0_123] : memref<8x8x128xf32, #tpu.memory_space<vmem>>, vector<1x8x128xf32>
    %363 = vector.shape_cast %362 : vector<1x8x128xf32> to vector<8x128xf32>
    %364 = vector.shape_cast %361 : vector<8x128xf32> to vector<1x8x128xf32>
    tpu.vector_store %arg9[%c6, %c0_122, %c0_123], %364 {strides = array<i32>} : memref<8x8x128xf32, #tpu.memory_space<vmem>>, vector<1x8x128xf32>,
    %c56_124 = arith.constant 56 : index
    %c0_125 = arith.constant 0 : index
    %365 = vector.load %arg12[%c56_124, %c0_125] : memref<64x512xf32, #tpu.memory_space<vmem>>, vector<8x512xf32>
    %366 = arith.truncf %361 : vector<8x128xf32> to vector<8x128xbf16>
    %cst_126 = arith.constant dense<0.000000e+00> : vector<8x512xf32>
    %367 = tpu.matmul %366, %199, %cst_126 {dimension_numbers = #tpu.dot_dimension_numbers<[1], [0], [0], [1], [0, 0, 1, 1], [], []>} : vector<8x128xbf16>, vector<128x512xbf16>, vector<8x512xf32> -> vector<8x512xf32>
    %368 = arith.addf %365, %367 : vector<8x512xf32>
    %369 = vector.extract_strided_slice %368 {offsets = [0, 0], sizes = [8, 384], strides = [1, 1]} : vector<8x512xf32> to vector<8x384xf32>
    %370 = arith.negf %369 : vector<8x384xf32>
    %371 = math.exp %370 : vector<8x384xf32>
    %cst_127 = arith.constant 1.000000e+00 : f32
    %372 = vector.broadcast %cst_127 : f32 to vector<8x384xf32>
    %373 = arith.addf %372, %371 : vector<8x384xf32>
    %374 = arith.divf %372, %373 : vector<8x384xf32>
    %375 = vector.extract_strided_slice %368 {offsets = [0, 384], sizes = [8, 128], strides = [1, 1]} : vector<8x512xf32> to vector<8x128xf32>
    %376 = math.tanh %375 : vector<8x128xf32>
    %377 = vector.extract_strided_slice %374 {offsets = [0, 128], sizes = [8, 128], strides = [1, 1]} : vector<8x384xf32> to vector<8x128xf32>
    %378 = arith.mulf %377, %358 : vector<8x128xf32>
    %379 = vector.extract_strided_slice %374 {offsets = [0, 0], sizes = [8, 128], strides = [1, 1]} : vector<8x384xf32> to vector<8x128xf32>
    %380 = arith.mulf %379, %376 : vector<8x128xf32>
    %381 = arith.addf %378, %380 : vector<8x128xf32>
    %382 = vector.extract_strided_slice %374 {offsets = [0, 256], sizes = [8, 128], strides = [1, 1]} : vector<8x384xf32> to vector<8x128xf32>
    %383 = math.tanh %381 : vector<8x128xf32>
    %384 = arith.mulf %382, %383 : vector<8x128xf32>
    %c7 = arith.constant 7 : index
    %c0_128 = arith.constant 0 : index
    %c0_129 = arith.constant 0 : index
    %385 = vector.load %arg9[%c7, %c0_128, %c0_129] : memref<8x8x128xf32, #tpu.memory_space<vmem>>, vector<1x8x128xf32>
    %386 = vector.shape_cast %385 : vector<1x8x128xf32> to vector<8x128xf32>
    %387 = vector.shape_cast %384 : vector<8x128xf32> to vector<1x8x128xf32>
    tpu.vector_store %arg9[%c7, %c0_128, %c0_129], %387 {strides = array<i32>} : memref<8x8x128xf32, #tpu.memory_space<vmem>>, vector<1x8x128xf32>,
    %c1_130 = arith.constant 1 : index
    %c0_131 = arith.constant 0 : index
    %c0_132 = arith.constant 0 : index
    %388 = vector.load %arg10[%c1_130, %c0_131, %c0_132] : memref<2x8x128xf32, #tpu.memory_space<vmem>>, vector<1x8x128xf32>
    %389 = vector.shape_cast %388 : vector<1x8x128xf32> to vector<8x128xf32>
    %390 = vector.shape_cast %384 : vector<8x128xf32> to vector<1x8x128xf32>
    tpu.vector_store %arg10[%c1_130, %c0_131, %c0_132], %390 {strides = array<i32>} : memref<2x8x128xf32, #tpu.memory_space<vmem>>, vector<1x8x128xf32>,
    %c1_133 = arith.constant 1 : index
    %c0_134 = arith.constant 0 : index
    %c0_135 = arith.constant 0 : index
    %391 = vector.load %arg11[%c1_133, %c0_134, %c0_135] : memref<2x8x128xf32, #tpu.memory_space<vmem>>, vector<1x8x128xf32>
    %392 = vector.shape_cast %391 : vector<1x8x128xf32> to vector<8x128xf32>
    %393 = vector.shape_cast %381 : vector<8x128xf32> to vector<1x8x128xf32>
    tpu.vector_store %arg11[%c1_133, %c0_134, %c0_135], %393 {strides = array<i32>} : memref<2x8x128xf32, #tpu.memory_space<vmem>>, vector<1x8x128xf32>,
    return
  }
  func.func @transform_0(%arg0: i32, %arg1: i32) -> (i32, i32, i32) {
    %c0_i32 = arith.constant 0 : i32
    %c0_i32_0 = arith.constant 0 : i32
    return %arg1, %arg0, %c0_i32 : i32, i32, i32
  }
  func.func @transform_1(%arg0: i32, %arg1: i32) -> (i32, i32) {
    %c0_i32 = arith.constant 0 : i32
    %c0_i32_0 = arith.constant 0 : i32
    %c0_i32_1 = arith.constant 0 : i32
    return %c0_i32, %c0_i32_0 : i32, i32
  }
  func.func @transform_2(%arg0: i32, %arg1: i32) -> (i32, i32) {
    %c0_i32 = arith.constant 0 : i32
    %c0_i32_0 = arith.constant 0 : i32
    %c0_i32_1 = arith.constant 0 : i32
    return %c0_i32, %c0_i32_0 : i32, i32
  }
  func.func @transform_3(%arg0: i32, %arg1: i32) -> (i32, i32) {
    %c0_i32 = arith.constant 0 : i32
    %c0_i32_0 = arith.constant 0 : i32
    %c0_i32_1 = arith.constant 0 : i32
    return %c0_i32, %c0_i32_0 : i32, i32
  }
  func.func @transform_4(%arg0: i32, %arg1: i32) -> (i32, i32) {
    %c0_i32 = arith.constant 0 : i32
    %c0_i32_0 = arith.constant 0 : i32
    %c0_i32_1 = arith.constant 0 : i32
    return %c0_i32, %c0_i32_0 : i32, i32
  }
  func.func @transform_5(%arg0: i32, %arg1: i32) -> (i32, i32) {
    %c0_i32 = arith.constant 0 : i32
    %c0_i32_0 = arith.constant 0 : i32
    %c0_i32_1 = arith.constant 0 : i32
    return %c0_i32, %c0_i32_0 : i32, i32
  }
  func.func @transform_6(%arg0: i32, %arg1: i32) -> (i32, i32) {
    %c0_i32 = arith.constant 0 : i32
    %c0_i32_0 = arith.constant 0 : i32
    %c0_i32_1 = arith.constant 0 : i32
    return %c0_i32, %c0_i32_0 : i32, i32
  }
  func.func @transform_7(%arg0: i32, %arg1: i32) -> (i32, i32, i32) {
    %c0_i32 = arith.constant 0 : i32
    %c0_i32_0 = arith.constant 0 : i32
    return %arg1, %arg0, %c0_i32 : i32, i32, i32
  }
}

</mosaic_0001>

<llo_original>
// kernel: tpu_custom_call.1
$region0: #{tpu_custom_call.1}
  #allocation0 [shape = 'u32[]', space=smem, size = 0x4, offset = 0x4, fixed_abs, tag = 'smem constant byte address 0x4 - core index']
  #allocation1 [shape = 'u32[144,128]{1,0:T(1,128)}', space=vmem, size = 0x12000, scoped, tag = 'internal scratch']
  #allocation2 [shape = 'f32[2,8,128]{2,1,0:T(8,128)}', space=vmem, size = 0x2000, scoped, tag = 'scratch operand']
  #allocation3 [shape = 'f32[2,8,128]{2,1,0:T(8,128)}', space=vmem, size = 0x2000, scoped, tag = 'scratch operand']
  #allocation4 [shape = 'f32[64,512]{1,0:T(8,128)}', space=vmem, size = 0x20000, scoped, tag = 'scratch operand']
  #allocation5 [shape = 'f32[64,128]{1,0:T(8,128)}', space=vmem, size = 0x8000, scoped, tag = 'scratch operand']
  %s0 = inlined_call_operand.hbm [shape: f32[16,8,128], index: 0, kind: input, shape index: {}]
  %s1 = inlined_call_operand.hbm [shape: bf16[128,512], index: 1, kind: input, shape index: {}]
  %s2 = inlined_call_operand.hbm [shape: bf16[128,512], index: 2, kind: input, shape index: {}]
  %s3 = inlined_call_operand.hbm [shape: bf16[128,512], index: 3, kind: input, shape index: {}]
  %s4 = inlined_call_operand.hbm [shape: bf16[128,512], index: 4, kind: input, shape index: {}]
  %s5 = inlined_call_operand.hbm [shape: f32[1,512], index: 5, kind: input, shape index: {}]
  %s6 = inlined_call_operand.hbm [shape: f32[1,512], index: 6, kind: input, shape index: {}]
  %s7 = inlined_call_operand.hbm [shape: f32[16,8,128], index: 7, kind: output, shape index: {}]
  %s8 = sld [smem:[#allocation0]]
  $region93: #{tpu_custom_call.1} parent=0
    _
  %s10 = ssub.s32 1, %s8
  %s11 = scalar_select 0, %s10, %s8
  $region1: #{tpu_custom_call.1} parent=0
    #allocation6 [shape = 'u8[65536]{0}', space=vmem, size = 0x10000, scoped, tag = 'input window, operand 0']
    #allocation7 [shape = 's32[2]{0}', space=sflag, size = 0x8, scoped, tag = 'scoped memory for tpu_custom_call.1']
    #allocation8 [shape = 's32[2]{0}', space=sflag, size = 0x8, scoped, tag = 'scoped memory for tpu_custom_call.1']
    #allocation9 [shape = 'u8[131072]{0}', space=vmem, size = 0x20000, scoped, tag = 'input window, operand 1, single buffered']
    #allocation10 [shape = 's32[1]{0}', space=sflag, size = 0x4, scoped, tag = 'scoped memory for tpu_custom_call.1']
    #allocation11 [shape = 'u8[131072]{0}', space=vmem, size = 0x20000, scoped, tag = 'input window, operand 2, single buffered']
    #allocation12 [shape = 'u8[131072]{0}', space=vmem, size = 0x20000, scoped, tag = 'input window, operand 3, single buffered']
    #allocation13 [shape = 's32[1]{0}', space=sflag, size = 0x4, scoped, tag = 'scoped memory for tpu_custom_call.1']
    #allocation14 [shape = 'u8[131072]{0}', space=vmem, size = 0x20000, scoped, tag = 'input window, operand 4, single buffered']
    #allocation15 [shape = 'u8[2048]{0}', space=vmem, size = 0x800, scoped, tag = 'input window, operand 5, single buffered']
    #allocation16 [shape = 's32[1]{0}', space=sflag, size = 0x4, scoped, tag = 'scoped memory for tpu_custom_call.1']
    #allocation17 [shape = 'u8[2048]{0}', space=vmem, size = 0x800, scoped, tag = 'input window, operand 6, single buffered']
    #allocation18 [shape = 'u8[65536]{0}', space=vmem, size = 0x10000, scoped, tag = 'output window, operand 0']
    %12 = vsyncpa [#allocation7], 0
    %s13 = scalar_lea.sflag [#allocation7], 1
    %14 = vsyncpa %s13, 0
    %15 = vsyncpa [#allocation10], 0
    %16 = vsyncpa [#allocation13], 0
    %17 = vsyncpa [#allocation16], 0
    %18 = vsyncpa [#allocation8], 0
    %s19 = scalar_lea.sflag [#allocation8], 1
    %20 = vsyncpa %s19, 0
    loop: start=0, step=1, limit=4
    $region2: #{tpu_custom_call.1} parent=1 // loop_pre_header
      _
    $region3: #{tpu_custom_call.1} parent=1 // loop_header
      %s22 = sphi 0, %s26
      %p23 = scmp.ge.s32.totalorder %s22, 4
      %s29 = sphi 0, %s41
      %s30 = sphi 0, %s37
      %s31 = sphi 0, %s29
      %s32 = sphi 0, %s30
      %s33 = sphi 0, %s31
      %s34 = sphi 0, %s32
      %s46 = sphi 0, %s48
      %s49 = sphi 0, %s46
      %s50 = sphi 0, %s49
      %s66 = sphi 0, %s50
      %s70 = sphi 0, %s70
      %s72 = sphi 0, %s70
      %s73 = sphi 0, %s72
      %s87 = sphi 0, %s73
      %s91 = sphi 0, %s91
      %s93 = sphi 0, %s91
      %s94 = sphi 0, %s93
      %s108 = sphi 0, %s94
      %s112 = sphi 0, %s112
      %s114 = sphi 0, %s112
      %s115 = sphi 0, %s114
      %s129 = sphi 0, %s115
      %s133 = sphi 0, %s133
      %s135 = sphi 0, %s133
      %s136 = sphi 0, %s135
      %s150 = sphi 0, %s136
      %s154 = sphi 0, %s154
      %s156 = sphi 0, %s154
      %s157 = sphi 0, %s156
      %s171 = sphi 0, %s157
      %s175 = sphi 0, %s175
      %s177 = sphi 0, %s175
      %s178 = sphi 0, %s177
      %s192 = sphi 0, %s178
      %s200 = sphi 0, %s202
      %s203 = sphi 0, %s200
      %s204 = sphi 0, %s203
      %s220 = sphi 0, %s204
    $region4: #{tpu_custom_call.1} parent=1 // loop_header_branch
      %25 = sbr.rel (%p23) target = $region8
    $region5: #{tpu_custom_call.1} parent=1 // loop_body
      %s27 = ssub.s32 %s22, 1
      %s28 = ssub.s32 %s22, 2
      %s35 = sadd.s32 1, %s30
      %p36 = scmp.ge.s32.totalorder %s35, 2
      %s37 = scalar_select %p36, 0, %s35
      %s38 = sadd.s32 1, %s29
      %s39 = scalar_select %p36, %s38, %s29
      %p40 = scmp.ge.s32.totalorder %s39, 1
      %s41 = scalar_select %p40, 0, %s39
      %s42 = ssub.s32 %s30, %s37
      %s43 = ssub.s32 %s29, %s41
      %s44 = sor.u32 %s42, %s43
      %p45 = scmp.eq.s32.totalorder %s44, 0
      %s47 = sadd.s32 %s46, 1
      %s48 = scalar_select %p45, %s46, %s47
      %p51 = pneg %p45
      %p52 = scmp.eq.s32.totalorder %s22, 1
      %p53 = por %p51, %p52
      %p54 = scmp.ne.s32.totalorder %s46, %s49
      %p55 = scmp.eq.s32.totalorder %s22, 0
      %p56 = por %p54, %p55
      %p57 = scmp.ne.s32.totalorder %s46, %s49
      %p58 = scmp.eq.s32.totalorder %s27, 1
      %p59 = por %p57, %p58
      %p60 = scmp.ne.s32.totalorder %s49, %s50
      %p61 = scmp.eq.s32.totalorder %s27, 0
      %p62 = por %p60, %p61
      %p63 = scmp.ne.s32.totalorder %s49, %s50
      %p64 = scmp.eq.s32.totalorder %s28, 1
      %p65 = por %p63, %p64
      %p67 = scmp.ne.s32.totalorder %s50, %s66
      %p68 = scmp.eq.s32.totalorder %s28, 0
      %p69 = por %p67, %p68
      %s71 = sadd.s32 %s70, 1
      %p74 = scmp.eq.s32.totalorder %s22, 1
      %p75 = scmp.ne.s32.totalorder %s70, %s72
      %p76 = scmp.eq.s32.totalorder %s22, 0
      %p77 = por %p75, %p76
      %p78 = scmp.ne.s32.totalorder %s70, %s72
      %p79 = scmp.eq.s32.totalorder %s27, 1
      %p80 = por %p78, %p79
      %p81 = scmp.ne.s32.totalorder %s72, %s73
      %p82 = scmp.eq.s32.totalorder %s27, 0
      %p83 = por %p81, %p82
      %p84 = scmp.ne.s32.totalorder %s72, %s73
      %p85 = scmp.eq.s32.totalorder %s28, 1
      %p86 = por %p84, %p85
      %p88 = scmp.ne.s32.totalorder %s73, %s87
      %p89 = scmp.eq.s32.totalorder %s28, 0
      %p90 = por %p88, %p89
      %s92 = sadd.s32 %s91, 1
      %p95 = scmp.eq.s32.totalorder %s22, 1
      %p96 = scmp.ne.s32.totalorder %s91, %s93
      %p97 = scmp.eq.s32.totalorder %s22, 0
      %p98 = por %p96, %p97
      %p99 = scmp.ne.s32.totalorder %s91, %s93
      %p100 = scmp.eq.s32.totalorder %s27, 1
      %p101 = por %p99, %p100
      %p102 = scmp.ne.s32.totalorder %s93, %s94
      %p103 = scmp.eq.s32.totalorder %s27, 0
      %p104 = por %p102, %p103
      %p105 = scmp.ne.s32.totalorder %s93, %s94
      %p106 = scmp.eq.s32.totalorder %s28, 1
      %p107 = por %p105, %p106
      %p109 = scmp.ne.s32.totalorder %s94, %s108
      %p110 = scmp.eq.s32.totalorder %s28, 0
      %p111 = por %p109, %p110
      %s113 = sadd.s32 %s112, 1
      %p116 = scmp.eq.s32.totalorder %s22, 1
      %p117 = scmp.ne.s32.totalorder %s112, %s114
      %p118 = scmp.eq.s32.totalorder %s22, 0
      %p119 = por %p117, %p118
      %p120 = scmp.ne.s32.totalorder %s112, %s114
      %p121 = scmp.eq.s32.totalorder %s27, 1
      %p122 = por %p120, %p121
      %p123 = scmp.ne.s32.totalorder %s114, %s115
      %p124 = scmp.eq.s32.totalorder %s27, 0
      %p125 = por %p123, %p124
      %p126 = scmp.ne.s32.totalorder %s114, %s115
      %p127 = scmp.eq.s32.totalorder %s28, 1
      %p128 = por %p126, %p127
      %p130 = scmp.ne.s32.totalorder %s115, %s129
      %p131 = scmp.eq.s32.totalorder %s28, 0
      %p132 = por %p130, %p131
      %s134 = sadd.s32 %s133, 1
      %p137 = scmp.eq.s32.totalorder %s22, 1
      %p138 = scmp.ne.s32.totalorder %s133, %s135
      %p139 = scmp.eq.s32.totalorder %s22, 0
      %p140 = por %p138, %p139
      %p141 = scmp.ne.s32.totalorder %s133, %s135
      %p142 = scmp.eq.s32.totalorder %s27, 1
      %p143 = por %p141, %p142
      %p144 = scmp.ne.s32.totalorder %s135, %s136
      %p145 = scmp.eq.s32.totalorder %s27, 0
      %p146 = por %p144, %p145
      %p147 = scmp.ne.s32.totalorder %s135, %s136
      %p148 = scmp.eq.s32.totalorder %s28, 1
      %p149 = por %p147, %p148
      %p151 = scmp.ne.s32.totalorder %s136, %s150
      %p152 = scmp.eq.s32.totalorder %s28, 0
      %p153 = por %p151, %p152
      %s155 = sadd.s32 %s154, 1
      %p158 = scmp.eq.s32.totalorder %s22, 1
      %p159 = scmp.ne.s32.totalorder %s154, %s156
      %p160 = scmp.eq.s32.totalorder %s22, 0
      %p161 = por %p159, %p160
      %p162 = scmp.ne.s32.totalorder %s154, %s156
      %p163 = scmp.eq.s32.totalorder %s27, 1
      %p164 = por %p162, %p163
      %p165 = scmp.ne.s32.totalorder %s156, %s157
      %p166 = scmp.eq.s32.totalorder %s27, 0
      %p167 = por %p165, %p166
      %p168 = scmp.ne.s32.totalorder %s156, %s157
      %p169 = scmp.eq.s32.totalorder %s28, 1
      %p170 = por %p168, %p169
      %p172 = scmp.ne.s32.totalorder %s157, %s171
      %p173 = scmp.eq.s32.totalorder %s28, 0
      %p174 = por %p172, %p173
      %s176 = sadd.s32 %s175, 1
      %p179 = scmp.eq.s32.totalorder %s22, 1
      %p180 = scmp.ne.s32.totalorder %s175, %s177
      %p181 = scmp.eq.s32.totalorder %s22, 0
      %p182 = por %p180, %p181
      %p183 = scmp.ne.s32.totalorder %s175, %s177
      %p184 = scmp.eq.s32.totalorder %s27, 1
      %p185 = por %p183, %p184
      %p186 = scmp.ne.s32.totalorder %s177, %s178
      %p187 = scmp.eq.s32.totalorder %s27, 0
      %p188 = por %p186, %p187
      %p189 = scmp.ne.s32.totalorder %s177, %s178
      %p190 = scmp.eq.s32.totalorder %s28, 1
      %p191 = por %p189, %p190
      %p193 = scmp.ne.s32.totalorder %s178, %s192
      %p194 = scmp.eq.s32.totalorder %s28, 0
      %p195 = por %p193, %p194
      %s196 = ssub.s32 %s30, %s37
      %s197 = ssub.s32 %s29, %s41
      %s198 = sor.u32 %s196, %s197
      %p199 = scmp.eq.s32.totalorder %s198, 0
      %s201 = sadd.s32 %s200, 1
      %s202 = scalar_select %p199, %s200, %s201
      %p205 = pneg %p199
      %p206 = scmp.eq.s32.totalorder %s22, 1
      %p207 = por %p205, %p206
      %p208 = scmp.ne.s32.totalorder %s200, %s203
      %p209 = scmp.eq.s32.totalorder %s22, 0
      %p210 = por %p208, %p209
      %p211 = scmp.ne.s32.totalorder %s200, %s203
      %p212 = scmp.eq.s32.totalorder %s27, 1
      %p213 = por %p211, %p212
      %p214 = scmp.ne.s32.totalorder %s203, %s204
      %p215 = scmp.eq.s32.totalorder %s27, 0
      %p216 = por %p214, %p215
      %p217 = scmp.ne.s32.totalorder %s203, %s204
      %p218 = scmp.eq.s32.totalorder %s28, 1
      %p219 = por %p217, %p218
      %p221 = scmp.ne.s32.totalorder %s204, %s220
      %p222 = scmp.eq.s32.totalorder %s28, 0
      %p223 = por %p221, %p222
      %p224 = scmp.le.s32.totalorder 1, %s22
      %p225 = scmp.lt.s32.totalorder %s22, 3
      %p226 = pnand %p224, %p225
      %p227 = pneg %p226
      // Predicated region
      $region9: #{tpu_custom_call.1} parent=5 // pred_check
        _
      $region10: #{tpu_custom_call.1} parent=5 // pred_check_branch
        %229 = sbr.rel (%p226) target = $region12
      $region11: #{tpu_custom_call.1} parent=5 // pred_region
        %s230 = ssub.s32 %s22, 1
        // Predicated region
        $region13: #{tpu_custom_call.1} parent=11 // pred_check
          %p231 = pneg %p83
        $region14: #{tpu_custom_call.1} parent=11 // pred_check_branch
          %233 = sbr.rel (%p231) target = $region16
        $region15: #{tpu_custom_call.1} parent=11 // pred_region
          %s235 = ssub.s32 4096, 4096
          %236 = vsyncadd [#allocation10], %s235
          %s237 = sshll.u32 [#allocation9], 4
          %s238 = int_to_ptr.vmem [resolvable:$true] %s237
          %243 = dma.hbm_to_vmem [thread:$0]  %s1, 4096, %s238, [#allocation10], 256, 256, 16
        $region16: #{tpu_custom_call.1} parent=11 // pred_fallthru
          _
        // Predicated region
        $region17: #{tpu_custom_call.1} parent=11 // pred_check
          %p244 = pneg %p104
        $region18: #{tpu_custom_call.1} parent=11 // pred_check_branch
          %246 = sbr.rel (%p244) target = $region20
        $region19: #{tpu_custom_call.1} parent=11 // pred_region
          %s248 = ssub.s32 4096, 4096
          %249 = vsyncadd [#allocation10], %s248
          %s250 = sshll.u32 [#allocation11], 4
          %s251 = int_to_ptr.vmem [resolvable:$true] %s250
          %256 = dma.hbm_to_vmem [thread:$0]  %s2, 4096, %s251, [#allocation10], 256, 256, 16
        $region20: #{tpu_custom_call.1} parent=11 // pred_fallthru
          _
        // Predicated region
        $region21: #{tpu_custom_call.1} parent=11 // pred_check
          %p257 = pneg %p125
        $region22: #{tpu_custom_call.1} parent=11 // pred_check_branch
          %259 = sbr.rel (%p257) target = $region24
        $region23: #{tpu_custom_call.1} parent=11 // pred_region
          %s261 = ssub.s32 4096, 4096
          %262 = vsyncadd [#allocation13], %s261
          %s263 = sshll.u32 [#allocation12], 4
          %s264 = int_to_ptr.vmem [resolvable:$true] %s263
          %269 = dma.hbm_to_vmem [thread:$0]  %s3, 4096, %s264, [#allocation13], 256, 256, 16
        $region24: #{tpu_custom_call.1} parent=11 // pred_fallthru
          _
        // Predicated region
        $region25: #{tpu_custom_call.1} parent=11 // pred_check
          %p270 = pneg %p146
        $region26: #{tpu_custom_call.1} parent=11 // pred_check_branch
          %272 = sbr.rel (%p270) target = $region28
        $region27: #{tpu_custom_call.1} parent=11 // pred_region
          %s274 = ssub.s32 4096, 4096
          %275 = vsyncadd [#allocation13], %s274
          %s276 = sshll.u32 [#allocation14], 4
          %s277 = int_to_ptr.vmem [resolvable:$true] %s276
          %282 = dma.hbm_to_vmem [thread:$0]  %s4, 4096, %s277, [#allocation13], 256, 256, 16
        $region28: #{tpu_custom_call.1} parent=11 // pred_fallthru
          _
        // Predicated region
        $region29: #{tpu_custom_call.1} parent=11 // pred_check
          %p283 = pneg %p167
        $region30: #{tpu_custom_call.1} parent=11 // pred_check_branch
          %285 = sbr.rel (%p283) target = $region32
        $region31: #{tpu_custom_call.1} parent=11 // pred_region
          %s287 = ssub.s32 64, 64
          %288 = vsyncadd [#allocation16], %s287
          %s290 = sshll.u32 [#allocation15], 4
          %s291 = int_to_ptr.vmem [resolvable:$true] %s290
          %293 = dma.hbm_to_vmem [thread:$0]  %s5, 64, %s291, [#allocation16]
        $region32: #{tpu_custom_call.1} parent=11 // pred_fallthru
          _
        // Predicated region
        $region33: #{tpu_custom_call.1} parent=11 // pred_check
          %p294 = pneg %p188
        $region34: #{tpu_custom_call.1} parent=11 // pred_check_branch
          %296 = sbr.rel (%p294) target = $region36
        $region35: #{tpu_custom_call.1} parent=11 // pred_region
          %s298 = ssub.s32 64, 64
          %299 = vsyncadd [#allocation16], %s298
          %s301 = sshll.u32 [#allocation17], 4
          %s302 = int_to_ptr.vmem [resolvable:$true] %s301
          %304 = dma.hbm_to_vmem [thread:$0]  %s6, 64, %s302, [#allocation16]
        $region36: #{tpu_custom_call.1} parent=11 // pred_fallthru
          _
      $region12: #{tpu_custom_call.1} parent=5 // pred_fallthru
        _
      %p305 = scmp.lt.s32.totalorder %s22, 2
      // Predicated region
      $region37: #{tpu_custom_call.1} parent=5 // pred_check
        %p306 = pneg %p305
      $region38: #{tpu_custom_call.1} parent=5 // pred_check_branch
        %308 = sbr.rel (%p306) target = $region40
      $region39: #{tpu_custom_call.1} parent=5 // pred_region
        // Predicated region
        $region41: #{tpu_custom_call.1} parent=39 // pred_check
          %p309 = pneg %p56
        $region42: #{tpu_custom_call.1} parent=39 // pred_check_branch
          %311 = sbr.rel (%p309) target = $region44
        $region43: #{tpu_custom_call.1} parent=39 // pred_region
          %s312 = sand.u32 %s46, 1
          %s313 = scalar_lea.sflag [#allocation7], %s312
          %s314 = sand.u32 %s46, 1
          %s315 = smul.addr %s314, 64
          %s316 = scalar_lea.vmem [#allocation6], %s315
          %s317 = smul.u32 8, %s30
          %s319 = ssub.s32 1024, 1024
          %320 = vsyncadd %s313, %s319
          %s321 = sadd.s32 %s29, %s317
          %s322 = smul.addr %s321, 128
          %s323 = scalar_lea.hbm %s0, %s322
          %s324 = sshll.u32 %s316, 4
          %s325 = int_to_ptr.vmem [resolvable:$true] %s324
          %330 = dma.hbm_to_vmem [thread:$0]  %s323, 1024, %s325, %s313, 128, 128, 8
        $region44: #{tpu_custom_call.1} parent=39 // pred_fallthru
          _
      $region40: #{tpu_custom_call.1} parent=5 // pred_fallthru
        _
      %p331 = scmp.le.s32.totalorder 1, %s22
      %p332 = scmp.lt.s32.totalorder %s22, 3
      %p333 = pnand %p331, %p332
      %p334 = pneg %p333
      // Predicated region
      $region45: #{tpu_custom_call.1} parent=5 // pred_check
        _
      $region46: #{tpu_custom_call.1} parent=5 // pred_check_branch
        %336 = sbr.rel (%p333) target = $region48
      $region47: #{tpu_custom_call.1} parent=5 // pred_region
        %s337 = ssub.s32 %s22, 1
        %s338 = sand.u32 %s49, 1
        %s339 = scalar_lea.sflag [#allocation7], %s338
        %s340 = sand.u32 %s49, 1
        %s341 = smul.addr %s340, 64
        %s342 = scalar_lea.vmem [#allocation6], %s341
        // Predicated region
        $region49: #{tpu_custom_call.1} parent=47 // pred_check
          %p343 = pneg %p62
        $region50: #{tpu_custom_call.1} parent=47 // pred_check_branch
          %345 = sbr.rel (%p343) target = $region52
        $region51: #{tpu_custom_call.1} parent=47 // pred_region
          %346 = dma.done %s339, 1024
        $region52: #{tpu_custom_call.1} parent=47 // pred_fallthru
          _
        // Predicated region
        $region53: #{tpu_custom_call.1} parent=47 // pred_check
          %p347 = pneg %p83
        $region54: #{tpu_custom_call.1} parent=47 // pred_check_branch
          %349 = sbr.rel (%p347) target = $region56
        $region55: #{tpu_custom_call.1} parent=47 // pred_region
          %350 = dma.done [#allocation10], 4096
        $region56: #{tpu_custom_call.1} parent=47 // pred_fallthru
          _
        // Predicated region
        $region57: #{tpu_custom_call.1} parent=47 // pred_check
          %p351 = pneg %p104
        $region58: #{tpu_custom_call.1} parent=47 // pred_check_branch
          %353 = sbr.rel (%p351) target = $region60
        $region59: #{tpu_custom_call.1} parent=47 // pred_region
          %354 = dma.done [#allocation10], 4096
        $region60: #{tpu_custom_call.1} parent=47 // pred_fallthru
          _
        // Predicated region
        $region61: #{tpu_custom_call.1} parent=47 // pred_check
          %p355 = pneg %p125
        $region62: #{tpu_custom_call.1} parent=47 // pred_check_branch
          %357 = sbr.rel (%p355) target = $region64
        $region63: #{tpu_custom_call.1} parent=47 // pred_region
          %358 = dma.done [#allocation13], 4096
        $region64: #{tpu_custom_call.1} parent=47 // pred_fallthru
          _
        // Predicated region
        $region65: #{tpu_custom_call.1} parent=47 // pred_check
          %p359 = pneg %p146
        $region66: #{tpu_custom_call.1} parent=47 // pred_check_branch
          %361 = sbr.rel (%p359) target = $region68
        $region67: #{tpu_custom_call.1} parent=47 // pred_region
          %362 = dma.done [#allocation13], 4096
        $region68: #{tpu_custom_call.1} parent=47 // pred_fallthru
          _
        // Predicated region
        $region69: #{tpu_custom_call.1} parent=47 // pred_check
          %p363 = pneg %p167
        $region70: #{tpu_custom_call.1} parent=47 // pred_check_branch
          %365 = sbr.rel (%p363) target = $region72
        $region71: #{tpu_custom_call.1} parent=47 // pred_region
          %366 = dma.done [#allocation16], 64
        $region72: #{tpu_custom_call.1} parent=47 // pred_fallthru
          _
        // Predicated region
        $region73: #{tpu_custom_call.1} parent=47 // pred_check
          %p367 = pneg %p188
        $region74: #{tpu_custom_call.1} parent=47 // pred_check_branch
          %369 = sbr.rel (%p367) target = $region76
        $region75: #{tpu_custom_call.1} parent=47 // pred_region
          %370 = dma.done [#allocation16], 64
        $region76: #{tpu_custom_call.1} parent=47 // pred_fallthru
          _
        %s371 = sand.u32 %s49, 1
        %s372 = scalar_lea.sflag [#allocation7], %s371
        %s373 = sand.u32 %s49, 1
        %s374 = smul.addr %s373, 64
        %s375 = scalar_lea.vmem [#allocation6], %s374
        %p376 = pneg %p62
        %p377 = pneg %p59
        %p378 = pneg %p83
        %p379 = pneg %p80
        %p380 = pneg %p104
        %p381 = pneg %p101
        %p382 = pneg %p125
        %p383 = pneg %p122
        %p384 = pneg %p146
        %p385 = pneg %p143
        %p386 = pneg %p167
        %p387 = pneg %p164
        %p388 = pneg %p188
        %p389 = pneg %p185
        %p390 = pneg %p216
        %p391 = pneg %p213
        %s392 = sand.u32 %s203, 1
        %s393 = scalar_lea.sflag [#allocation8], %s392
        %s394 = sand.u32 %s203, 1
        %s395 = smul.addr %s394, 64
        %s396 = scalar_lea.vmem [#allocation18], %s395
        %s397 = smul.u32 8, %s32
        %s398 = smul.u32 8, %s32
        %p400 = scmp.eq.s32.totalorder %s32, 0
        // Predicated region
        $region77: #{tpu_custom_call.1} parent=47 // pred_check
          %p401 = pneg %p400
        $region78: #{tpu_custom_call.1} parent=47 // pred_check_branch
          %403 = sbr.rel (%p401) target = $region80
        $region79: #{tpu_custom_call.1} parent=47 // pred_region
          %404 = vst [vmem:[#allocation2] sm:$0xff] 0.0
          %405 = vst [vmem:[#allocation2 + $0x8] sm:$0xff] 0.0
          %406 = vst [vmem:[#allocation3] sm:$0xff] 0.0
          %407 = vst [vmem:[#allocation3 + $0x8] sm:$0xff] 0.0
        $region80: #{tpu_custom_call.1} parent=47 // pred_fallthru
          _
        %v408 = vld [vmem:[%s342] sm:$0xff]
        %v409 = vld [vmem:[%s342 + $0x8] sm:$0xff]
        %v410 = vld [vmem:[%s342 + $0x10] sm:$0xff]
        %v411 = vld [vmem:[%s342 + $0x18] sm:$0xff]
        %v412 = vld [vmem:[%s342 + $0x20] sm:$0xff]
        %v413 = vld [vmem:[%s342 + $0x28] sm:$0xff]
        %v414 = vld [vmem:[%s342 + $0x30] sm:$0xff]
        %v415 = vld [vmem:[%s342 + $0x38] sm:$0xff]
        %v416 = vpack.c.bf16 %v409, %v408
        %v417 = vpack.c.bf16 %v411, %v410
        %v418 = vpack.c.bf16 %v413, %v412
        %v419 = vpack.c.bf16 %v415, %v414
        %v420 = vld [vmem:[#allocation12] sm:$0xff]
        %v421 = vld [vmem:[#allocation12 + $0x8] sm:$0xff]
        %v422 = vld [vmem:[#allocation12 + $0x10] sm:$0xff]
        %v423 = vld [vmem:[#allocation12 + $0x18] sm:$0xff]
        %v424 = vld [vmem:[#allocation12 + $0x20] sm:$0xff]
        %v425 = vld [vmem:[#allocation12 + $0x28] sm:$0xff]
        %v426 = vld [vmem:[#allocation12 + $0x30] sm:$0xff]
        %v427 = vld [vmem:[#allocation12 + $0x38] sm:$0xff]
        %v428 = vld [vmem:[#allocation12 + $0x40] sm:$0xff]
        %v429 = vld [vmem:[#allocation12 + $0x48] sm:$0xff]
        %v430 = vld [vmem:[#allocation12 + $0x50] sm:$0xff]
        %v431 = vld [vmem:[#allocation12 + $0x58] sm:$0xff]
        %v432 = vld [vmem:[#allocation12 + $0x60] sm:$0xff]
        %v433 = vld [vmem:[#allocation12 + $0x68] sm:$0xff]
        %v434 = vld [vmem:[#allocation12 + $0x70] sm:$0xff]
        %v435 = vld [vmem:[#allocation12 + $0x78] sm:$0xff]
        %v436 = vld [vmem:[#allocation12 + $0x80] sm:$0xff]
        %v437 = vld [vmem:[#allocation12 + $0x88] sm:$0xff]
        %v438 = vld [vmem:[#allocation12 + $0x90] sm:$0xff]
        %v439 = vld [vmem:[#allocation12 + $0x98] sm:$0xff]
        %v440 = vld [vmem:[#allocation12 + $0xa0] sm:$0xff]
        %v441 = vld [vmem:[#allocation12 + $0xa8] sm:$0xff]
        %v442 = vld [vmem:[#allocation12 + $0xb0] sm:$0xff]
        %v443 = vld [vmem:[#allocation12 + $0xb8] sm:$0xff]
        %v444 = vld [vmem:[#allocation12 + $0xc0] sm:$0xff]
        %v445 = vld [vmem:[#allocation12 + $0xc8] sm:$0xff]
        %v446 = vld [vmem:[#allocation12 + $0xd0] sm:$0xff]
        %v447 = vld [vmem:[#allocation12 + $0xd8] sm:$0xff]
        %v448 = vld [vmem:[#allocation12 + $0xe0] sm:$0xff]
        %v449 = vld [vmem:[#allocation12 + $0xe8] sm:$0xff]
        %v450 = vld [vmem:[#allocation12 + $0xf0] sm:$0xff]
        %v451 = vld [vmem:[#allocation12 + $0xf8] sm:$0xff]
        %v452 = vld [vmem:[#allocation15] sm:$0xf]
        %v454 = vlaneseq
        %v455 = vshrl.u32 %v454, 7
        %v456 = vsub.s32 0, %v455
        %v457 = vrot.slane %v452, %v456
        %v458 = vlaneseq
        %v459 = vshrl.u32 %v458, 7
        %v460 = vsub.s32 1, %v459
        %v461 = vrot.slane %v452, %v460
        %v462 = vlaneseq
        %v463 = vshrl.u32 %v462, 7
        %v464 = vsub.s32 2, %v463
        %v465 = vrot.slane %v452, %v464
        %v466 = vlaneseq
        %v467 = vshrl.u32 %v466, 7
        %v468 = vsub.s32 3, %v467
        %v469 = vrot.slane %v452, %v468
        %v506 = vunpack.c.l.b16 %v420
        %v507 = vunpack.c.h.b16 %v420
        %v508 = vunpack.c.l.b16 %v421
        %v509 = vunpack.c.h.b16 %v421
        %v510 = vunpack.c.l.b16 %v422
        %v511 = vunpack.c.h.b16 %v422
        %v512 = vunpack.c.l.b16 %v423
        %v513 = vunpack.c.h.b16 %v423
        %v514 = vunpack.c.l.b16 %v424
        %v515 = vunpack.c.h.b16 %v424
        %v516 = vunpack.c.l.b16 %v425
        %v517 = vunpack.c.h.b16 %v425
        %v518 = vunpack.c.l.b16 %v426
        %v519 = vunpack.c.h.b16 %v426
        %v520 = vunpack.c.l.b16 %v427
        %v521 = vunpack.c.h.b16 %v427
        %v522 = vunpack.c.l.b16 %v428
        %v523 = vunpack.c.h.b16 %v428
        %v524 = vunpack.c.l.b16 %v429
        %v525 = vunpack.c.h.b16 %v429
        %v526 = vunpack.c.l.b16 %v430
        %v527 = vunpack.c.h.b16 %v430
        %v528 = vunpack.c.l.b16 %v431
        %v529 = vunpack.c.h.b16 %v431
        %v530 = vunpack.c.l.b16 %v432
        %v531 = vunpack.c.h.b16 %v432
        %v532 = vunpack.c.l.b16 %v433
        %v533 = vunpack.c.h.b16 %v433
        %v534 = vunpack.c.l.b16 %v434
        %v535 = vunpack.c.h.b16 %v434
        %v536 = vunpack.c.l.b16 %v435
        %v537 = vunpack.c.h.b16 %v435
        %v538 = vunpack.c.l.b16 %v436
        %v539 = vunpack.c.h.b16 %v436
        %v540 = vunpack.c.l.b16 %v437
        %v541 = vunpack.c.h.b16 %v437
        %v542 = vunpack.c.l.b16 %v438
        %v543 = vunpack.c.h.b16 %v438
        %v544 = vunpack.c.l.b16 %v439
        %v545 = vunpack.c.h.b16 %v439
        %v546 = vunpack.c.l.b16 %v440
        %v547 = vunpack.c.h.b16 %v440
        %v548 = vunpack.c.l.b16 %v441
        %v549 = vunpack.c.h.b16 %v441
        %v550 = vunpack.c.l.b16 %v442
        %v551 = vunpack.c.h.b16 %v442
        %v552 = vunpack.c.l.b16 %v443
        %v553 = vunpack.c.h.b16 %v443
        %v554 = vunpack.c.l.b16 %v444
        %v555 = vunpack.c.h.b16 %v444
        %v556 = vunpack.c.l.b16 %v445
        %v557 = vunpack.c.h.b16 %v445
        %v558 = vunpack.c.l.b16 %v446
        %v559 = vunpack.c.h.b16 %v446
        %v560 = vunpack.c.l.b16 %v447
        %v561 = vunpack.c.h.b16 %v447
        %v562 = vunpack.c.l.b16 %v448
        %v563 = vunpack.c.h.b16 %v448
        %v564 = vunpack.c.l.b16 %v449
        %v565 = vunpack.c.h.b16 %v449
        %v566 = vunpack.c.l.b16 %v450
        %v567 = vunpack.c.h.b16 %v450
        %v568 = vunpack.c.l.b16 %v451
        %v569 = vunpack.c.h.b16 %v451
        %v570 = vpack.c.b16 %v510, %v506
        %v571 = vpack.c.b16 %v511, %v507
        %v572 = vpack.c.b16 %v512, %v508
        %v573 = vpack.c.b16 %v513, %v509
        %v574 = vpack.c.b16 %v518, %v514
        %v575 = vpack.c.b16 %v519, %v515
        %v576 = vpack.c.b16 %v520, %v516
        %v577 = vpack.c.b16 %v521, %v517
        %v578 = vpack.c.b16 %v526, %v522
        %v579 = vpack.c.b16 %v527, %v523
        %v580 = vpack.c.b16 %v528, %v524
        %v581 = vpack.c.b16 %v529, %v525
        %v582 = vpack.c.b16 %v534, %v530
        %v583 = vpack.c.b16 %v535, %v531
        %v584 = vpack.c.b16 %v536, %v532
        %v585 = vpack.c.b16 %v537, %v533
        %v586 = vpack.c.b16 %v542, %v538
        %v587 = vpack.c.b16 %v543, %v539
        %v588 = vpack.c.b16 %v544, %v540
        %v589 = vpack.c.b16 %v545, %v541
        %v590 = vpack.c.b16 %v550, %v546
        %v591 = vpack.c.b16 %v551, %v547
        %v592 = vpack.c.b16 %v552, %v548
        %v593 = vpack.c.b16 %v553, %v549
        %v594 = vpack.c.b16 %v558, %v554
        %v595 = vpack.c.b16 %v559, %v555
        %v596 = vpack.c.b16 %v560, %v556
        %v597 = vpack.c.b16 %v561, %v557
        %v598 = vpack.c.b16 %v566, %v562
        %v599 = vpack.c.b16 %v567, %v563
        %v600 = vpack.c.b16 %v568, %v564
        %v601 = vpack.c.b16 %v569, %v565
        %634 = vmatprep.subr.bf16.mxu0 %v571
        %635 = vmatpush1.bf16.msra.mxu0 %v570
        %636 = vmatprep.subr.bf16.mxu0 %v575
        %637 = vmatpush1.bf16.msra.mxu0 %v574
        %638 = vmatprep.subr.bf16.mxu0 %v579
        %639 = vmatpush1.bf16.msra.mxu0 %v578
        %640 = vmatprep.subr.bf16.mxu0 %v583
        %641 = vmatpush1.bf16.msra.mxu0 %v582
        %642 = vmatprep.subr.bf16.mxu0 %v587
        %643 = vmatpush1.bf16.msra.mxu0 %v586
        %644 = vmatprep.subr.bf16.mxu0 %v591
        %645 = vmatpush1.bf16.msra.mxu0 %v590
        %646 = vmatprep.subr.bf16.mxu0 %v595
        %647 = vmatpush1.bf16.msra.mxu0 %v594
        %648 = vmatprep.subr.bf16.mxu0 %v599
        %649 = vmatpush1.bf16.msra.mxu0 %v598
        %650 = vmatprep.subr.bf16.mxu0 0
        %651 = vmatpush1.bf16.msra.mxu0 0
        %652 = vmatprep.subr.bf16.mxu0 0
        %653 = vmatpush1.bf16.msra.mxu0 0
        %654 = vmatprep.subr.bf16.mxu0 0
        %655 = vmatpush1.bf16.msra.mxu0 0
        %656 = vmatprep.subr.bf16.mxu0 0
        %657 = vmatpush1.bf16.msra.mxu0 0
        %658 = vmatprep.subr.bf16.mxu0 0
        %659 = vmatpush1.bf16.msra.mxu0 0
        %660 = vmatprep.subr.bf16.mxu0 0
        %661 = vmatpush1.bf16.msra.mxu0 0
        %662 = vmatprep.subr.bf16.mxu0 0
        %663 = vmatpush1.bf16.msra.mxu0 0
        %664 = vmatprep.subr.bf16.mxu0 0
        %665 = vmatpush1.bf16.msra.mxu0 0
        %666 = vmatprep.mubr.bf16.mxu0 0
        %667 = vmatmul.mubr.bf16.gmra.mrb[0].mxu0 %v416
        %v668 = vpop.f32.mrb[0].mxu0
        %v669 = vadd.f32 %v457, %v668
        %v670 = vpop.f32.mrb[0].mxu0
        %v671 = vadd.f32 %v461, %v670
        %v672 = vpop.f32.mrb[0].mxu0
        %v673 = vadd.f32 %v457, %v672
        %v674 = vpop.f32.mrb[0].mxu0
        %v675 = vadd.f32 %v461, %v674
        %676 = vmatprep.mubr.bf16.mxu0 0
        %677 = vmatmul.mubr.bf16.gmra.mrb[0].mxu0 %v417
        %v678 = vpop.f32.mrb[0].mxu0
        %v679 = vadd.f32 %v457, %v678
        %v680 = vpop.f32.mrb[0].mxu0
        %v681 = vadd.f32 %v461, %v680
        %v682 = vpop.f32.mrb[0].mxu0
        %v683 = vadd.f32 %v457, %v682
        %v684 = vpop.f32.mrb[0].mxu0
        %v685 = vadd.f32 %v461, %v684
        %686 = vmatprep.mubr.bf16.mxu0 0
        %687 = vmatmul.mubr.bf16.gmra.mrb[0].mxu0 %v418
        %v688 = vpop.f32.mrb[0].mxu0
        %v689 = vadd.f32 %v457, %v688
        %v690 = vpop.f32.mrb[0].mxu0
        %v691 = vadd.f32 %v461, %v690
        %v692 = vpop.f32.mrb[0].mxu0
        %v693 = vadd.f32 %v457, %v692
        %v694 = vpop.f32.mrb[0].mxu0
        %v695 = vadd.f32 %v461, %v694
        %696 = vmatprep.mubr.bf16.mxu0 0
        %697 = vmatmul.mubr.bf16.gmra.mrb[0].mxu0 %v419
        %v698 = vpop.f32.mrb[0].mxu0
        %v699 = vadd.f32 %v457, %v698
        %v700 = vpop.f32.mrb[0].mxu0
        %v701 = vadd.f32 %v461, %v700
        %v702 = vpop.f32.mrb[0].mxu0
        %v703 = vadd.f32 %v457, %v702
        %v704 = vpop.f32.mrb[0].mxu0
        %v705 = vadd.f32 %v461, %v704
        %706 = vdwg.mxu0
        %707 = vmatprep.subr.bf16.mxu0 %v573
        %708 = vmatpush1.bf16.msra.mxu0 %v572
        %709 = vmatprep.subr.bf16.mxu0 %v577
        %710 = vmatpush1.bf16.msra.mxu0 %v576
        %711 = vmatprep.subr.bf16.mxu0 %v581
        %712 = vmatpush1.bf16.msra.mxu0 %v580
        %713 = vmatprep.subr.bf16.mxu0 %v585
        %714 = vmatpush1.bf16.msra.mxu0 %v584
        %715 = vmatprep.subr.bf16.mxu0 %v589
        %716 = vmatpush1.bf16.msra.mxu0 %v588
        %717 = vmatprep.subr.bf16.mxu0 %v593
        %718 = vmatpush1.bf16.msra.mxu0 %v592
        %719 = vmatprep.subr.bf16.mxu0 %v597
        %720 = vmatpush1.bf16.msra.mxu0 %v596
        %721 = vmatprep.subr.bf16.mxu0 %v601
        %722 = vmatpush1.bf16.msra.mxu0 %v600
        %723 = vmatprep.subr.bf16.mxu0 0
        %724 = vmatpush1.bf16.msra.mxu0 0
        %725 = vmatprep.subr.bf16.mxu0 0
        %726 = vmatpush1.bf16.msra.mxu0 0
        %727 = vmatprep.subr.bf16.mxu0 0
        %728 = vmatpush1.bf16.msra.mxu0 0
        %729 = vmatprep.subr.bf16.mxu0 0
        %730 = vmatpush1.bf16.msra.mxu0 0
        %731 = vmatprep.subr.bf16.mxu0 0
        %732 = vmatpush1.bf16.msra.mxu0 0
        %733 = vmatprep.subr.bf16.mxu0 0
        %734 = vmatpush1.bf16.msra.mxu0 0
        %735 = vmatprep.subr.bf16.mxu0 0
        %736 = vmatpush1.bf16.msra.mxu0 0
        %737 = vmatprep.subr.bf16.mxu0 0
        %738 = vmatpush1.bf16.msra.mxu0 0
        %739 = vmatprep.mubr.bf16.mxu0 0
        %740 = vmatmul.mubr.bf16.gmra.mrb[0].mxu0 %v416
        %v741 = vpop.f32.mrb[0].mxu0
        %v742 = vadd.f32 %v465, %v741
        %v743 = vpop.f32.mrb[0].mxu0
        %v744 = vadd.f32 %v469, %v743
        %v745 = vpop.f32.mrb[0].mxu0
        %v746 = vadd.f32 %v465, %v745
        %v747 = vpop.f32.mrb[0].mxu0
        %v748 = vadd.f32 %v469, %v747
        %749 = vmatprep.mubr.bf16.mxu0 0
        %750 = vmatmul.mubr.bf16.gmra.mrb[0].mxu0 %v417
        %v751 = vpop.f32.mrb[0].mxu0
        %v752 = vadd.f32 %v465, %v751
        %v753 = vpop.f32.mrb[0].mxu0
        %v754 = vadd.f32 %v469, %v753
        %v755 = vpop.f32.mrb[0].mxu0
        %v756 = vadd.f32 %v465, %v755
        %v757 = vpop.f32.mrb[0].mxu0
        %v758 = vadd.f32 %v469, %v757
        %759 = vmatprep.mubr.bf16.mxu0 0
        %760 = vmatmul.mubr.bf16.gmra.mrb[0].mxu0 %v418
        %v761 = vpop.f32.mrb[0].mxu0
        %v762 = vadd.f32 %v465, %v761
        %v763 = vpop.f32.mrb[0].mxu0
        %v764 = vadd.f32 %v469, %v763
        %v765 = vpop.f32.mrb[0].mxu0
        %v766 = vadd.f32 %v465, %v765
        %v767 = vpop.f32.mrb[0].mxu0
        %v768 = vadd.f32 %v469, %v767
        %769 = vmatprep.mubr.bf16.mxu0 0
        %770 = vmatmul.mubr.bf16.gmra.mrb[0].mxu0 %v419
        %v771 = vpop.f32.mrb[0].mxu0
        %v772 = vadd.f32 %v465, %v771
        %v773 = vpop.f32.mrb[0].mxu0
        %v774 = vadd.f32 %v469, %v773
        %v775 = vpop.f32.mrb[0].mxu0
        %v776 = vadd.f32 %v465, %v775
        %v777 = vpop.f32.mrb[0].mxu0
        %v778 = vadd.f32 %v469, %v777
        %779 = vdwg.mxu0
        %780 = vst [vmem:[#allocation4] sm:$0xff] %v669
        %781 = vst [vmem:[#allocation4 + $0x8] sm:$0xff] %v671
        %782 = vst [vmem:[#allocation4 + $0x10] sm:$0xff] %v742
        %783 = vst [vmem:[#allocation4 + $0x18] sm:$0xff] %v744
        %784 = vst [vmem:[#allocation4 + $0x20] sm:$0xff] %v673
        %785 = vst [vmem:[#allocation4 + $0x28] sm:$0xff] %v675
        %786 = vst [vmem:[#allocation4 + $0x30] sm:$0xff] %v746
        %787 = vst [vmem:[#allocation4 + $0x38] sm:$0xff] %v748
        %788 = vst [vmem:[#allocation4 + $0x40] sm:$0xff] %v679
        %789 = vst [vmem:[#allocation4 + $0x48] sm:$0xff] %v681
        %790 = vst [vmem:[#allocation4 + $0x50] sm:$0xff] %v752
        %791 = vst [vmem:[#allocation4 + $0x58] sm:$0xff] %v754
        %792 = vst [vmem:[#allocation4 + $0x60] sm:$0xff] %v683
        %793 = vst [vmem:[#allocation4 + $0x68] sm:$0xff] %v685
        %794 = vst [vmem:[#allocation4 + $0x70] sm:$0xff] %v756
        %795 = vst [vmem:[#allocation4 + $0x78] sm:$0xff] %v758
        %796 = vst [vmem:[#allocation4 + $0x80] sm:$0xff] %v689
        %797 = vst [vmem:[#allocation4 + $0x88] sm:$0xff] %v691
        %798 = vst [vmem:[#allocation4 + $0x90] sm:$0xff] %v762
        %799 = vst [vmem:[#allocation4 + $0x98] sm:$0xff] %v764
        %800 = vst [vmem:[#allocation4 + $0xa0] sm:$0xff] %v693
        %801 = vst [vmem:[#allocation4 + $0xa8] sm:$0xff] %v695
        %802 = vst [vmem:[#allocation4 + $0xb0] sm:$0xff] %v766
        %803 = vst [vmem:[#allocation4 + $0xb8] sm:$0xff] %v768
        %804 = vst [vmem:[#allocation4 + $0xc0] sm:$0xff] %v699
        %805 = vst [vmem:[#allocation4 + $0xc8] sm:$0xff] %v701
        %806 = vst [vmem:[#allocation4 + $0xd0] sm:$0xff] %v772
        %807 = vst [vmem:[#allocation4 + $0xd8] sm:$0xff] %v774
        %808 = vst [vmem:[#allocation4 + $0xe0] sm:$0xff] %v703
        %809 = vst [vmem:[#allocation4 + $0xe8] sm:$0xff] %v705
        %810 = vst [vmem:[#allocation4 + $0xf0] sm:$0xff] %v776
        %811 = vst [vmem:[#allocation4 + $0xf8] sm:$0xff] %v778
        %v812 = vld [vmem:[#allocation9] sm:$0xff]
        %v813 = vld [vmem:[#allocation9 + $0x8] sm:$0xff]
        %v814 = vld [vmem:[#allocation9 + $0x10] sm:$0xff]
        %v815 = vld [vmem:[#allocation9 + $0x18] sm:$0xff]
        %v816 = vld [vmem:[#allocation9 + $0x20] sm:$0xff]
        %v817 = vld [vmem:[#allocation9 + $0x28] sm:$0xff]
        %v818 = vld [vmem:[#allocation9 + $0x30] sm:$0xff]
        %v819 = vld [vmem:[#allocation9 + $0x38] sm:$0xff]
        %v820 = vld [vmem:[#allocation9 + $0x40] sm:$0xff]
        %v821 = vld [vmem:[#allocation9 + $0x48] sm:$0xff]
        %v822 = vld [vmem:[#allocation9 + $0x50] sm:$0xff]
        %v823 = vld [vmem:[#allocation9 + $0x58] sm:$0xff]
        %v824 = vld [vmem:[#allocation9 + $0x60] sm:$0xff]
        %v825 = vld [vmem:[#allocation9 + $0x68] sm:$0xff]
        %v826 = vld [vmem:[#allocation9 + $0x70] sm:$0xff]
        %v827 = vld [vmem:[#allocation9 + $0x78] sm:$0xff]
        %v828 = vld [vmem:[#allocation9 + $0x80] sm:$0xff]
        %v829 = vld [vmem:[#allocation9 + $0x88] sm:$0xff]
        %v830 = vld [vmem:[#allocation9 + $0x90] sm:$0xff]
        %v831 = vld [vmem:[#allocation9 + $0x98] sm:$0xff]
        %v832 = vld [vmem:[#allocation9 + $0xa0] sm:$0xff]
        %v833 = vld [vmem:[#allocation9 + $0xa8] sm:$0xff]
        %v834 = vld [vmem:[#allocation9 + $0xb0] sm:$0xff]
        %v835 = vld [vmem:[#allocation9 + $0xb8] sm:$0xff]
        %v836 = vld [vmem:[#allocation9 + $0xc0] sm:$0xff]
        %v837 = vld [vmem:[#allocation9 + $0xc8] sm:$0xff]
        %v838 = vld [vmem:[#allocation9 + $0xd0] sm:$0xff]
        %v839 = vld [vmem:[#allocation9 + $0xd8] sm:$0xff]
        %v840 = vld [vmem:[#allocation9 + $0xe0] sm:$0xff]
        %v841 = vld [vmem:[#allocation9 + $0xe8] sm:$0xff]
        %v842 = vld [vmem:[#allocation9 + $0xf0] sm:$0xff]
        %v843 = vld [vmem:[#allocation9 + $0xf8] sm:$0xff]
        %v844 = vld [vmem:[#allocation2] sm:$0xff]
        %v845 = vld [vmem:[#allocation3] sm:$0xff]
        %v846 = vld [vmem:[#allocation4] sm:$0xff]
        %v847 = vld [vmem:[#allocation4 + $0x8] sm:$0xff]
        %v848 = vld [vmem:[#allocation4 + $0x10] sm:$0xff]
        %v849 = vld [vmem:[#allocation4 + $0x18] sm:$0xff]
        %v850 = vpack.c.bf16 %v844, %v844
        %v883 = vunpack.c.l.b16 %v812
        %v884 = vunpack.c.h.b16 %v812
        %v885 = vunpack.c.l.b16 %v813
        %v886 = vunpack.c.h.b16 %v813
        %v887 = vunpack.c.l.b16 %v814
        %v888 = vunpack.c.h.b16 %v814
        %v889 = vunpack.c.l.b16 %v815
        %v890 = vunpack.c.h.b16 %v815
        %v891 = vunpack.c.l.b16 %v816
        %v892 = vunpack.c.h.b16 %v816
        %v893 = vunpack.c.l.b16 %v817
        %v894 = vunpack.c.h.b16 %v817
        %v895 = vunpack.c.l.b16 %v818
        %v896 = vunpack.c.h.b16 %v818
        %v897 = vunpack.c.l.b16 %v819
        %v898 = vunpack.c.h.b16 %v819
        %v899 = vunpack.c.l.b16 %v820
        %v900 = vunpack.c.h.b16 %v820
        %v901 = vunpack.c.l.b16 %v821
        %v902 = vunpack.c.h.b16 %v821
        %v903 = vunpack.c.l.b16 %v822
        %v904 = vunpack.c.h.b16 %v822
        %v905 = vunpack.c.l.b16 %v823
        %v906 = vunpack.c.h.b16 %v823
        %v907 = vunpack.c.l.b16 %v824
        %v908 = vunpack.c.h.b16 %v824
        %v909 = vunpack.c.l.b16 %v825
        %v910 = vunpack.c.h.b16 %v825
        %v911 = vunpack.c.l.b16 %v826
        %v912 = vunpack.c.h.b16 %v826
        %v913 = vunpack.c.l.b16 %v827
        %v914 = vunpack.c.h.b16 %v827
        %v915 = vunpack.c.l.b16 %v828
        %v916 = vunpack.c.h.b16 %v828
        %v917 = vunpack.c.l.b16 %v829
        %v918 = vunpack.c.h.b16 %v829
        %v919 = vunpack.c.l.b16 %v830
        %v920 = vunpack.c.h.b16 %v830
        %v921 = vunpack.c.l.b16 %v831
        %v922 = vunpack.c.h.b16 %v831
        %v923 = vunpack.c.l.b16 %v832
        %v924 = vunpack.c.h.b16 %v832
        %v925 = vunpack.c.l.b16 %v833
        %v926 = vunpack.c.h.b16 %v833
        %v927 = vunpack.c.l.b16 %v834
        %v928 = vunpack.c.h.b16 %v834
        %v929 = vunpack.c.l.b16 %v835
        %v930 = vunpack.c.h.b16 %v835
        %v931 = vunpack.c.l.b16 %v836
        %v932 = vunpack.c.h.b16 %v836
        %v933 = vunpack.c.l.b16 %v837
        %v934 = vunpack.c.h.b16 %v837
        %v935 = vunpack.c.l.b16 %v838
        %v936 = vunpack.c.h.b16 %v838
        %v937 = vunpack.c.l.b16 %v839
        %v938 = vunpack.c.h.b16 %v839
        %v939 = vunpack.c.l.b16 %v840
        %v940 = vunpack.c.h.b16 %v840
        %v941 = vunpack.c.l.b16 %v841
        %v942 = vunpack.c.h.b16 %v841
        %v943 = vunpack.c.l.b16 %v842
        %v944 = vunpack.c.h.b16 %v842
        %v945 = vunpack.c.l.b16 %v843
        %v946 = vunpack.c.h.b16 %v843
        %v947 = vpack.c.b16 %v887, %v883
        %v948 = vpack.c.b16 %v888, %v884
        %v949 = vpack.c.b16 %v889, %v885
        %v950 = vpack.c.b16 %v890, %v886
        %v951 = vpack.c.b16 %v895, %v891
        %v952 = vpack.c.b16 %v896, %v892
        %v953 = vpack.c.b16 %v897, %v893
        %v954 = vpack.c.b16 %v898, %v894
        %v955 = vpack.c.b16 %v903, %v899
        %v956 = vpack.c.b16 %v904, %v900
        %v957 = vpack.c.b16 %v905, %v901
        %v958 = vpack.c.b16 %v906, %v902
        %v959 = vpack.c.b16 %v911, %v907
        %v960 = vpack.c.b16 %v912, %v908
        %v961 = vpack.c.b16 %v913, %v909
        %v962 = vpack.c.b16 %v914, %v910
        %v963 = vpack.c.b16 %v919, %v915
        %v964 = vpack.c.b16 %v920, %v916
        %v965 = vpack.c.b16 %v921, %v917
        %v966 = vpack.c.b16 %v922, %v918
        %v967 = vpack.c.b16 %v927, %v923
        %v968 = vpack.c.b16 %v928, %v924
        %v969 = vpack.c.b16 %v929, %v925
        %v970 = vpack.c.b16 %v930, %v926
        %v971 = vpack.c.b16 %v935, %v931
        %v972 = vpack.c.b16 %v936, %v932
        %v973 = vpack.c.b16 %v937, %v933
        %v974 = vpack.c.b16 %v938, %v934
        %v975 = vpack.c.b16 %v943, %v939
        %v976 = vpack.c.b16 %v944, %v940
        %v977 = vpack.c.b16 %v945, %v941
        %v978 = vpack.c.b16 %v946, %v942
        %1011 = vmatprep.subr.bf16.mxu0 %v948
        %1012 = vmatpush1.bf16.msra.mxu0 %v947
        %1013 = vmatprep.subr.bf16.mxu0 %v952
        %1014 = vmatpush1.bf16.msra.mxu0 %v951
        %1015 = vmatprep.subr.bf16.mxu0 %v956
        %1016 = vmatpush1.bf16.msra.mxu0 %v955
        %1017 = vmatprep.subr.bf16.mxu0 %v960
        %1018 = vmatpush1.bf16.msra.mxu0 %v959
        %1019 = vmatprep.subr.bf16.mxu0 %v964
        %1020 = vmatpush1.bf16.msra.mxu0 %v963
        %1021 = vmatprep.subr.bf16.mxu0 %v968
        %1022 = vmatpush1.bf16.msra.mxu0 %v967
        %1023 = vmatprep.subr.bf16.mxu0 %v972
        %1024 = vmatpush1.bf16.msra.mxu0 %v971
        %1025 = vmatprep.subr.bf16.mxu0 %v976
        %1026 = vmatpush1.bf16.msra.mxu0 %v975
        %1027 = vmatprep.subr.bf16.mxu0 0
        %1028 = vmatpush1.bf16.msra.mxu0 0
        %1029 = vmatprep.subr.bf16.mxu0 0
        %1030 = vmatpush1.bf16.msra.mxu0 0
        %1031 = vmatprep.subr.bf16.mxu0 0
        %1032 = vmatpush1.bf16.msra.mxu0 0
        %1033 = vmatprep.subr.bf16.mxu0 0
        %1034 = vmatpush1.bf16.msra.mxu0 0
        %1035 = vmatprep.subr.bf16.mxu0 0
        %1036 = vmatpush1.bf16.msra.mxu0 0
        %1037 = vmatprep.subr.bf16.mxu0 0
        %1038 = vmatpush1.bf16.msra.mxu0 0
        %1039 = vmatprep.subr.bf16.mxu0 0
        %1040 = vmatpush1.bf16.msra.mxu0 0
        %1041 = vmatprep.subr.bf16.mxu0 0
        %1042 = vmatpush1.bf16.msra.mxu0 0
        %1043 = vmatprep.mubr.bf16.mxu0 0
        %1044 = vmatmul.mubr.bf16.gmra.mrb[0].mxu0 %v850
        %v1045 = vpop.f32.mrb[0].mxu0
        %v1046 = vadd.f32 0.0, %v1045
        %v1047 = vpop.f32.mrb[0].mxu0
        %v1048 = vadd.f32 0.0, %v1047
        %v1049 = vpop.f32.mrb[0].mxu0
        %v1050 = vpop.f32.mrb[0].mxu0
        %1051 = vdwg.mxu0
        %1052 = vmatprep.subr.bf16.mxu0 %v950
        %1053 = vmatpush1.bf16.msra.mxu0 %v949
        %1054 = vmatprep.subr.bf16.mxu0 %v954
        %1055 = vmatpush1.bf16.msra.mxu0 %v953
        %1056 = vmatprep.subr.bf16.mxu0 %v958
        %1057 = vmatpush1.bf16.msra.mxu0 %v957
        %1058 = vmatprep.subr.bf16.mxu0 %v962
        %1059 = vmatpush1.bf16.msra.mxu0 %v961
        %1060 = vmatprep.subr.bf16.mxu0 %v966
        %1061 = vmatpush1.bf16.msra.mxu0 %v965
        %1062 = vmatprep.subr.bf16.mxu0 %v970
        %1063 = vmatpush1.bf16.msra.mxu0 %v969
        %1064 = vmatprep.subr.bf16.mxu0 %v974
        %1065 = vmatpush1.bf16.msra.mxu0 %v973
        %1066 = vmatprep.subr.bf16.mxu0 %v978
        %1067 = vmatpush1.bf16.msra.mxu0 %v977
        %1068 = vmatprep.subr.bf16.mxu0 0
        %1069 = vmatpush1.bf16.msra.mxu0 0
        %1070 = vmatprep.subr.bf16.mxu0 0
        %1071 = vmatpush1.bf16.msra.mxu0 0
        %1072 = vmatprep.subr.bf16.mxu0 0
        %1073 = vmatpush1.bf16.msra.mxu0 0
        %1074 = vmatprep.subr.bf16.mxu0 0
        %1075 = vmatpush1.bf16.msra.mxu0 0
        %1076 = vmatprep.subr.bf16.mxu0 0
        %1077 = vmatpush1.bf16.msra.mxu0 0
        %1078 = vmatprep.subr.bf16.mxu0 0
        %1079 = vmatpush1.bf16.msra.mxu0 0
        %1080 = vmatprep.subr.bf16.mxu0 0
        %1081 = vmatpush1.bf16.msra.mxu0 0
        %1082 = vmatprep.subr.bf16.mxu0 0
        %1083 = vmatpush1.bf16.msra.mxu0 0
        %1084 = vmatprep.mubr.bf16.mxu0 0
        %1085 = vmatmul.mubr.bf16.gmra.mrb[0].mxu0 %v850
        %v1086 = vpop.f32.mrb[0].mxu0
        %v1087 = vadd.f32 0.0, %v1086
        %v1088 = vpop.f32.mrb[0].mxu0
        %v1089 = vadd.f32 0.0, %v1088
        %v1090 = vpop.f32.mrb[0].mxu0
        %v1091 = vpop.f32.mrb[0].mxu0
        %1092 = vdwg.mxu0
        %v1093 = vadd.f32 %v846, %v1046
        %v1094 = vadd.f32 %v847, %v1048
        %v1095 = vadd.f32 %v848, %v1087
        %v1096 = vadd.f32 %v849, %v1089
        %v1097 = vxor.u32 %v1093, 2147483648
        %v1098 = vxor.u32 %v1094, 2147483648
        %v1099 = vxor.u32 %v1095, 2147483648
        %v1100 = vmul.f32 %v1097, 1.442695
        %v1101 = vpow.pop %v1100
        %v1102 = vmul.f32 %v1098, 1.442695
        %v1103 = vpow.pop %v1102
        %v1104 = vmul.f32 %v1099, 1.442695
        %v1105 = vpow.pop %v1104
        %v1106 = vadd.f32 %v1101, 1.0
        %v1107 = vadd.f32 %v1103, 1.0
        %v1108 = vadd.f32 %v1105, 1.0
        %v1109 = vrcp.pop %v1106
        %v1110 = vmul.f32 1.0, %v1109
        %v1111 = vrcp.pop %v1107
        %v1112 = vmul.f32 1.0, %v1111
        %v1113 = vrcp.pop %v1108
        %v1114 = vmul.f32 1.0, %v1113
        %v1115 = vtanh.pop %v1096
        %v1116 = vmul.f32 %v1112, %v845
        %v1117 = vmul.f32 %v1110, %v1115
        %v1118 = vadd.f32 %v1116, %v1117
        %v1119 = vtanh.pop %v1118
        %v1120 = vmul.f32 %v1114, %v1119
        %1121 = vst [vmem:[#allocation5] sm:$0xff] %v1120
        %v1122 = vld [vmem:[#allocation4 + $0x20] sm:$0xff]
        %v1123 = vld [vmem:[#allocation4 + $0x28] sm:$0xff]
        %v1124 = vld [vmem:[#allocation4 + $0x30] sm:$0xff]
        %v1125 = vld [vmem:[#allocation4 + $0x38] sm:$0xff]
        %v1126 = vpack.c.bf16 %v1120, %v1120
        %1127 = vmatprep.subr.bf16.mxu0 %v948
        %1128 = vmatpush1.bf16.msra.mxu0 %v947
        %1129 = vmatprep.subr.bf16.mxu0 %v952
        %1130 = vmatpush1.bf16.msra.mxu0 %v951
        %1131 = vmatprep.subr.bf16.mxu0 %v956
        %1132 = vmatpush1.bf16.msra.mxu0 %v955
        %1133 = vmatprep.subr.bf16.mxu0 %v960
        %1134 = vmatpush1.bf16.msra.mxu0 %v959
        %1135 = vmatprep.subr.bf16.mxu0 %v964
        %1136 = vmatpush1.bf16.msra.mxu0 %v963
        %1137 = vmatprep.subr.bf16.mxu0 %v968
        %1138 = vmatpush1.bf16.msra.mxu0 %v967
        %1139 = vmatprep.subr.bf16.mxu0 %v972
        %1140 = vmatpush1.bf16.msra.mxu0 %v971
        %1141 = vmatprep.subr.bf16.mxu0 %v976
        %1142 = vmatpush1.bf16.msra.mxu0 %v975
        %1143 = vmatprep.subr.bf16.mxu0 0
        %1144 = vmatpush1.bf16.msra.mxu0 0
        %1145 = vmatprep.subr.bf16.mxu0 0
        %1146 = vmatpush1.bf16.msra.mxu0 0
        %1147 = vmatprep.subr.bf16.mxu0 0
        %1148 = vmatpush1.bf16.msra.mxu0 0
        %1149 = vmatprep.subr.bf16.mxu0 0
        %1150 = vmatpush1.bf16.msra.mxu0 0
        %1151 = vmatprep.subr.bf16.mxu0 0
        %1152 = vmatpush1.bf16.msra.mxu0 0
        %1153 = vmatprep.subr.bf16.mxu0 0
        %1154 = vmatpush1.bf16.msra.mxu0 0
        %1155 = vmatprep.subr.bf16.mxu0 0
        %1156 = vmatpush1.bf16.msra.mxu0 0
        %1157 = vmatprep.subr.bf16.mxu0 0
        %1158 = vmatpush1.bf16.msra.mxu0 0
        %1159 = vmatprep.mubr.bf16.mxu0 0
        %1160 = vmatmul.mubr.bf16.gmra.mrb[0].mxu0 %v1126
        %v1161 = vpop.f32.mrb[0].mxu0
        %v1162 = vadd.f32 0.0, %v1161
        %v1163 = vpop.f32.mrb[0].mxu0
        %v1164 = vadd.f32 0.0, %v1163
        %v1165 = vpop.f32.mrb[0].mxu0
        %v1166 = vpop.f32.mrb[0].mxu0
        %1167 = vdwg.mxu0
        %1168 = vmatprep.subr.bf16.mxu0 %v950
        %1169 = vmatpush1.bf16.msra.mxu0 %v949
        %1170 = vmatprep.subr.bf16.mxu0 %v954
        %1171 = vmatpush1.bf16.msra.mxu0 %v953
        %1172 = vmatprep.subr.bf16.mxu0 %v958
        %1173 = vmatpush1.bf16.msra.mxu0 %v957
        %1174 = vmatprep.subr.bf16.mxu0 %v962
        %1175 = vmatpush1.bf16.msra.mxu0 %v961
        %1176 = vmatprep.subr.bf16.mxu0 %v966
        %1177 = vmatpush1.bf16.msra.mxu0 %v965
        %1178 = vmatprep.subr.bf16.mxu0 %v970
        %1179 = vmatpush1.bf16.msra.mxu0 %v969
        %1180 = vmatprep.subr.bf16.mxu0 %v974
        %1181 = vmatpush1.bf16.msra.mxu0 %v973
        %1182 = vmatprep.subr.bf16.mxu0 %v978
        %1183 = vmatpush1.bf16.msra.mxu0 %v977
        %1184 = vmatprep.subr.bf16.mxu0 0
        %1185 = vmatpush1.bf16.msra.mxu0 0
        %1186 = vmatprep.subr.bf16.mxu0 0
        %1187 = vmatpush1.bf16.msra.mxu0 0
        %1188 = vmatprep.subr.bf16.mxu0 0
        %1189 = vmatpush1.bf16.msra.mxu0 0
        %1190 = vmatprep.subr.bf16.mxu0 0
        %1191 = vmatpush1.bf16.msra.mxu0 0
        %1192 = vmatprep.subr.bf16.mxu0 0
        %1193 = vmatpush1.bf16.msra.mxu0 0
        %1194 = vmatprep.subr.bf16.mxu0 0
        %1195 = vmatpush1.bf16.msra.mxu0 0
        %1196 = vmatprep.subr.bf16.mxu0 0
        %1197 = vmatpush1.bf16.msra.mxu0 0
        %1198 = vmatprep.subr.bf16.mxu0 0
        %1199 = vmatpush1.bf16.msra.mxu0 0
        %1200 = vmatprep.mubr.bf16.mxu0 0
        %1201 = vmatmul.mubr.bf16.gmra.mrb[0].mxu0 %v1126
        %v1202 = vpop.f32.mrb[0].mxu0
        %v1203 = vadd.f32 0.0, %v1202
        %v1204 = vpop.f32.mrb[0].mxu0
        %v1205 = vadd.f32 0.0, %v1204
        %v1206 = vpop.f32.mrb[0].mxu0
        %v1207 = vpop.f32.mrb[0].mxu0
        %1208 = vdwg.mxu0
        %v1209 = vadd.f32 %v1122, %v1162
        %v1210 = vadd.f32 %v1123, %v1164
        %v1211 = vadd.f32 %v1124, %v1203
        %v1212 = vadd.f32 %v1125, %v1205
        %v1213 = vxor.u32 %v1209, 2147483648
        %v1214 = vxor.u32 %v1210, 2147483648
        %v1215 = vxor.u32 %v1211, 2147483648
        %v1216 = vmul.f32 %v1213, 1.442695
        %v1217 = vpow.pop %v1216
        %v1218 = vmul.f32 %v1214, 1.442695
        %v1219 = vpow.pop %v1218
        %v1220 = vmul.f32 %v1215, 1.442695
        %v1221 = vpow.pop %v1220
        %v1222 = vadd.f32 %v1217, 1.0
        %v1223 = vadd.f32 %v1219, 1.0
        %v1224 = vadd.f32 %v1221, 1.0
        %v1225 = vrcp.pop %v1222
        %v1226 = vmul.f32 1.0, %v1225
        %v1227 = vrcp.pop %v1223
        %v1228 = vmul.f32 1.0, %v1227
        %v1229 = vrcp.pop %v1224
        %v1230 = vmul.f32 1.0, %v1229
        %v1231 = vtanh.pop %v1212
        %v1232 = vmul.f32 %v1228, %v1118
        %v1233 = vmul.f32 %v1226, %v1231
        %v1234 = vadd.f32 %v1232, %v1233
        %v1235 = vtanh.pop %v1234
        %v1236 = vmul.f32 %v1230, %v1235
        %1237 = vst [vmem:[#allocation5 + $0x8] sm:$0xff] %v1236
        %v1238 = vld [vmem:[#allocation4 + $0x40] sm:$0xff]
        %v1239 = vld [vmem:[#allocation4 + $0x48] sm:$0xff]
        %v1240 = vld [vmem:[#allocation4 + $0x50] sm:$0xff]
        %v1241 = vld [vmem:[#allocation4 + $0x58] sm:$0xff]
        %v1242 = vpack.c.bf16 %v1236, %v1236
        %1243 = vmatprep.subr.bf16.mxu0 %v948
        %1244 = vmatpush1.bf16.msra.mxu0 %v947
        %1245 = vmatprep.subr.bf16.mxu0 %v952
        %1246 = vmatpush1.bf16.msra.mxu0 %v951
        %1247 = vmatprep.subr.bf16.mxu0 %v956
        %1248 = vmatpush1.bf16.msra.mxu0 %v955
        %1249 = vmatprep.subr.bf16.mxu0 %v960
        %1250 = vmatpush1.bf16.msra.mxu0 %v959
        %1251 = vmatprep.subr.bf16.mxu0 %v964
        %1252 = vmatpush1.bf16.msra.mxu0 %v963
        %1253 = vmatprep.subr.bf16.mxu0 %v968
        %1254 = vmatpush1.bf16.msra.mxu0 %v967
        %1255 = vmatprep.subr.bf16.mxu0 %v972
        %1256 = vmatpush1.bf16.msra.mxu0 %v971
        %1257 = vmatprep.subr.bf16.mxu0 %v976
        %1258 = vmatpush1.bf16.msra.mxu0 %v975
        %1259 = vmatprep.subr.bf16.mxu0 0
        %1260 = vmatpush1.bf16.msra.mxu0 0
        %1261 = vmatprep.subr.bf16.mxu0 0
        %1262 = vmatpush1.bf16.msra.mxu0 0
        %1263 = vmatprep.subr.bf16.mxu0 0
        %1264 = vmatpush1.bf16.msra.mxu0 0
        %1265 = vmatprep.subr.bf16.mxu0 0
        %1266 = vmatpush1.bf16.msra.mxu0 0
        %1267 = vmatprep.subr.bf16.mxu0 0
        %1268 = vmatpush1.bf16.msra.mxu0 0
        %1269 = vmatprep.subr.bf16.mxu0 0
        %1270 = vmatpush1.bf16.msra.mxu0 0
        %1271 = vmatprep.subr.bf16.mxu0 0
        %1272 = vmatpush1.bf16.msra.mxu0 0
        %1273 = vmatprep.subr.bf16.mxu0 0
        %1274 = vmatpush1.bf16.msra.mxu0 0
        %1275 = vmatprep.mubr.bf16.mxu0 0
        %1276 = vmatmul.mubr.bf16.gmra.mrb[0].mxu0 %v1242
        %v1277 = vpop.f32.mrb[0].mxu0
        %v1278 = vadd.f32 0.0, %v1277
        %v1279 = vpop.f32.mrb[0].mxu0
        %v1280 = vadd.f32 0.0, %v1279
        %v1281 = vpop.f32.mrb[0].mxu0
        %v1282 = vpop.f32.mrb[0].mxu0
        %1283 = vdwg.mxu0
        %1284 = vmatprep.subr.bf16.mxu0 %v950
        %1285 = vmatpush1.bf16.msra.mxu0 %v949
        %1286 = vmatprep.subr.bf16.mxu0 %v954
        %1287 = vmatpush1.bf16.msra.mxu0 %v953
        %1288 = vmatprep.subr.bf16.mxu0 %v958
        %1289 = vmatpush1.bf16.msra.mxu0 %v957
        %1290 = vmatprep.subr.bf16.mxu0 %v962
        %1291 = vmatpush1.bf16.msra.mxu0 %v961
        %1292 = vmatprep.subr.bf16.mxu0 %v966
        %1293 = vmatpush1.bf16.msra.mxu0 %v965
        %1294 = vmatprep.subr.bf16.mxu0 %v970
        %1295 = vmatpush1.bf16.msra.mxu0 %v969
        %1296 = vmatprep.subr.bf16.mxu0 %v974
        %1297 = vmatpush1.bf16.msra.mxu0 %v973
        %1298 = vmatprep.subr.bf16.mxu0 %v978
        %1299 = vmatpush1.bf16.msra.mxu0 %v977
        %1300 = vmatprep.subr.bf16.mxu0 0
        %1301 = vmatpush1.bf16.msra.mxu0 0
        %1302 = vmatprep.subr.bf16.mxu0 0
        %1303 = vmatpush1.bf16.msra.mxu0 0
        %1304 = vmatprep.subr.bf16.mxu0 0
        %1305 = vmatpush1.bf16.msra.mxu0 0
        %1306 = vmatprep.subr.bf16.mxu0 0
        %1307 = vmatpush1.bf16.msra.mxu0 0
        %1308 = vmatprep.subr.bf16.mxu0 0
        %1309 = vmatpush1.bf16.msra.mxu0 0
        %1310 = vmatprep.subr.bf16.mxu0 0
        %1311 = vmatpush1.bf16.msra.mxu0 0
        %1312 = vmatprep.subr.bf16.mxu0 0
        %1313 = vmatpush1.bf16.msra.mxu0 0
        %1314 = vmatprep.subr.bf16.mxu0 0
        %1315 = vmatpush1.bf16.msra.mxu0 0
        %1316 = vmatprep.mubr.bf16.mxu0 0
        %1317 = vmatmul.mubr.bf16.gmra.mrb[0].mxu0 %v1242
        %v1318 = vpop.f32.mrb[0].mxu0
        %v1319 = vadd.f32 0.0, %v1318
        %v1320 = vpop.f32.mrb[0].mxu0
        %v1321 = vadd.f32 0.0, %v1320
        %v1322 = vpop.f32.mrb[0].mxu0
        %v1323 = vpop.f32.mrb[0].mxu0
        %1324 = vdwg.mxu0
        %v1325 = vadd.f32 %v1238, %v1278
        %v1326 = vadd.f32 %v1239, %v1280
        %v1327 = vadd.f32 %v1240, %v1319
        %v1328 = vadd.f32 %v1241, %v1321
        %v1329 = vxor.u32 %v1325, 2147483648
        %v1330 = vxor.u32 %v1326, 2147483648
        %v1331 = vxor.u32 %v1327, 2147483648
        %v1332 = vmul.f32 %v1329, 1.442695
        %v1333 = vpow.pop %v1332
        %v1334 = vmul.f32 %v1330, 1.442695
        %v1335 = vpow.pop %v1334
        %v1336 = vmul.f32 %v1331, 1.442695
        %v1337 = vpow.pop %v1336
        %v1338 = vadd.f32 %v1333, 1.0
        %v1339 = vadd.f32 %v1335, 1.0
        %v1340 = vadd.f32 %v1337, 1.0
        %v1341 = vrcp.pop %v1338
        %v1342 = vmul.f32 1.0, %v1341
        %v1343 = vrcp.pop %v1339
        %v1344 = vmul.f32 1.0, %v1343
        %v1345 = vrcp.pop %v1340
        %v1346 = vmul.f32 1.0, %v1345
        %v1347 = vtanh.pop %v1328
        %v1348 = vmul.f32 %v1344, %v1234
        %v1349 = vmul.f32 %v1342, %v1347
        %v1350 = vadd.f32 %v1348, %v1349
        %v1351 = vtanh.pop %v1350
        %v1352 = vmul.f32 %v1346, %v1351
        %1353 = vst [vmem:[#allocation5 + $0x10] sm:$0xff] %v1352
        %v1354 = vld [vmem:[#allocation4 + $0x60] sm:$0xff]
        %v1355 = vld [vmem:[#allocation4 + $0x68] sm:$0xff]
        %v1356 = vld [vmem:[#allocation4 + $0x70] sm:$0xff]
        %v1357 = vld [vmem:[#allocation4 + $0x78] sm:$0xff]
        %v1358 = vpack.c.bf16 %v1352, %v1352
        %1359 = vmatprep.subr.bf16.mxu0 %v948
        %1360 = vmatpush1.bf16.msra.mxu0 %v947
        %1361 = vmatprep.subr.bf16.mxu0 %v952
        %1362 = vmatpush1.bf16.msra.mxu0 %v951
        %1363 = vmatprep.subr.bf16.mxu0 %v956
        %1364 = vmatpush1.bf16.msra.mxu0 %v955
        %1365 = vmatprep.subr.bf16.mxu0 %v960
        %1366 = vmatpush1.bf16.msra.mxu0 %v959
        %1367 = vmatprep.subr.bf16.mxu0 %v964
        %1368 = vmatpush1.bf16.msra.mxu0 %v963
        %1369 = vmatprep.subr.bf16.mxu0 %v968
        %1370 = vmatpush1.bf16.msra.mxu0 %v967
        %1371 = vmatprep.subr.bf16.mxu0 %v972
        %1372 = vmatpush1.bf16.msra.mxu0 %v971
        %1373 = vmatprep.subr.bf16.mxu0 %v976
        %1374 = vmatpush1.bf16.msra.mxu0 %v975
        %1375 = vmatprep.subr.bf16.mxu0 0
        %1376 = vmatpush1.bf16.msra.mxu0 0
        %1377 = vmatprep.subr.bf16.mxu0 0
        %1378 = vmatpush1.bf16.msra.mxu0 0
        %1379 = vmatprep.subr.bf16.mxu0 0
        %1380 = vmatpush1.bf16.msra.mxu0 0
        %1381 = vmatprep.subr.bf16.mxu0 0
        %1382 = vmatpush1.bf16.msra.mxu0 0
        %1383 = vmatprep.subr.bf16.mxu0 0
        %1384 = vmatpush1.bf16.msra.mxu0 0
        %1385 = vmatprep.subr.bf16.mxu0 0
        %1386 = vmatpush1.bf16.msra.mxu0 0
        %1387 = vmatprep.subr.bf16.mxu0 0
        %1388 = vmatpush1.bf16.msra.mxu0 0
        %1389 = vmatprep.subr.bf16.mxu0 0
        %1390 = vmatpush1.bf16.msra.mxu0 0
        %1391 = vmatprep.mubr.bf16.mxu0 0
        %1392 = vmatmul.mubr.bf16.gmra.mrb[0].mxu0 %v1358
        %v1393 = vpop.f32.mrb[0].mxu0
        %v1394 = vadd.f32 0.0, %v1393
        %v1395 = vpop.f32.mrb[0].mxu0
        %v1396 = vadd.f32 0.0, %v1395
        %v1397 = vpop.f32.mrb[0].mxu0
        %v1398 = vpop.f32.mrb[0].mxu0
        %1399 = vdwg.mxu0
        %1400 = vmatprep.subr.bf16.mxu0 %v950
        %1401 = vmatpush1.bf16.msra.mxu0 %v949
        %1402 = vmatprep.subr.bf16.mxu0 %v954
        %1403 = vmatpush1.bf16.msra.mxu0 %v953
        %1404 = vmatprep.subr.bf16.mxu0 %v958
        %1405 = vmatpush1.bf16.msra.mxu0 %v957
        %1406 = vmatprep.subr.bf16.mxu0 %v962
        %1407 = vmatpush1.bf16.msra.mxu0 %v961
        %1408 = vmatprep.subr.bf16.mxu0 %v966
        %1409 = vmatpush1.bf16.msra.mxu0 %v965
        %1410 = vmatprep.subr.bf16.mxu0 %v970
        %1411 = vmatpush1.bf16.msra.mxu0 %v969
        %1412 = vmatprep.subr.bf16.mxu0 %v974
        %1413 = vmatpush1.bf16.msra.mxu0 %v973
        %1414 = vmatprep.subr.bf16.mxu0 %v978
        %1415 = vmatpush1.bf16.msra.mxu0 %v977
        %1416 = vmatprep.subr.bf16.mxu0 0
        %1417 = vmatpush1.bf16.msra.mxu0 0
        %1418 = vmatprep.subr.bf16.mxu0 0
        %1419 = vmatpush1.bf16.msra.mxu0 0
        %1420 = vmatprep.subr.bf16.mxu0 0
        %1421 = vmatpush1.bf16.msra.mxu0 0
        %1422 = vmatprep.subr.bf16.mxu0 0
        %1423 = vmatpush1.bf16.msra.mxu0 0
        %1424 = vmatprep.subr.bf16.mxu0 0
        %1425 = vmatpush1.bf16.msra.mxu0 0
        %1426 = vmatprep.subr.bf16.mxu0 0
        %1427 = vmatpush1.bf16.msra.mxu0 0
        %1428 = vmatprep.subr.bf16.mxu0 0
        %1429 = vmatpush1.bf16.msra.mxu0 0
        %1430 = vmatprep.subr.bf16.mxu0 0
        %1431 = vmatpush1.bf16.msra.mxu0 0
        %1432 = vmatprep.mubr.bf16.mxu0 0
        %1433 = vmatmul.mubr.bf16.gmra.mrb[0].mxu0 %v1358
        %v1434 = vpop.f32.mrb[0].mxu0
        %v1435 = vadd.f32 0.0, %v1434
        %v1436 = vpop.f32.mrb[0].mxu0
        %v1437 = vadd.f32 0.0, %v1436
        %v1438 = vpop.f32.mrb[0].mxu0
        %v1439 = vpop.f32.mrb[0].mxu0
        %1440 = vdwg.mxu0
        %v1441 = vadd.f32 %v1354, %v1394
        %v1442 = vadd.f32 %v1355, %v1396
        %v1443 = vadd.f32 %v1356, %v1435
        %v1444 = vadd.f32 %v1357, %v1437
        %v1445 = vxor.u32 %v1441, 2147483648
        %v1446 = vxor.u32 %v1442, 2147483648
        %v1447 = vxor.u32 %v1443, 2147483648
        %v1448 = vmul.f32 %v1445, 1.442695
        %v1449 = vpow.pop %v1448
        %v1450 = vmul.f32 %v1446, 1.442695
        %v1451 = vpow.pop %v1450
        %v1452 = vmul.f32 %v1447, 1.442695
        %v1453 = vpow.pop %v1452
        %v1454 = vadd.f32 %v1449, 1.0
        %v1455 = vadd.f32 %v1451, 1.0
        %v1456 = vadd.f32 %v1453, 1.0
        %v1457 = vrcp.pop %v1454
        %v1458 = vmul.f32 1.0, %v1457
        %v1459 = vrcp.pop %v1455
        %v1460 = vmul.f32 1.0, %v1459
        %v1461 = vrcp.pop %v1456
        %v1462 = vmul.f32 1.0, %v1461
        %v1463 = vtanh.pop %v1444
        %v1464 = vmul.f32 %v1460, %v1350
        %v1465 = vmul.f32 %v1458, %v1463
        %v1466 = vadd.f32 %v1464, %v1465
        %v1467 = vtanh.pop %v1466
        %v1468 = vmul.f32 %v1462, %v1467
        %1469 = vst [vmem:[#allocation5 + $0x18] sm:$0xff] %v1468
        %v1470 = vld [vmem:[#allocation4 + $0x80] sm:$0xff]
        %v1471 = vld [vmem:[#allocation4 + $0x88] sm:$0xff]
        %v1472 = vld [vmem:[#allocation4 + $0x90] sm:$0xff]
        %v1473 = vld [vmem:[#allocation4 + $0x98] sm:$0xff]
        %v1474 = vpack.c.bf16 %v1468, %v1468
        %1475 = vmatprep.subr.bf16.mxu0 %v948
        %1476 = vmatpush1.bf16.msra.mxu0 %v947
        %1477 = vmatprep.subr.bf16.mxu0 %v952
        %1478 = vmatpush1.bf16.msra.mxu0 %v951
        %1479 = vmatprep.subr.bf16.mxu0 %v956
        %1480 = vmatpush1.bf16.msra.mxu0 %v955
        %1481 = vmatprep.subr.bf16.mxu0 %v960
        %1482 = vmatpush1.bf16.msra.mxu0 %v959
        %1483 = vmatprep.subr.bf16.mxu0 %v964
        %1484 = vmatpush1.bf16.msra.mxu0 %v963
        %1485 = vmatprep.subr.bf16.mxu0 %v968
        %1486 = vmatpush1.bf16.msra.mxu0 %v967
        %1487 = vmatprep.subr.bf16.mxu0 %v972
        %1488 = vmatpush1.bf16.msra.mxu0 %v971
        %1489 = vmatprep.subr.bf16.mxu0 %v976
        %1490 = vmatpush1.bf16.msra.mxu0 %v975
        %1491 = vmatprep.subr.bf16.mxu0 0
        %1492 = vmatpush1.bf16.msra.mxu0 0
        %1493 = vmatprep.subr.bf16.mxu0 0
        %1494 = vmatpush1.bf16.msra.mxu0 0
        %1495 = vmatprep.subr.bf16.mxu0 0
        %1496 = vmatpush1.bf16.msra.mxu0 0
        %1497 = vmatprep.subr.bf16.mxu0 0
        %1498 = vmatpush1.bf16.msra.mxu0 0
        %1499 = vmatprep.subr.bf16.mxu0 0
        %1500 = vmatpush1.bf16.msra.mxu0 0
        %1501 = vmatprep.subr.bf16.mxu0 0
        %1502 = vmatpush1.bf16.msra.mxu0 0
        %1503 = vmatprep.subr.bf16.mxu0 0
        %1504 = vmatpush1.bf16.msra.mxu0 0
        %1505 = vmatprep.subr.bf16.mxu0 0
        %1506 = vmatpush1.bf16.msra.mxu0 0
        %1507 = vmatprep.mubr.bf16.mxu0 0
        %1508 = vmatmul.mubr.bf16.gmra.mrb[0].mxu0 %v1474
        %v1509 = vpop.f32.mrb[0].mxu0
        %v1510 = vadd.f32 0.0, %v1509
        %v1511 = vpop.f32.mrb[0].mxu0
        %v1512 = vadd.f32 0.0, %v1511
        %v1513 = vpop.f32.mrb[0].mxu0
        %v1514 = vpop.f32.mrb[0].mxu0
        %1515 = vdwg.mxu0
        %1516 = vmatprep.subr.bf16.mxu0 %v950
        %1517 = vmatpush1.bf16.msra.mxu0 %v949
        %1518 = vmatprep.subr.bf16.mxu0 %v954
        %1519 = vmatpush1.bf16.msra.mxu0 %v953
        %1520 = vmatprep.subr.bf16.mxu0 %v958
        %1521 = vmatpush1.bf16.msra.mxu0 %v957
        %1522 = vmatprep.subr.bf16.mxu0 %v962
        %1523 = vmatpush1.bf16.msra.mxu0 %v961
        %1524 = vmatprep.subr.bf16.mxu0 %v966
        %1525 = vmatpush1.bf16.msra.mxu0 %v965
        %1526 = vmatprep.subr.bf16.mxu0 %v970
        %1527 = vmatpush1.bf16.msra.mxu0 %v969
        %1528 = vmatprep.subr.bf16.mxu0 %v974
        %1529 = vmatpush1.bf16.msra.mxu0 %v973
        %1530 = vmatprep.subr.bf16.mxu0 %v978
        %1531 = vmatpush1.bf16.msra.mxu0 %v977
        %1532 = vmatprep.subr.bf16.mxu0 0
        %1533 = vmatpush1.bf16.msra.mxu0 0
        %1534 = vmatprep.subr.bf16.mxu0 0
        %1535 = vmatpush1.bf16.msra.mxu0 0
        %1536 = vmatprep.subr.bf16.mxu0 0
        %1537 = vmatpush1.bf16.msra.mxu0 0
        %1538 = vmatprep.subr.bf16.mxu0 0
        %1539 = vmatpush1.bf16.msra.mxu0 0
        %1540 = vmatprep.subr.bf16.mxu0 0
        %1541 = vmatpush1.bf16.msra.mxu0 0
        %1542 = vmatprep.subr.bf16.mxu0 0
        %1543 = vmatpush1.bf16.msra.mxu0 0
        %1544 = vmatprep.subr.bf16.mxu0 0
        %1545 = vmatpush1.bf16.msra.mxu0 0
        %1546 = vmatprep.subr.bf16.mxu0 0
        %1547 = vmatpush1.bf16.msra.mxu0 0
        %1548 = vmatprep.mubr.bf16.mxu0 0
        %1549 = vmatmul.mubr.bf16.gmra.mrb[0].mxu0 %v1474
        %v1550 = vpop.f32.mrb[0].mxu0
        %v1551 = vadd.f32 0.0, %v1550
        %v1552 = vpop.f32.mrb[0].mxu0
        %v1553 = vadd.f32 0.0, %v1552
        %v1554 = vpop.f32.mrb[0].mxu0
        %v1555 = vpop.f32.mrb[0].mxu0
        %1556 = vdwg.mxu0
        %v1557 = vadd.f32 %v1470, %v1510
        %v1558 = vadd.f32 %v1471, %v1512
        %v1559 = vadd.f32 %v1472, %v1551
        %v1560 = vadd.f32 %v1473, %v1553
        %v1561 = vxor.u32 %v1557, 2147483648
        %v1562 = vxor.u32 %v1558, 2147483648
        %v1563 = vxor.u32 %v1559, 2147483648
        %v1564 = vmul.f32 %v1561, 1.442695
        %v1565 = vpow.pop %v1564
        %v1566 = vmul.f32 %v1562, 1.442695
        %v1567 = vpow.pop %v1566
        %v1568 = vmul.f32 %v1563, 1.442695
        %v1569 = vpow.pop %v1568
        %v1570 = vadd.f32 %v1565, 1.0
        %v1571 = vadd.f32 %v1567, 1.0
        %v1572 = vadd.f32 %v1569, 1.0
        %v1573 = vrcp.pop %v1570
        %v1574 = vmul.f32 1.0, %v1573
        %v1575 = vrcp.pop %v1571
        %v1576 = vmul.f32 1.0, %v1575
        %v1577 = vrcp.pop %v1572
        %v1578 = vmul.f32 1.0, %v1577
        %v1579 = vtanh.pop %v1560
        %v1580 = vmul.f32 %v1576, %v1466
        %v1581 = vmul.f32 %v1574, %v1579
        %v1582 = vadd.f32 %v1580, %v1581
        %v1583 = vtanh.pop %v1582
        %v1584 = vmul.f32 %v1578, %v1583
        %1585 = vst [vmem:[#allocation5 + $0x20] sm:$0xff] %v1584
        %v1586 = vld [vmem:[#allocation4 + $0xa0] sm:$0xff]
        %v1587 = vld [vmem:[#allocation4 + $0xa8] sm:$0xff]
        %v1588 = vld [vmem:[#allocation4 + $0xb0] sm:$0xff]
        %v1589 = vld [vmem:[#allocation4 + $0xb8] sm:$0xff]
        %v1590 = vpack.c.bf16 %v1584, %v1584
        %1591 = vmatprep.subr.bf16.mxu0 %v948
        %1592 = vmatpush1.bf16.msra.mxu0 %v947
        %1593 = vmatprep.subr.bf16.mxu0 %v952
        %1594 = vmatpush1.bf16.msra.mxu0 %v951
        %1595 = vmatprep.subr.bf16.mxu0 %v956
        %1596 = vmatpush1.bf16.msra.mxu0 %v955
        %1597 = vmatprep.subr.bf16.mxu0 %v960
        %1598 = vmatpush1.bf16.msra.mxu0 %v959
        %1599 = vmatprep.subr.bf16.mxu0 %v964
        %1600 = vmatpush1.bf16.msra.mxu0 %v963
        %1601 = vmatprep.subr.bf16.mxu0 %v968
        %1602 = vmatpush1.bf16.msra.mxu0 %v967
        %1603 = vmatprep.subr.bf16.mxu0 %v972
        %1604 = vmatpush1.bf16.msra.mxu0 %v971
        %1605 = vmatprep.subr.bf16.mxu0 %v976
        %1606 = vmatpush1.bf16.msra.mxu0 %v975
        %1607 = vmatprep.subr.bf16.mxu0 0
        %1608 = vmatpush1.bf16.msra.mxu0 0
        %1609 = vmatprep.subr.bf16.mxu0 0
        %1610 = vmatpush1.bf16.msra.mxu0 0
        %1611 = vmatprep.subr.bf16.mxu0 0
        %1612 = vmatpush1.bf16.msra.mxu0 0
        %1613 = vmatprep.subr.bf16.mxu0 0
        %1614 = vmatpush1.bf16.msra.mxu0 0
        %1615 = vmatprep.subr.bf16.mxu0 0
        %1616 = vmatpush1.bf16.msra.mxu0 0
        %1617 = vmatprep.subr.bf16.mxu0 0
        %1618 = vmatpush1.bf16.msra.mxu0 0
        %1619 = vmatprep.subr.bf16.mxu0 0
        %1620 = vmatpush1.bf16.msra.mxu0 0
        %1621 = vmatprep.subr.bf16.mxu0 0
        %1622 = vmatpush1.bf16.msra.mxu0 0
        %1623 = vmatprep.mubr.bf16.mxu0 0
        %1624 = vmatmul.mubr.bf16.gmra.mrb[0].mxu0 %v1590
        %v1625 = vpop.f32.mrb[0].mxu0
        %v1626 = vadd.f32 0.0, %v1625
        %v1627 = vpop.f32.mrb[0].mxu0
        %v1628 = vadd.f32 0.0, %v1627
        %v1629 = vpop.f32.mrb[0].mxu0
        %v1630 = vpop.f32.mrb[0].mxu0
        %1631 = vdwg.mxu0
        %1632 = vmatprep.subr.bf16.mxu0 %v950
        %1633 = vmatpush1.bf16.msra.mxu0 %v949
        %1634 = vmatprep.subr.bf16.mxu0 %v954
        %1635 = vmatpush1.bf16.msra.mxu0 %v953
        %1636 = vmatprep.subr.bf16.mxu0 %v958
        %1637 = vmatpush1.bf16.msra.mxu0 %v957
        %1638 = vmatprep.subr.bf16.mxu0 %v962
        %1639 = vmatpush1.bf16.msra.mxu0 %v961
        %1640 = vmatprep.subr.bf16.mxu0 %v966
        %1641 = vmatpush1.bf16.msra.mxu0 %v965
        %1642 = vmatprep.subr.bf16.mxu0 %v970
        %1643 = vmatpush1.bf16.msra.mxu0 %v969
        %1644 = vmatprep.subr.bf16.mxu0 %v974
        %1645 = vmatpush1.bf16.msra.mxu0 %v973
        %1646 = vmatprep.subr.bf16.mxu0 %v978
        %1647 = vmatpush1.bf16.msra.mxu0 %v977
        %1648 = vmatprep.subr.bf16.mxu0 0
        %1649 = vmatpush1.bf16.msra.mxu0 0
        %1650 = vmatprep.subr.bf16.mxu0 0
        %1651 = vmatpush1.bf16.msra.mxu0 0
        %1652 = vmatprep.subr.bf16.mxu0 0
        %1653 = vmatpush1.bf16.msra.mxu0 0
        %1654 = vmatprep.subr.bf16.mxu0 0
        %1655 = vmatpush1.bf16.msra.mxu0 0
        %1656 = vmatprep.subr.bf16.mxu0 0
        %1657 = vmatpush1.bf16.msra.mxu0 0
        %1658 = vmatprep.subr.bf16.mxu0 0
        %1659 = vmatpush1.bf16.msra.mxu0 0
        %1660 = vmatprep.subr.bf16.mxu0 0
        %1661 = vmatpush1.bf16.msra.mxu0 0
        %1662 = vmatprep.subr.bf16.mxu0 0
        %1663 = vmatpush1.bf16.msra.mxu0 0
        %1664 = vmatprep.mubr.bf16.mxu0 0
        %1665 = vmatmul.mubr.bf16.gmra.mrb[0].mxu0 %v1590
        %v1666 = vpop.f32.mrb[0].mxu0
        %v1667 = vadd.f32 0.0, %v1666
        %v1668 = vpop.f32.mrb[0].mxu0
        %v1669 = vadd.f32 0.0, %v1668
        %v1670 = vpop.f32.mrb[0].mxu0
        %v1671 = vpop.f32.mrb[0].mxu0
        %1672 = vdwg.mxu0
        %v1673 = vadd.f32 %v1586, %v1626
        %v1674 = vadd.f32 %v1587, %v1628
        %v1675 = vadd.f32 %v1588, %v1667
        %v1676 = vadd.f32 %v1589, %v1669
        %v1677 = vxor.u32 %v1673, 2147483648
        %v1678 = vxor.u32 %v1674, 2147483648
        %v1679 = vxor.u32 %v1675, 2147483648
        %v1680 = vmul.f32 %v1677, 1.442695
        %v1681 = vpow.pop %v1680
        %v1682 = vmul.f32 %v1678, 1.442695
        %v1683 = vpow.pop %v1682
        %v1684 = vmul.f32 %v1679, 1.442695
        %v1685 = vpow.pop %v1684
        %v1686 = vadd.f32 %v1681, 1.0
        %v1687 = vadd.f32 %v1683, 1.0
        %v1688 = vadd.f32 %v1685, 1.0
        %v1689 = vrcp.pop %v1686
        %v1690 = vmul.f32 1.0, %v1689
        %v1691 = vrcp.pop %v1687
        %v1692 = vmul.f32 1.0, %v1691
        %v1693 = vrcp.pop %v1688
        %v1694 = vmul.f32 1.0, %v1693
        %v1695 = vtanh.pop %v1676
        %v1696 = vmul.f32 %v1692, %v1582
        %v1697 = vmul.f32 %v1690, %v1695
        %v1698 = vadd.f32 %v1696, %v1697
        %v1699 = vtanh.pop %v1698
        %v1700 = vmul.f32 %v1694, %v1699
        %1701 = vst [vmem:[#allocation5 + $0x28] sm:$0xff] %v1700
        %v1702 = vld [vmem:[#allocation4 + $0xc0] sm:$0xff]
        %v1703 = vld [vmem:[#allocation4 + $0xc8] sm:$0xff]
        %v1704 = vld [vmem:[#allocation4 + $0xd0] sm:$0xff]
        %v1705 = vld [vmem:[#allocation4 + $0xd8] sm:$0xff]
        %v1706 = vpack.c.bf16 %v1700, %v1700
        %1707 = vmatprep.subr.bf16.mxu0 %v948
        %1708 = vmatpush1.bf16.msra.mxu0 %v947
        %1709 = vmatprep.subr.bf16.mxu0 %v952
        %1710 = vmatpush1.bf16.msra.mxu0 %v951
        %1711 = vmatprep.subr.bf16.mxu0 %v956
        %1712 = vmatpush1.bf16.msra.mxu0 %v955
        %1713 = vmatprep.subr.bf16.mxu0 %v960
        %1714 = vmatpush1.bf16.msra.mxu0 %v959
        %1715 = vmatprep.subr.bf16.mxu0 %v964
        %1716 = vmatpush1.bf16.msra.mxu0 %v963
        %1717 = vmatprep.subr.bf16.mxu0 %v968
        %1718 = vmatpush1.bf16.msra.mxu0 %v967
        %1719 = vmatprep.subr.bf16.mxu0 %v972
        %1720 = vmatpush1.bf16.msra.mxu0 %v971
        %1721 = vmatprep.subr.bf16.mxu0 %v976
        %1722 = vmatpush1.bf16.msra.mxu0 %v975
        %1723 = vmatprep.subr.bf16.mxu0 0
        %1724 = vmatpush1.bf16.msra.mxu0 0
        %1725 = vmatprep.subr.bf16.mxu0 0
        %1726 = vmatpush1.bf16.msra.mxu0 0
        %1727 = vmatprep.subr.bf16.mxu0 0
        %1728 = vmatpush1.bf16.msra.mxu0 0
        %1729 = vmatprep.subr.bf16.mxu0 0
        %1730 = vmatpush1.bf16.msra.mxu0 0
        %1731 = vmatprep.subr.bf16.mxu0 0
        %1732 = vmatpush1.bf16.msra.mxu0 0
        %1733 = vmatprep.subr.bf16.mxu0 0
        %1734 = vmatpush1.bf16.msra.mxu0 0
        %1735 = vmatprep.subr.bf16.mxu0 0
        %1736 = vmatpush1.bf16.msra.mxu0 0
        %1737 = vmatprep.subr.bf16.mxu0 0
        %1738 = vmatpush1.bf16.msra.mxu0 0
        %1739 = vmatprep.mubr.bf16.mxu0 0
        %1740 = vmatmul.mubr.bf16.gmra.mrb[0].mxu0 %v1706
        %v1741 = vpop.f32.mrb[0].mxu0
        %v1742 = vadd.f32 0.0, %v1741
        %v1743 = vpop.f32.mrb[0].mxu0
        %v1744 = vadd.f32 0.0, %v1743
        %v1745 = vpop.f32.mrb[0].mxu0
        %v1746 = vpop.f32.mrb[0].mxu0
        %1747 = vdwg.mxu0
        %1748 = vmatprep.subr.bf16.mxu0 %v950
        %1749 = vmatpush1.bf16.msra.mxu0 %v949
        %1750 = vmatprep.subr.bf16.mxu0 %v954
        %1751 = vmatpush1.bf16.msra.mxu0 %v953
        %1752 = vmatprep.subr.bf16.mxu0 %v958
        %1753 = vmatpush1.bf16.msra.mxu0 %v957
        %1754 = vmatprep.subr.bf16.mxu0 %v962
        %1755 = vmatpush1.bf16.msra.mxu0 %v961
        %1756 = vmatprep.subr.bf16.mxu0 %v966
        %1757 = vmatpush1.bf16.msra.mxu0 %v965
        %1758 = vmatprep.subr.bf16.mxu0 %v970
        %1759 = vmatpush1.bf16.msra.mxu0 %v969
        %1760 = vmatprep.subr.bf16.mxu0 %v974
        %1761 = vmatpush1.bf16.msra.mxu0 %v973
        %1762 = vmatprep.subr.bf16.mxu0 %v978
        %1763 = vmatpush1.bf16.msra.mxu0 %v977
        %1764 = vmatprep.subr.bf16.mxu0 0
        %1765 = vmatpush1.bf16.msra.mxu0 0
        %1766 = vmatprep.subr.bf16.mxu0 0
        %1767 = vmatpush1.bf16.msra.mxu0 0
        %1768 = vmatprep.subr.bf16.mxu0 0
        %1769 = vmatpush1.bf16.msra.mxu0 0
        %1770 = vmatprep.subr.bf16.mxu0 0
        %1771 = vmatpush1.bf16.msra.mxu0 0
        %1772 = vmatprep.subr.bf16.mxu0 0
        %1773 = vmatpush1.bf16.msra.mxu0 0
        %1774 = vmatprep.subr.bf16.mxu0 0
        %1775 = vmatpush1.bf16.msra.mxu0 0
        %1776 = vmatprep.subr.bf16.mxu0 0
        %1777 = vmatpush1.bf16.msra.mxu0 0
        %1778 = vmatprep.subr.bf16.mxu0 0
        %1779 = vmatpush1.bf16.msra.mxu0 0
        %1780 = vmatprep.mubr.bf16.mxu0 0
        %1781 = vmatmul.mubr.bf16.gmra.mrb[0].mxu0 %v1706
        %v1782 = vpop.f32.mrb[0].mxu0
        %v1783 = vadd.f32 0.0, %v1782
        %v1784 = vpop.f32.mrb[0].mxu0
        %v1785 = vadd.f32 0.0, %v1784
        %v1786 = vpop.f32.mrb[0].mxu0
        %v1787 = vpop.f32.mrb[0].mxu0
        %1788 = vdwg.mxu0
        %v1789 = vadd.f32 %v1702, %v1742
        %v1790 = vadd.f32 %v1703, %v1744
        %v1791 = vadd.f32 %v1704, %v1783
        %v1792 = vadd.f32 %v1705, %v1785
        %v1793 = vxor.u32 %v1789, 2147483648
        %v1794 = vxor.u32 %v1790, 2147483648
        %v1795 = vxor.u32 %v1791, 2147483648
        %v1796 = vmul.f32 %v1793, 1.442695
        %v1797 = vpow.pop %v1796
        %v1798 = vmul.f32 %v1794, 1.442695
        %v1799 = vpow.pop %v1798
        %v1800 = vmul.f32 %v1795, 1.442695
        %v1801 = vpow.pop %v1800
        %v1802 = vadd.f32 %v1797, 1.0
        %v1803 = vadd.f32 %v1799, 1.0
        %v1804 = vadd.f32 %v1801, 1.0
        %v1805 = vrcp.pop %v1802
        %v1806 = vmul.f32 1.0, %v1805
        %v1807 = vrcp.pop %v1803
        %v1808 = vmul.f32 1.0, %v1807
        %v1809 = vrcp.pop %v1804
        %v1810 = vmul.f32 1.0, %v1809
        %v1811 = vtanh.pop %v1792
        %v1812 = vmul.f32 %v1808, %v1698
        %v1813 = vmul.f32 %v1806, %v1811
        %v1814 = vadd.f32 %v1812, %v1813
        %v1815 = vtanh.pop %v1814
        %v1816 = vmul.f32 %v1810, %v1815
        %1817 = vst [vmem:[#allocation5 + $0x30] sm:$0xff] %v1816
        %v1818 = vld [vmem:[#allocation4 + $0xe0] sm:$0xff]
        %v1819 = vld [vmem:[#allocation4 + $0xe8] sm:$0xff]
        %v1820 = vld [vmem:[#allocation4 + $0xf0] sm:$0xff]
        %v1821 = vld [vmem:[#allocation4 + $0xf8] sm:$0xff]
        %v1822 = vpack.c.bf16 %v1816, %v1816
        %1823 = vmatprep.subr.bf16.mxu0 %v948
        %1824 = vmatpush1.bf16.msra.mxu0 %v947
        %1825 = vmatprep.subr.bf16.mxu0 %v952
        %1826 = vmatpush1.bf16.msra.mxu0 %v951
        %1827 = vmatprep.subr.bf16.mxu0 %v956
        %1828 = vmatpush1.bf16.msra.mxu0 %v955
        %1829 = vmatprep.subr.bf16.mxu0 %v960
        %1830 = vmatpush1.bf16.msra.mxu0 %v959
        %1831 = vmatprep.subr.bf16.mxu0 %v964
        %1832 = vmatpush1.bf16.msra.mxu0 %v963
        %1833 = vmatprep.subr.bf16.mxu0 %v968
        %1834 = vmatpush1.bf16.msra.mxu0 %v967
        %1835 = vmatprep.subr.bf16.mxu0 %v972
        %1836 = vmatpush1.bf16.msra.mxu0 %v971
        %1837 = vmatprep.subr.bf16.mxu0 %v976
        %1838 = vmatpush1.bf16.msra.mxu0 %v975
        %1839 = vmatprep.subr.bf16.mxu0 0
        %1840 = vmatpush1.bf16.msra.mxu0 0
        %1841 = vmatprep.subr.bf16.mxu0 0
        %1842 = vmatpush1.bf16.msra.mxu0 0
        %1843 = vmatprep.subr.bf16.mxu0 0
        %1844 = vmatpush1.bf16.msra.mxu0 0
        %1845 = vmatprep.subr.bf16.mxu0 0
        %1846 = vmatpush1.bf16.msra.mxu0 0
        %1847 = vmatprep.subr.bf16.mxu0 0
        %1848 = vmatpush1.bf16.msra.mxu0 0
        %1849 = vmatprep.subr.bf16.mxu0 0
        %1850 = vmatpush1.bf16.msra.mxu0 0
        %1851 = vmatprep.subr.bf16.mxu0 0
        %1852 = vmatpush1.bf16.msra.mxu0 0
        %1853 = vmatprep.subr.bf16.mxu0 0
        %1854 = vmatpush1.bf16.msra.mxu0 0
        %1855 = vmatprep.mubr.bf16.mxu0 0
        %1856 = vmatmul.mubr.bf16.gmra.mrb[0].mxu0 %v1822
        %v1857 = vpop.f32.mrb[0].mxu0
        %v1858 = vadd.f32 0.0, %v1857
        %v1859 = vpop.f32.mrb[0].mxu0
        %v1860 = vadd.f32 0.0, %v1859
        %v1861 = vpop.f32.mrb[0].mxu0
        %v1862 = vpop.f32.mrb[0].mxu0
        %1863 = vdwg.mxu0
        %1864 = vmatprep.subr.bf16.mxu0 %v950
        %1865 = vmatpush1.bf16.msra.mxu0 %v949
        %1866 = vmatprep.subr.bf16.mxu0 %v954
        %1867 = vmatpush1.bf16.msra.mxu0 %v953
        %1868 = vmatprep.subr.bf16.mxu0 %v958
        %1869 = vmatpush1.bf16.msra.mxu0 %v957
        %1870 = vmatprep.subr.bf16.mxu0 %v962
        %1871 = vmatpush1.bf16.msra.mxu0 %v961
        %1872 = vmatprep.subr.bf16.mxu0 %v966
        %1873 = vmatpush1.bf16.msra.mxu0 %v965
        %1874 = vmatprep.subr.bf16.mxu0 %v970
        %1875 = vmatpush1.bf16.msra.mxu0 %v969
        %1876 = vmatprep.subr.bf16.mxu0 %v974
        %1877 = vmatpush1.bf16.msra.mxu0 %v973
        %1878 = vmatprep.subr.bf16.mxu0 %v978
        %1879 = vmatpush1.bf16.msra.mxu0 %v977
        %1880 = vmatprep.subr.bf16.mxu0 0
        %1881 = vmatpush1.bf16.msra.mxu0 0
        %1882 = vmatprep.subr.bf16.mxu0 0
        %1883 = vmatpush1.bf16.msra.mxu0 0
        %1884 = vmatprep.subr.bf16.mxu0 0
        %1885 = vmatpush1.bf16.msra.mxu0 0
        %1886 = vmatprep.subr.bf16.mxu0 0
        %1887 = vmatpush1.bf16.msra.mxu0 0
        %1888 = vmatprep.subr.bf16.mxu0 0
        %1889 = vmatpush1.bf16.msra.mxu0 0
        %1890 = vmatprep.subr.bf16.mxu0 0
        %1891 = vmatpush1.bf16.msra.mxu0 0
        %1892 = vmatprep.subr.bf16.mxu0 0
        %1893 = vmatpush1.bf16.msra.mxu0 0
        %1894 = vmatprep.subr.bf16.mxu0 0
        %1895 = vmatpush1.bf16.msra.mxu0 0
        %1896 = vmatprep.mubr.bf16.mxu0 0
        %1897 = vmatmul.mubr.bf16.gmra.mrb[0].mxu0 %v1822
        %v1898 = vpop.f32.mrb[0].mxu0
        %v1899 = vadd.f32 0.0, %v1898
        %v1900 = vpop.f32.mrb[0].mxu0
        %v1901 = vadd.f32 0.0, %v1900
        %v1902 = vpop.f32.mrb[0].mxu0
        %v1903 = vpop.f32.mrb[0].mxu0
        %1904 = vdwg.mxu0
        %v1905 = vadd.f32 %v1818, %v1858
        %v1906 = vadd.f32 %v1819, %v1860
        %v1907 = vadd.f32 %v1820, %v1899
        %v1908 = vadd.f32 %v1821, %v1901
        %v1909 = vxor.u32 %v1905, 2147483648
        %v1910 = vxor.u32 %v1906, 2147483648
        %v1911 = vxor.u32 %v1907, 2147483648
        %v1912 = vmul.f32 %v1909, 1.442695
        %v1913 = vpow.pop %v1912
        %v1914 = vmul.f32 %v1910, 1.442695
        %v1915 = vpow.pop %v1914
        %v1916 = vmul.f32 %v1911, 1.442695
        %v1917 = vpow.pop %v1916
        %v1918 = vadd.f32 %v1913, 1.0
        %v1919 = vadd.f32 %v1915, 1.0
        %v1920 = vadd.f32 %v1917, 1.0
        %v1921 = vrcp.pop %v1918
        %v1922 = vmul.f32 1.0, %v1921
        %v1923 = vrcp.pop %v1919
        %v1924 = vmul.f32 1.0, %v1923
        %v1925 = vrcp.pop %v1920
        %v1926 = vmul.f32 1.0, %v1925
        %v1927 = vtanh.pop %v1908
        %v1928 = vmul.f32 %v1924, %v1814
        %v1929 = vmul.f32 %v1922, %v1927
        %v1930 = vadd.f32 %v1928, %v1929
        %v1931 = vtanh.pop %v1930
        %v1932 = vmul.f32 %v1926, %v1931
        %1933 = vst [vmem:[#allocation5 + $0x38] sm:$0xff] %v1932
        %1934 = vst [vmem:[#allocation2] sm:$0xff] %v1932
        %1935 = vst [vmem:[#allocation3] sm:$0xff] %v1930
        %v1936 = vld [vmem:[#allocation5] sm:$0xff]
        %v1937 = vld [vmem:[#allocation5 + $0x8] sm:$0xff]
        %v1938 = vld [vmem:[#allocation5 + $0x10] sm:$0xff]
        %v1939 = vld [vmem:[#allocation5 + $0x18] sm:$0xff]
        %v1940 = vld [vmem:[#allocation5 + $0x20] sm:$0xff]
        %v1941 = vld [vmem:[#allocation5 + $0x28] sm:$0xff]
        %v1942 = vld [vmem:[#allocation5 + $0x30] sm:$0xff]
        %v1943 = vld [vmem:[#allocation5 + $0x38] sm:$0xff]
        %v1944 = vpack.c.bf16 %v1937, %v1936
        %v1945 = vpack.c.bf16 %v1939, %v1938
        %v1946 = vpack.c.bf16 %v1941, %v1940
        %v1947 = vpack.c.bf16 %v1943, %v1942
        %v1948 = vld [vmem:[#allocation14] sm:$0xff]
        %v1949 = vld [vmem:[#allocation14 + $0x8] sm:$0xff]
        %v1950 = vld [vmem:[#allocation14 + $0x10] sm:$0xff]
        %v1951 = vld [vmem:[#allocation14 + $0x18] sm:$0xff]
        %v1952 = vld [vmem:[#allocation14 + $0x20] sm:$0xff]
        %v1953 = vld [vmem:[#allocation14 + $0x28] sm:$0xff]
        %v1954 = vld [vmem:[#allocation14 + $0x30] sm:$0xff]
        %v1955 = vld [vmem:[#allocation14 + $0x38] sm:$0xff]
        %v1956 = vld [vmem:[#allocation14 + $0x40] sm:$0xff]
        %v1957 = vld [vmem:[#allocation14 + $0x48] sm:$0xff]
        %v1958 = vld [vmem:[#allocation14 + $0x50] sm:$0xff]
        %v1959 = vld [vmem:[#allocation14 + $0x58] sm:$0xff]
        %v1960 = vld [vmem:[#allocation14 + $0x60] sm:$0xff]
        %v1961 = vld [vmem:[#allocation14 + $0x68] sm:$0xff]
        %v1962 = vld [vmem:[#allocation14 + $0x70] sm:$0xff]
        %v1963 = vld [vmem:[#allocation14 + $0x78] sm:$0xff]
        %v1964 = vld [vmem:[#allocation14 + $0x80] sm:$0xff]
        %v1965 = vld [vmem:[#allocation14 + $0x88] sm:$0xff]
        %v1966 = vld [vmem:[#allocation14 + $0x90] sm:$0xff]
        %v1967 = vld [vmem:[#allocation14 + $0x98] sm:$0xff]
        %v1968 = vld [vmem:[#allocation14 + $0xa0] sm:$0xff]
        %v1969 = vld [vmem:[#allocation14 + $0xa8] sm:$0xff]
        %v1970 = vld [vmem:[#allocation14 + $0xb0] sm:$0xff]
        %v1971 = vld [vmem:[#allocation14 + $0xb8] sm:$0xff]
        %v1972 = vld [vmem:[#allocation14 + $0xc0] sm:$0xff]
        %v1973 = vld [vmem:[#allocation14 + $0xc8] sm:$0xff]
        %v1974 = vld [vmem:[#allocation14 + $0xd0] sm:$0xff]
        %v1975 = vld [vmem:[#allocation14 + $0xd8] sm:$0xff]
        %v1976 = vld [vmem:[#allocation14 + $0xe0] sm:$0xff]
        %v1977 = vld [vmem:[#allocation14 + $0xe8] sm:$0xff]
        %v1978 = vld [vmem:[#allocation14 + $0xf0] sm:$0xff]
        %v1979 = vld [vmem:[#allocation14 + $0xf8] sm:$0xff]
        %v1980 = vld [vmem:[#allocation17] sm:$0xf]
        %v1982 = vlaneseq
        %v1983 = vshrl.u32 %v1982, 7
        %v1984 = vsub.s32 0, %v1983
        %v1985 = vrot.slane %v1980, %v1984
        %v1986 = vlaneseq
        %v1987 = vshrl.u32 %v1986, 7
        %v1988 = vsub.s32 1, %v1987
        %v1989 = vrot.slane %v1980, %v1988
        %v1990 = vlaneseq
        %v1991 = vshrl.u32 %v1990, 7
        %v1992 = vsub.s32 2, %v1991
        %v1993 = vrot.slane %v1980, %v1992
        %v1994 = vlaneseq
        %v1995 = vshrl.u32 %v1994, 7
        %v1996 = vsub.s32 3, %v1995
        %v1997 = vrot.slane %v1980, %v1996
        %v2034 = vunpack.c.l.b16 %v1948
        %v2035 = vunpack.c.h.b16 %v1948
        %v2036 = vunpack.c.l.b16 %v1949
        %v2037 = vunpack.c.h.b16 %v1949
        %v2038 = vunpack.c.l.b16 %v1950
        %v2039 = vunpack.c.h.b16 %v1950
        %v2040 = vunpack.c.l.b16 %v1951
        %v2041 = vunpack.c.h.b16 %v1951
        %v2042 = vunpack.c.l.b16 %v1952
        %v2043 = vunpack.c.h.b16 %v1952
        %v2044 = vunpack.c.l.b16 %v1953
        %v2045 = vunpack.c.h.b16 %v1953
        %v2046 = vunpack.c.l.b16 %v1954
        %v2047 = vunpack.c.h.b16 %v1954
        %v2048 = vunpack.c.l.b16 %v1955
        %v2049 = vunpack.c.h.b16 %v1955
        %v2050 = vunpack.c.l.b16 %v1956
        %v2051 = vunpack.c.h.b16 %v1956
        %v2052 = vunpack.c.l.b16 %v1957
        %v2053 = vunpack.c.h.b16 %v1957
        %v2054 = vunpack.c.l.b16 %v1958
        %v2055 = vunpack.c.h.b16 %v1958
        %v2056 = vunpack.c.l.b16 %v1959
        %v2057 = vunpack.c.h.b16 %v1959
        %v2058 = vunpack.c.l.b16 %v1960
        %v2059 = vunpack.c.h.b16 %v1960
        %v2060 = vunpack.c.l.b16 %v1961
        %v2061 = vunpack.c.h.b16 %v1961
        %v2062 = vunpack.c.l.b16 %v1962
        %v2063 = vunpack.c.h.b16 %v1962
        %v2064 = vunpack.c.l.b16 %v1963
        %v2065 = vunpack.c.h.b16 %v1963
        %v2066 = vunpack.c.l.b16 %v1964
        %v2067 = vunpack.c.h.b16 %v1964
        %v2068 = vunpack.c.l.b16 %v1965
        %v2069 = vunpack.c.h.b16 %v1965
        %v2070 = vunpack.c.l.b16 %v1966
        %v2071 = vunpack.c.h.b16 %v1966
        %v2072 = vunpack.c.l.b16 %v1967
        %v2073 = vunpack.c.h.b16 %v1967
        %v2074 = vunpack.c.l.b16 %v1968
        %v2075 = vunpack.c.h.b16 %v1968
        %v2076 = vunpack.c.l.b16 %v1969
        %v2077 = vunpack.c.h.b16 %v1969
        %v2078 = vunpack.c.l.b16 %v1970
        %v2079 = vunpack.c.h.b16 %v1970
        %v2080 = vunpack.c.l.b16 %v1971
        %v2081 = vunpack.c.h.b16 %v1971
        %v2082 = vunpack.c.l.b16 %v1972
        %v2083 = vunpack.c.h.b16 %v1972
        %v2084 = vunpack.c.l.b16 %v1973
        %v2085 = vunpack.c.h.b16 %v1973
        %v2086 = vunpack.c.l.b16 %v1974
        %v2087 = vunpack.c.h.b16 %v1974
        %v2088 = vunpack.c.l.b16 %v1975
        %v2089 = vunpack.c.h.b16 %v1975
        %v2090 = vunpack.c.l.b16 %v1976
        %v2091 = vunpack.c.h.b16 %v1976
        %v2092 = vunpack.c.l.b16 %v1977
        %v2093 = vunpack.c.h.b16 %v1977
        %v2094 = vunpack.c.l.b16 %v1978
        %v2095 = vunpack.c.h.b16 %v1978
        %v2096 = vunpack.c.l.b16 %v1979
        %v2097 = vunpack.c.h.b16 %v1979
        %v2098 = vpack.c.b16 %v2038, %v2034
        %v2099 = vpack.c.b16 %v2039, %v2035
        %v2100 = vpack.c.b16 %v2040, %v2036
        %v2101 = vpack.c.b16 %v2041, %v2037
        %v2102 = vpack.c.b16 %v2046, %v2042
        %v2103 = vpack.c.b16 %v2047, %v2043
        %v2104 = vpack.c.b16 %v2048, %v2044
        %v2105 = vpack.c.b16 %v2049, %v2045
        %v2106 = vpack.c.b16 %v2054, %v2050
        %v2107 = vpack.c.b16 %v2055, %v2051
        %v2108 = vpack.c.b16 %v2056, %v2052
        %v2109 = vpack.c.b16 %v2057, %v2053
        %v2110 = vpack.c.b16 %v2062, %v2058
        %v2111 = vpack.c.b16 %v2063, %v2059
        %v2112 = vpack.c.b16 %v2064, %v2060
        %v2113 = vpack.c.b16 %v2065, %v2061
        %v2114 = vpack.c.b16 %v2070, %v2066
        %v2115 = vpack.c.b16 %v2071, %v2067
        %v2116 = vpack.c.b16 %v2072, %v2068
        %v2117 = vpack.c.b16 %v2073, %v2069
        %v2118 = vpack.c.b16 %v2078, %v2074
        %v2119 = vpack.c.b16 %v2079, %v2075
        %v2120 = vpack.c.b16 %v2080, %v2076
        %v2121 = vpack.c.b16 %v2081, %v2077
        %v2122 = vpack.c.b16 %v2086, %v2082
        %v2123 = vpack.c.b16 %v2087, %v2083
        %v2124 = vpack.c.b16 %v2088, %v2084
        %v2125 = vpack.c.b16 %v2089, %v2085
        %v2126 = vpack.c.b16 %v2094, %v2090
        %v2127 = vpack.c.b16 %v2095, %v2091
        %v2128 = vpack.c.b16 %v2096, %v2092
        %v2129 = vpack.c.b16 %v2097, %v2093
        %2162 = vmatprep.subr.bf16.mxu0 %v2099
        %2163 = vmatpush1.bf16.msra.mxu0 %v2098
        %2164 = vmatprep.subr.bf16.mxu0 %v2103
        %2165 = vmatpush1.bf16.msra.mxu0 %v2102
        %2166 = vmatprep.subr.bf16.mxu0 %v2107
        %2167 = vmatpush1.bf16.msra.mxu0 %v2106
        %2168 = vmatprep.subr.bf16.mxu0 %v2111
        %2169 = vmatpush1.bf16.msra.mxu0 %v2110
        %2170 = vmatprep.subr.bf16.mxu0 %v2115
        %2171 = vmatpush1.bf16.msra.mxu0 %v2114
        %2172 = vmatprep.subr.bf16.mxu0 %v2119
        %2173 = vmatpush1.bf16.msra.mxu0 %v2118
        %2174 = vmatprep.subr.bf16.mxu0 %v2123
        %2175 = vmatpush1.bf16.msra.mxu0 %v2122
        %2176 = vmatprep.subr.bf16.mxu0 %v2127
        %2177 = vmatpush1.bf16.msra.mxu0 %v2126
        %2178 = vmatprep.subr.bf16.mxu0 0
        %2179 = vmatpush1.bf16.msra.mxu0 0
        %2180 = vmatprep.subr.bf16.mxu0 0
        %2181 = vmatpush1.bf16.msra.mxu0 0
        %2182 = vmatprep.subr.bf16.mxu0 0
        %2183 = vmatpush1.bf16.msra.mxu0 0
        %2184 = vmatprep.subr.bf16.mxu0 0
        %2185 = vmatpush1.bf16.msra.mxu0 0
        %2186 = vmatprep.subr.bf16.mxu0 0
        %2187 = vmatpush1.bf16.msra.mxu0 0
        %2188 = vmatprep.subr.bf16.mxu0 0
        %2189 = vmatpush1.bf16.msra.mxu0 0
        %2190 = vmatprep.subr.bf16.mxu0 0
        %2191 = vmatpush1.bf16.msra.mxu0 0
        %2192 = vmatprep.subr.bf16.mxu0 0
        %2193 = vmatpush1.bf16.msra.mxu0 0
        %2194 = vmatprep.mubr.bf16.mxu0 0
        %2195 = vmatmul.mubr.bf16.gmra.mrb[0].mxu0 %v1944
        %v2196 = vpop.f32.mrb[0].mxu0
        %v2197 = vadd.f32 %v1985, %v2196
        %v2198 = vpop.f32.mrb[0].mxu0
        %v2199 = vadd.f32 %v1989, %v2198
        %v2200 = vpop.f32.mrb[0].mxu0
        %v2201 = vadd.f32 %v1985, %v2200
        %v2202 = vpop.f32.mrb[0].mxu0
        %v2203 = vadd.f32 %v1989, %v2202
        %2204 = vmatprep.mubr.bf16.mxu0 0
        %2205 = vmatmul.mubr.bf16.gmra.mrb[0].mxu0 %v1945
        %v2206 = vpop.f32.mrb[0].mxu0
        %v2207 = vadd.f32 %v1985, %v2206
        %v2208 = vpop.f32.mrb[0].mxu0
        %v2209 = vadd.f32 %v1989, %v2208
        %v2210 = vpop.f32.mrb[0].mxu0
        %v2211 = vadd.f32 %v1985, %v2210
        %v2212 = vpop.f32.mrb[0].mxu0
        %v2213 = vadd.f32 %v1989, %v2212
        %2214 = vmatprep.mubr.bf16.mxu0 0
        %2215 = vmatmul.mubr.bf16.gmra.mrb[0].mxu0 %v1946
        %v2216 = vpop.f32.mrb[0].mxu0
        %v2217 = vadd.f32 %v1985, %v2216
        %v2218 = vpop.f32.mrb[0].mxu0
        %v2219 = vadd.f32 %v1989, %v2218
        %v2220 = vpop.f32.mrb[0].mxu0
        %v2221 = vadd.f32 %v1985, %v2220
        %v2222 = vpop.f32.mrb[0].mxu0
        %v2223 = vadd.f32 %v1989, %v2222
        %2224 = vmatprep.mubr.bf16.mxu0 0
        %2225 = vmatmul.mubr.bf16.gmra.mrb[0].mxu0 %v1947
        %v2226 = vpop.f32.mrb[0].mxu0
        %v2227 = vadd.f32 %v1985, %v2226
        %v2228 = vpop.f32.mrb[0].mxu0
        %v2229 = vadd.f32 %v1989, %v2228
        %v2230 = vpop.f32.mrb[0].mxu0
        %v2231 = vadd.f32 %v1985, %v2230
        %v2232 = vpop.f32.mrb[0].mxu0
        %v2233 = vadd.f32 %v1989, %v2232
        %2234 = vdwg.mxu0
        %2235 = vmatprep.subr.bf16.mxu0 %v2101
        %2236 = vmatpush1.bf16.msra.mxu0 %v2100
        %2237 = vmatprep.subr.bf16.mxu0 %v2105
        %2238 = vmatpush1.bf16.msra.mxu0 %v2104
        %2239 = vmatprep.subr.bf16.mxu0 %v2109
        %2240 = vmatpush1.bf16.msra.mxu0 %v2108
        %2241 = vmatprep.subr.bf16.mxu0 %v2113
        %2242 = vmatpush1.bf16.msra.mxu0 %v2112
        %2243 = vmatprep.subr.bf16.mxu0 %v2117
        %2244 = vmatpush1.bf16.msra.mxu0 %v2116
        %2245 = vmatprep.subr.bf16.mxu0 %v2121
        %2246 = vmatpush1.bf16.msra.mxu0 %v2120
        %2247 = vmatprep.subr.bf16.mxu0 %v2125
        %2248 = vmatpush1.bf16.msra.mxu0 %v2124
        %2249 = vmatprep.subr.bf16.mxu0 %v2129
        %2250 = vmatpush1.bf16.msra.mxu0 %v2128
        %2251 = vmatprep.subr.bf16.mxu0 0
        %2252 = vmatpush1.bf16.msra.mxu0 0
        %2253 = vmatprep.subr.bf16.mxu0 0
        %2254 = vmatpush1.bf16.msra.mxu0 0
        %2255 = vmatprep.subr.bf16.mxu0 0
        %2256 = vmatpush1.bf16.msra.mxu0 0
        %2257 = vmatprep.subr.bf16.mxu0 0
        %2258 = vmatpush1.bf16.msra.mxu0 0
        %2259 = vmatprep.subr.bf16.mxu0 0
        %2260 = vmatpush1.bf16.msra.mxu0 0
        %2261 = vmatprep.subr.bf16.mxu0 0
        %2262 = vmatpush1.bf16.msra.mxu0 0
        %2263 = vmatprep.subr.bf16.mxu0 0
        %2264 = vmatpush1.bf16.msra.mxu0 0
        %2265 = vmatprep.subr.bf16.mxu0 0
        %2266 = vmatpush1.bf16.msra.mxu0 0
        %2267 = vmatprep.mubr.bf16.mxu0 0
        %2268 = vmatmul.mubr.bf16.gmra.mrb[0].mxu0 %v1944
        %v2269 = vpop.f32.mrb[0].mxu0
        %v2270 = vadd.f32 %v1993, %v2269
        %v2271 = vpop.f32.mrb[0].mxu0
        %v2272 = vadd.f32 %v1997, %v2271
        %v2273 = vpop.f32.mrb[0].mxu0
        %v2274 = vadd.f32 %v1993, %v2273
        %v2275 = vpop.f32.mrb[0].mxu0
        %v2276 = vadd.f32 %v1997, %v2275
        %2277 = vmatprep.mubr.bf16.mxu0 0
        %2278 = vmatmul.mubr.bf16.gmra.mrb[0].mxu0 %v1945
        %v2279 = vpop.f32.mrb[0].mxu0
        %v2280 = vadd.f32 %v1993, %v2279
        %v2281 = vpop.f32.mrb[0].mxu0
        %v2282 = vadd.f32 %v1997, %v2281
        %v2283 = vpop.f32.mrb[0].mxu0
        %v2284 = vadd.f32 %v1993, %v2283
        %v2285 = vpop.f32.mrb[0].mxu0
        %v2286 = vadd.f32 %v1997, %v2285
        %2287 = vmatprep.mubr.bf16.mxu0 0
        %2288 = vmatmul.mubr.bf16.gmra.mrb[0].mxu0 %v1946
        %v2289 = vpop.f32.mrb[0].mxu0
        %v2290 = vadd.f32 %v1993, %v2289
        %v2291 = vpop.f32.mrb[0].mxu0
        %v2292 = vadd.f32 %v1997, %v2291
        %v2293 = vpop.f32.mrb[0].mxu0
        %v2294 = vadd.f32 %v1993, %v2293
        %v2295 = vpop.f32.mrb[0].mxu0
        %v2296 = vadd.f32 %v1997, %v2295
        %2297 = vmatprep.mubr.bf16.mxu0 0
        %2298 = vmatmul.mubr.bf16.gmra.mrb[0].mxu0 %v1947
        %v2299 = vpop.f32.mrb[0].mxu0
        %v2300 = vadd.f32 %v1993, %v2299
        %v2301 = vpop.f32.mrb[0].mxu0
        %v2302 = vadd.f32 %v1997, %v2301
        %v2303 = vpop.f32.mrb[0].mxu0
        %v2304 = vadd.f32 %v1993, %v2303
        %v2305 = vpop.f32.mrb[0].mxu0
        %v2306 = vadd.f32 %v1997, %v2305
        %2307 = vdwg.mxu0
        %2308 = vst [vmem:[#allocation4] sm:$0xff] %v2197
        %2309 = vst [vmem:[#allocation4 + $0x8] sm:$0xff] %v2199
        %2310 = vst [vmem:[#allocation4 + $0x10] sm:$0xff] %v2270
        %2311 = vst [vmem:[#allocation4 + $0x18] sm:$0xff] %v2272
        %2312 = vst [vmem:[#allocation4 + $0x20] sm:$0xff] %v2201
        %2313 = vst [vmem:[#allocation4 + $0x28] sm:$0xff] %v2203
        %2314 = vst [vmem:[#allocation4 + $0x30] sm:$0xff] %v2274
        %2315 = vst [vmem:[#allocation4 + $0x38] sm:$0xff] %v2276
        %2316 = vst [vmem:[#allocation4 + $0x40] sm:$0xff] %v2207
        %2317 = vst [vmem:[#allocation4 + $0x48] sm:$0xff] %v2209
        %2318 = vst [vmem:[#allocation4 + $0x50] sm:$0xff] %v2280
        %2319 = vst [vmem:[#allocation4 + $0x58] sm:$0xff] %v2282
        %2320 = vst [vmem:[#allocation4 + $0x60] sm:$0xff] %v2211
        %2321 = vst [vmem:[#allocation4 + $0x68] sm:$0xff] %v2213
        %2322 = vst [vmem:[#allocation4 + $0x70] sm:$0xff] %v2284
        %2323 = vst [vmem:[#allocation4 + $0x78] sm:$0xff] %v2286
        %2324 = vst [vmem:[#allocation4 + $0x80] sm:$0xff] %v2217
        %2325 = vst [vmem:[#allocation4 + $0x88] sm:$0xff] %v2219
        %2326 = vst [vmem:[#allocation4 + $0x90] sm:$0xff] %v2290
        %2327 = vst [vmem:[#allocation4 + $0x98] sm:$0xff] %v2292
        %2328 = vst [vmem:[#allocation4 + $0xa0] sm:$0xff] %v2221
        %2329 = vst [vmem:[#allocation4 + $0xa8] sm:$0xff] %v2223
        %2330 = vst [vmem:[#allocation4 + $0xb0] sm:$0xff] %v2294
        %2331 = vst [vmem:[#allocation4 + $0xb8] sm:$0xff] %v2296
        %2332 = vst [vmem:[#allocation4 + $0xc0] sm:$0xff] %v2227
        %2333 = vst [vmem:[#allocation4 + $0xc8] sm:$0xff] %v2229
        %2334 = vst [vmem:[#allocation4 + $0xd0] sm:$0xff] %v2300
        %2335 = vst [vmem:[#allocation4 + $0xd8] sm:$0xff] %v2302
        %2336 = vst [vmem:[#allocation4 + $0xe0] sm:$0xff] %v2231
        %2337 = vst [vmem:[#allocation4 + $0xe8] sm:$0xff] %v2233
        %2338 = vst [vmem:[#allocation4 + $0xf0] sm:$0xff] %v2304
        %2339 = vst [vmem:[#allocation4 + $0xf8] sm:$0xff] %v2306
        %v2340 = vld [vmem:[#allocation11] sm:$0xff]
        %v2341 = vld [vmem:[#allocation11 + $0x8] sm:$0xff]
        %v2342 = vld [vmem:[#allocation11 + $0x10] sm:$0xff]
        %v2343 = vld [vmem:[#allocation11 + $0x18] sm:$0xff]
        %v2344 = vld [vmem:[#allocation11 + $0x20] sm:$0xff]
        %v2345 = vld [vmem:[#allocation11 + $0x28] sm:$0xff]
        %v2346 = vld [vmem:[#allocation11 + $0x30] sm:$0xff]
        %v2347 = vld [vmem:[#allocation11 + $0x38] sm:$0xff]
        %v2348 = vld [vmem:[#allocation11 + $0x40] sm:$0xff]
        %v2349 = vld [vmem:[#allocation11 + $0x48] sm:$0xff]
        %v2350 = vld [vmem:[#allocation11 + $0x50] sm:$0xff]
        %v2351 = vld [vmem:[#allocation11 + $0x58] sm:$0xff]
        %v2352 = vld [vmem:[#allocation11 + $0x60] sm:$0xff]
        %v2353 = vld [vmem:[#allocation11 + $0x68] sm:$0xff]
        %v2354 = vld [vmem:[#allocation11 + $0x70] sm:$0xff]
        %v2355 = vld [vmem:[#allocation11 + $0x78] sm:$0xff]
        %v2356 = vld [vmem:[#allocation11 + $0x80] sm:$0xff]
        %v2357 = vld [vmem:[#allocation11 + $0x88] sm:$0xff]
        %v2358 = vld [vmem:[#allocation11 + $0x90] sm:$0xff]
        %v2359 = vld [vmem:[#allocation11 + $0x98] sm:$0xff]
        %v2360 = vld [vmem:[#allocation11 + $0xa0] sm:$0xff]
        %v2361 = vld [vmem:[#allocation11 + $0xa8] sm:$0xff]
        %v2362 = vld [vmem:[#allocation11 + $0xb0] sm:$0xff]
        %v2363 = vld [vmem:[#allocation11 + $0xb8] sm:$0xff]
        %v2364 = vld [vmem:[#allocation11 + $0xc0] sm:$0xff]
        %v2365 = vld [vmem:[#allocation11 + $0xc8] sm:$0xff]
        %v2366 = vld [vmem:[#allocation11 + $0xd0] sm:$0xff]
        %v2367 = vld [vmem:[#allocation11 + $0xd8] sm:$0xff]
        %v2368 = vld [vmem:[#allocation11 + $0xe0] sm:$0xff]
        %v2369 = vld [vmem:[#allocation11 + $0xe8] sm:$0xff]
        %v2370 = vld [vmem:[#allocation11 + $0xf0] sm:$0xff]
        %v2371 = vld [vmem:[#allocation11 + $0xf8] sm:$0xff]
        %s2372 = scalar_lea.vmem [#allocation2], 8
        %v2373 = vld [vmem:[%s2372] sm:$0xff]
        %s2374 = scalar_lea.vmem [#allocation3], 8
        %v2375 = vld [vmem:[%s2374] sm:$0xff]
        %v2376 = vld [vmem:[#allocation4] sm:$0xff]
        %v2377 = vld [vmem:[#allocation4 + $0x8] sm:$0xff]
        %v2378 = vld [vmem:[#allocation4 + $0x10] sm:$0xff]
        %v2379 = vld [vmem:[#allocation4 + $0x18] sm:$0xff]
        %v2380 = vpack.c.bf16 %v2373, %v2373
        %v2413 = vunpack.c.l.b16 %v2340
        %v2414 = vunpack.c.h.b16 %v2340
        %v2415 = vunpack.c.l.b16 %v2341
        %v2416 = vunpack.c.h.b16 %v2341
        %v2417 = vunpack.c.l.b16 %v2342
        %v2418 = vunpack.c.h.b16 %v2342
        %v2419 = vunpack.c.l.b16 %v2343
        %v2420 = vunpack.c.h.b16 %v2343
        %v2421 = vunpack.c.l.b16 %v2344
        %v2422 = vunpack.c.h.b16 %v2344
        %v2423 = vunpack.c.l.b16 %v2345
        %v2424 = vunpack.c.h.b16 %v2345
        %v2425 = vunpack.c.l.b16 %v2346
        %v2426 = vunpack.c.h.b16 %v2346
        %v2427 = vunpack.c.l.b16 %v2347
        %v2428 = vunpack.c.h.b16 %v2347
        %v2429 = vunpack.c.l.b16 %v2348
        %v2430 = vunpack.c.h.b16 %v2348
        %v2431 = vunpack.c.l.b16 %v2349
        %v2432 = vunpack.c.h.b16 %v2349
        %v2433 = vunpack.c.l.b16 %v2350
        %v2434 = vunpack.c.h.b16 %v2350
        %v2435 = vunpack.c.l.b16 %v2351
        %v2436 = vunpack.c.h.b16 %v2351
        %v2437 = vunpack.c.l.b16 %v2352
        %v2438 = vunpack.c.h.b16 %v2352
        %v2439 = vunpack.c.l.b16 %v2353
        %v2440 = vunpack.c.h.b16 %v2353
        %v2441 = vunpack.c.l.b16 %v2354
        %v2442 = vunpack.c.h.b16 %v2354
        %v2443 = vunpack.c.l.b16 %v2355
        %v2444 = vunpack.c.h.b16 %v2355
        %v2445 = vunpack.c.l.b16 %v2356
        %v2446 = vunpack.c.h.b16 %v2356
        %v2447 = vunpack.c.l.b16 %v2357
        %v2448 = vunpack.c.h.b16 %v2357
        %v2449 = vunpack.c.l.b16 %v2358
        %v2450 = vunpack.c.h.b16 %v2358
        %v2451 = vunpack.c.l.b16 %v2359
        %v2452 = vunpack.c.h.b16 %v2359
        %v2453 = vunpack.c.l.b16 %v2360
        %v2454 = vunpack.c.h.b16 %v2360
        %v2455 = vunpack.c.l.b16 %v2361
        %v2456 = vunpack.c.h.b16 %v2361
        %v2457 = vunpack.c.l.b16 %v2362
        %v2458 = vunpack.c.h.b16 %v2362
        %v2459 = vunpack.c.l.b16 %v2363
        %v2460 = vunpack.c.h.b16 %v2363
        %v2461 = vunpack.c.l.b16 %v2364
        %v2462 = vunpack.c.h.b16 %v2364
        %v2463 = vunpack.c.l.b16 %v2365
        %v2464 = vunpack.c.h.b16 %v2365
        %v2465 = vunpack.c.l.b16 %v2366
        %v2466 = vunpack.c.h.b16 %v2366
        %v2467 = vunpack.c.l.b16 %v2367
        %v2468 = vunpack.c.h.b16 %v2367
        %v2469 = vunpack.c.l.b16 %v2368
        %v2470 = vunpack.c.h.b16 %v2368
        %v2471 = vunpack.c.l.b16 %v2369
        %v2472 = vunpack.c.h.b16 %v2369
        %v2473 = vunpack.c.l.b16 %v2370
        %v2474 = vunpack.c.h.b16 %v2370
        %v2475 = vunpack.c.l.b16 %v2371
        %v2476 = vunpack.c.h.b16 %v2371
        %v2477 = vpack.c.b16 %v2417, %v2413
        %v2478 = vpack.c.b16 %v2418, %v2414
        %v2479 = vpack.c.b16 %v2419, %v2415
        %v2480 = vpack.c.b16 %v2420, %v2416
        %v2481 = vpack.c.b16 %v2425, %v2421
        %v2482 = vpack.c.b16 %v2426, %v2422
        %v2483 = vpack.c.b16 %v2427, %v2423
        %v2484 = vpack.c.b16 %v2428, %v2424
        %v2485 = vpack.c.b16 %v2433, %v2429
        %v2486 = vpack.c.b16 %v2434, %v2430
        %v2487 = vpack.c.b16 %v2435, %v2431
        %v2488 = vpack.c.b16 %v2436, %v2432
        %v2489 = vpack.c.b16 %v2441, %v2437
        %v2490 = vpack.c.b16 %v2442, %v2438
        %v2491 = vpack.c.b16 %v2443, %v2439
        %v2492 = vpack.c.b16 %v2444, %v2440
        %v2493 = vpack.c.b16 %v2449, %v2445
        %v2494 = vpack.c.b16 %v2450, %v2446
        %v2495 = vpack.c.b16 %v2451, %v2447
        %v2496 = vpack.c.b16 %v2452, %v2448
        %v2497 = vpack.c.b16 %v2457, %v2453
        %v2498 = vpack.c.b16 %v2458, %v2454
        %v2499 = vpack.c.b16 %v2459, %v2455
        %v2500 = vpack.c.b16 %v2460, %v2456
        %v2501 = vpack.c.b16 %v2465, %v2461
        %v2502 = vpack.c.b16 %v2466, %v2462
        %v2503 = vpack.c.b16 %v2467, %v2463
        %v2504 = vpack.c.b16 %v2468, %v2464
        %v2505 = vpack.c.b16 %v2473, %v2469
        %v2506 = vpack.c.b16 %v2474, %v2470
        %v2507 = vpack.c.b16 %v2475, %v2471
        %v2508 = vpack.c.b16 %v2476, %v2472
        %2541 = vmatprep.subr.bf16.mxu0 %v2478
        %2542 = vmatpush1.bf16.msra.mxu0 %v2477
        %2543 = vmatprep.subr.bf16.mxu0 %v2482
        %2544 = vmatpush1.bf16.msra.mxu0 %v2481
        %2545 = vmatprep.subr.bf16.mxu0 %v2486
        %2546 = vmatpush1.bf16.msra.mxu0 %v2485
        %2547 = vmatprep.subr.bf16.mxu0 %v2490
        %2548 = vmatpush1.bf16.msra.mxu0 %v2489
        %2549 = vmatprep.subr.bf16.mxu0 %v2494
        %2550 = vmatpush1.bf16.msra.mxu0 %v2493
        %2551 = vmatprep.subr.bf16.mxu0 %v2498
        %2552 = vmatpush1.bf16.msra.mxu0 %v2497
        %2553 = vmatprep.subr.bf16.mxu0 %v2502
        %2554 = vmatpush1.bf16.msra.mxu0 %v2501
        %2555 = vmatprep.subr.bf16.mxu0 %v2506
        %2556 = vmatpush1.bf16.msra.mxu0 %v2505
        %2557 = vmatprep.subr.bf16.mxu0 0
        %2558 = vmatpush1.bf16.msra.mxu0 0
        %2559 = vmatprep.subr.bf16.mxu0 0
        %2560 = vmatpush1.bf16.msra.mxu0 0
        %2561 = vmatprep.subr.bf16.mxu0 0
        %2562 = vmatpush1.bf16.msra.mxu0 0
        %2563 = vmatprep.subr.bf16.mxu0 0
        %2564 = vmatpush1.bf16.msra.mxu0 0
        %2565 = vmatprep.subr.bf16.mxu0 0
        %2566 = vmatpush1.bf16.msra.mxu0 0
        %2567 = vmatprep.subr.bf16.mxu0 0
        %2568 = vmatpush1.bf16.msra.mxu0 0
        %2569 = vmatprep.subr.bf16.mxu0 0
        %2570 = vmatpush1.bf16.msra.mxu0 0
        %2571 = vmatprep.subr.bf16.mxu0 0
        %2572 = vmatpush1.bf16.msra.mxu0 0
        %2573 = vmatprep.mubr.bf16.mxu0 0
        %2574 = vmatmul.mubr.bf16.gmra.mrb[0].mxu0 %v2380
        %v2575 = vpop.f32.mrb[0].mxu0
        %v2576 = vadd.f32 0.0, %v2575
        %v2577 = vpop.f32.mrb[0].mxu0
        %v2578 = vadd.f32 0.0, %v2577
        %v2579 = vpop.f32.mrb[0].mxu0
        %v2580 = vpop.f32.mrb[0].mxu0
        %2581 = vdwg.mxu0
        %2582 = vmatprep.subr.bf16.mxu0 %v2480
        %2583 = vmatpush1.bf16.msra.mxu0 %v2479
        %2584 = vmatprep.subr.bf16.mxu0 %v2484
        %2585 = vmatpush1.bf16.msra.mxu0 %v2483
        %2586 = vmatprep.subr.bf16.mxu0 %v2488
        %2587 = vmatpush1.bf16.msra.mxu0 %v2487
        %2588 = vmatprep.subr.bf16.mxu0 %v2492
        %2589 = vmatpush1.bf16.msra.mxu0 %v2491
        %2590 = vmatprep.subr.bf16.mxu0 %v2496
        %2591 = vmatpush1.bf16.msra.mxu0 %v2495
        %2592 = vmatprep.subr.bf16.mxu0 %v2500
        %2593 = vmatpush1.bf16.msra.mxu0 %v2499
        %2594 = vmatprep.subr.bf16.mxu0 %v2504
        %2595 = vmatpush1.bf16.msra.mxu0 %v2503
        %2596 = vmatprep.subr.bf16.mxu0 %v2508
        %2597 = vmatpush1.bf16.msra.mxu0 %v2507
        %2598 = vmatprep.subr.bf16.mxu0 0
        %2599 = vmatpush1.bf16.msra.mxu0 0
        %2600 = vmatprep.subr.bf16.mxu0 0
        %2601 = vmatpush1.bf16.msra.mxu0 0
        %2602 = vmatprep.subr.bf16.mxu0 0
        %2603 = vmatpush1.bf16.msra.mxu0 0
        %2604 = vmatprep.subr.bf16.mxu0 0
        %2605 = vmatpush1.bf16.msra.mxu0 0
        %2606 = vmatprep.subr.bf16.mxu0 0
        %2607 = vmatpush1.bf16.msra.mxu0 0
        %2608 = vmatprep.subr.bf16.mxu0 0
        %2609 = vmatpush1.bf16.msra.mxu0 0
        %2610 = vmatprep.subr.bf16.mxu0 0
        %2611 = vmatpush1.bf16.msra.mxu0 0
        %2612 = vmatprep.subr.bf16.mxu0 0
        %2613 = vmatpush1.bf16.msra.mxu0 0
        %2614 = vmatprep.mubr.bf16.mxu0 0
        %2615 = vmatmul.mubr.bf16.gmra.mrb[0].mxu0 %v2380
        %v2616 = vpop.f32.mrb[0].mxu0
        %v2617 = vadd.f32 0.0, %v2616
        %v2618 = vpop.f32.mrb[0].mxu0
        %v2619 = vadd.f32 0.0, %v2618
        %v2620 = vpop.f32.mrb[0].mxu0
        %v2621 = vpop.f32.mrb[0].mxu0
        %2622 = vdwg.mxu0
        %v2623 = vadd.f32 %v2376, %v2576
        %v2624 = vadd.f32 %v2377, %v2578
        %v2625 = vadd.f32 %v2378, %v2617
        %v2626 = vadd.f32 %v2379, %v2619
        %v2627 = vxor.u32 %v2623, 2147483648
        %v2628 = vxor.u32 %v2624, 2147483648
        %v2629 = vxor.u32 %v2625, 2147483648
        %v2630 = vmul.f32 %v2627, 1.442695
        %v2631 = vpow.pop %v2630
        %v2632 = vmul.f32 %v2628, 1.442695
        %v2633 = vpow.pop %v2632
        %v2634 = vmul.f32 %v2629, 1.442695
        %v2635 = vpow.pop %v2634
        %v2636 = vadd.f32 %v2631, 1.0
        %v2637 = vadd.f32 %v2633, 1.0
        %v2638 = vadd.f32 %v2635, 1.0
        %v2639 = vrcp.pop %v2636
        %v2640 = vmul.f32 1.0, %v2639
        %v2641 = vrcp.pop %v2637
        %v2642 = vmul.f32 1.0, %v2641
        %v2643 = vrcp.pop %v2638
        %v2644 = vmul.f32 1.0, %v2643
        %v2645 = vtanh.pop %v2626
        %v2646 = vmul.f32 %v2642, %v2375
        %v2647 = vmul.f32 %v2640, %v2645
        %v2648 = vadd.f32 %v2646, %v2647
        %v2649 = vtanh.pop %v2648
        %v2650 = vmul.f32 %v2644, %v2649
        %2651 = vst [vmem:[%s396] sm:$0xff] %v2650
        %v2652 = vld [vmem:[#allocation4 + $0x20] sm:$0xff]
        %v2653 = vld [vmem:[#allocation4 + $0x28] sm:$0xff]
        %v2654 = vld [vmem:[#allocation4 + $0x30] sm:$0xff]
        %v2655 = vld [vmem:[#allocation4 + $0x38] sm:$0xff]
        %v2656 = vpack.c.bf16 %v2650, %v2650
        %2657 = vmatprep.subr.bf16.mxu0 %v2478
        %2658 = vmatpush1.bf16.msra.mxu0 %v2477
        %2659 = vmatprep.subr.bf16.mxu0 %v2482
        %2660 = vmatpush1.bf16.msra.mxu0 %v2481
        %2661 = vmatprep.subr.bf16.mxu0 %v2486
        %2662 = vmatpush1.bf16.msra.mxu0 %v2485
        %2663 = vmatprep.subr.bf16.mxu0 %v2490
        %2664 = vmatpush1.bf16.msra.mxu0 %v2489
        %2665 = vmatprep.subr.bf16.mxu0 %v2494
        %2666 = vmatpush1.bf16.msra.mxu0 %v2493
        %2667 = vmatprep.subr.bf16.mxu0 %v2498
        %2668 = vmatpush1.bf16.msra.mxu0 %v2497
        %2669 = vmatprep.subr.bf16.mxu0 %v2502
        %2670 = vmatpush1.bf16.msra.mxu0 %v2501
        %2671 = vmatprep.subr.bf16.mxu0 %v2506
        %2672 = vmatpush1.bf16.msra.mxu0 %v2505
        %2673 = vmatprep.subr.bf16.mxu0 0
        %2674 = vmatpush1.bf16.msra.mxu0 0
        %2675 = vmatprep.subr.bf16.mxu0 0
        %2676 = vmatpush1.bf16.msra.mxu0 0
        %2677 = vmatprep.subr.bf16.mxu0 0
        %2678 = vmatpush1.bf16.msra.mxu0 0
        %2679 = vmatprep.subr.bf16.mxu0 0
        %2680 = vmatpush1.bf16.msra.mxu0 0
        %2681 = vmatprep.subr.bf16.mxu0 0
        %2682 = vmatpush1.bf16.msra.mxu0 0
        %2683 = vmatprep.subr.bf16.mxu0 0
        %2684 = vmatpush1.bf16.msra.mxu0 0
        %2685 = vmatprep.subr.bf16.mxu0 0
        %2686 = vmatpush1.bf16.msra.mxu0 0
        %2687 = vmatprep.subr.bf16.mxu0 0
        %2688 = vmatpush1.bf16.msra.mxu0 0
        %2689 = vmatprep.mubr.bf16.mxu0 0
        %2690 = vmatmul.mubr.bf16.gmra.mrb[0].mxu0 %v2656
        %v2691 = vpop.f32.mrb[0].mxu0
        %v2692 = vadd.f32 0.0, %v2691
        %v2693 = vpop.f32.mrb[0].mxu0
        %v2694 = vadd.f32 0.0, %v2693
        %v2695 = vpop.f32.mrb[0].mxu0
        %v2696 = vpop.f32.mrb[0].mxu0
        %2697 = vdwg.mxu0
        %2698 = vmatprep.subr.bf16.mxu0 %v2480
        %2699 = vmatpush1.bf16.msra.mxu0 %v2479
        %2700 = vmatprep.subr.bf16.mxu0 %v2484
        %2701 = vmatpush1.bf16.msra.mxu0 %v2483
        %2702 = vmatprep.subr.bf16.mxu0 %v2488
        %2703 = vmatpush1.bf16.msra.mxu0 %v2487
        %2704 = vmatprep.subr.bf16.mxu0 %v2492
        %2705 = vmatpush1.bf16.msra.mxu0 %v2491
        %2706 = vmatprep.subr.bf16.mxu0 %v2496
        %2707 = vmatpush1.bf16.msra.mxu0 %v2495
        %2708 = vmatprep.subr.bf16.mxu0 %v2500
        %2709 = vmatpush1.bf16.msra.mxu0 %v2499
        %2710 = vmatprep.subr.bf16.mxu0 %v2504
        %2711 = vmatpush1.bf16.msra.mxu0 %v2503
        %2712 = vmatprep.subr.bf16.mxu0 %v2508
        %2713 = vmatpush1.bf16.msra.mxu0 %v2507
        %2714 = vmatprep.subr.bf16.mxu0 0
        %2715 = vmatpush1.bf16.msra.mxu0 0
        %2716 = vmatprep.subr.bf16.mxu0 0
        %2717 = vmatpush1.bf16.msra.mxu0 0
        %2718 = vmatprep.subr.bf16.mxu0 0
        %2719 = vmatpush1.bf16.msra.mxu0 0
        %2720 = vmatprep.subr.bf16.mxu0 0
        %2721 = vmatpush1.bf16.msra.mxu0 0
        %2722 = vmatprep.subr.bf16.mxu0 0
        %2723 = vmatpush1.bf16.msra.mxu0 0
        %2724 = vmatprep.subr.bf16.mxu0 0
        %2725 = vmatpush1.bf16.msra.mxu0 0
        %2726 = vmatprep.subr.bf16.mxu0 0
        %2727 = vmatpush1.bf16.msra.mxu0 0
        %2728 = vmatprep.subr.bf16.mxu0 0
        %2729 = vmatpush1.bf16.msra.mxu0 0
        %2730 = vmatprep.mubr.bf16.mxu0 0
        %2731 = vmatmul.mubr.bf16.gmra.mrb[0].mxu0 %v2656
        %v2732 = vpop.f32.mrb[0].mxu0
        %v2733 = vadd.f32 0.0, %v2732
        %v2734 = vpop.f32.mrb[0].mxu0
        %v2735 = vadd.f32 0.0, %v2734
        %v2736 = vpop.f32.mrb[0].mxu0
        %v2737 = vpop.f32.mrb[0].mxu0
        %2738 = vdwg.mxu0
        %v2739 = vadd.f32 %v2652, %v2692
        %v2740 = vadd.f32 %v2653, %v2694
        %v2741 = vadd.f32 %v2654, %v2733
        %v2742 = vadd.f32 %v2655, %v2735
        %v2743 = vxor.u32 %v2739, 2147483648
        %v2744 = vxor.u32 %v2740, 2147483648
        %v2745 = vxor.u32 %v2741, 2147483648
        %v2746 = vmul.f32 %v2743, 1.442695
        %v2747 = vpow.pop %v2746
        %v2748 = vmul.f32 %v2744, 1.442695
        %v2749 = vpow.pop %v2748
        %v2750 = vmul.f32 %v2745, 1.442695
        %v2751 = vpow.pop %v2750
        %v2752 = vadd.f32 %v2747, 1.0
        %v2753 = vadd.f32 %v2749, 1.0
        %v2754 = vadd.f32 %v2751, 1.0
        %v2755 = vrcp.pop %v2752
        %v2756 = vmul.f32 1.0, %v2755
        %v2757 = vrcp.pop %v2753
        %v2758 = vmul.f32 1.0, %v2757
        %v2759 = vrcp.pop %v2754
        %v2760 = vmul.f32 1.0, %v2759
        %v2761 = vtanh.pop %v2742
        %v2762 = vmul.f32 %v2758, %v2648
        %v2763 = vmul.f32 %v2756, %v2761
        %v2764 = vadd.f32 %v2762, %v2763
        %v2765 = vtanh.pop %v2764
        %v2766 = vmul.f32 %v2760, %v2765
        %s2767 = scalar_lea.vmem %s396, 8 [#allocation18]
        %2768 = vst [vmem:[%s2767] sm:$0xff] %v2766
        %v2769 = vld [vmem:[#allocation4 + $0x40] sm:$0xff]
        %v2770 = vld [vmem:[#allocation4 + $0x48] sm:$0xff]
        %v2771 = vld [vmem:[#allocation4 + $0x50] sm:$0xff]
        %v2772 = vld [vmem:[#allocation4 + $0x58] sm:$0xff]
        %v2773 = vpack.c.bf16 %v2766, %v2766
        %2774 = vmatprep.subr.bf16.mxu0 %v2478
        %2775 = vmatpush1.bf16.msra.mxu0 %v2477
        %2776 = vmatprep.subr.bf16.mxu0 %v2482
        %2777 = vmatpush1.bf16.msra.mxu0 %v2481
        %2778 = vmatprep.subr.bf16.mxu0 %v2486
        %2779 = vmatpush1.bf16.msra.mxu0 %v2485
        %2780 = vmatprep.subr.bf16.mxu0 %v2490
        %2781 = vmatpush1.bf16.msra.mxu0 %v2489
        %2782 = vmatprep.subr.bf16.mxu0 %v2494
        %2783 = vmatpush1.bf16.msra.mxu0 %v2493
        %2784 = vmatprep.subr.bf16.mxu0 %v2498
        %2785 = vmatpush1.bf16.msra.mxu0 %v2497
        %2786 = vmatprep.subr.bf16.mxu0 %v2502
        %2787 = vmatpush1.bf16.msra.mxu0 %v2501
        %2788 = vmatprep.subr.bf16.mxu0 %v2506
        %2789 = vmatpush1.bf16.msra.mxu0 %v2505
        %2790 = vmatprep.subr.bf16.mxu0 0
        %2791 = vmatpush1.bf16.msra.mxu0 0
        %2792 = vmatprep.subr.bf16.mxu0 0
        %2793 = vmatpush1.bf16.msra.mxu0 0
        %2794 = vmatprep.subr.bf16.mxu0 0
        %2795 = vmatpush1.bf16.msra.mxu0 0
        %2796 = vmatprep.subr.bf16.mxu0 0
        %2797 = vmatpush1.bf16.msra.mxu0 0
        %2798 = vmatprep.subr.bf16.mxu0 0
        %2799 = vmatpush1.bf16.msra.mxu0 0
        %2800 = vmatprep.subr.bf16.mxu0 0
        %2801 = vmatpush1.bf16.msra.mxu0 0
        %2802 = vmatprep.subr.bf16.mxu0 0
        %2803 = vmatpush1.bf16.msra.mxu0 0
        %2804 = vmatprep.subr.bf16.mxu0 0
        %2805 = vmatpush1.bf16.msra.mxu0 0
        %2806 = vmatprep.mubr.bf16.mxu0 0
        %2807 = vmatmul.mubr.bf16.gmra.mrb[0].mxu0 %v2773
        %v2808 = vpop.f32.mrb[0].mxu0
        %v2809 = vadd.f32 0.0, %v2808
        %v2810 = vpop.f32.mrb[0].mxu0
        %v2811 = vadd.f32 0.0, %v2810
        %v2812 = vpop.f32.mrb[0].mxu0
        %v2813 = vpop.f32.mrb[0].mxu0
        %2814 = vdwg.mxu0
        %2815 = vmatprep.subr.bf16.mxu0 %v2480
        %2816 = vmatpush1.bf16.msra.mxu0 %v2479
        %2817 = vmatprep.subr.bf16.mxu0 %v2484
        %2818 = vmatpush1.bf16.msra.mxu0 %v2483
        %2819 = vmatprep.subr.bf16.mxu0 %v2488
        %2820 = vmatpush1.bf16.msra.mxu0 %v2487
        %2821 = vmatprep.subr.bf16.mxu0 %v2492
        %2822 = vmatpush1.bf16.msra.mxu0 %v2491
        %2823 = vmatprep.subr.bf16.mxu0 %v2496
        %2824 = vmatpush1.bf16.msra.mxu0 %v2495
        %2825 = vmatprep.subr.bf16.mxu0 %v2500
        %2826 = vmatpush1.bf16.msra.mxu0 %v2499
        %2827 = vmatprep.subr.bf16.mxu0 %v2504
        %2828 = vmatpush1.bf16.msra.mxu0 %v2503
        %2829 = vmatprep.subr.bf16.mxu0 %v2508
        %2830 = vmatpush1.bf16.msra.mxu0 %v2507
        %2831 = vmatprep.subr.bf16.mxu0 0
        %2832 = vmatpush1.bf16.msra.mxu0 0
        %2833 = vmatprep.subr.bf16.mxu0 0
        %2834 = vmatpush1.bf16.msra.mxu0 0
        %2835 = vmatprep.subr.bf16.mxu0 0
        %2836 = vmatpush1.bf16.msra.mxu0 0
        %2837 = vmatprep.subr.bf16.mxu0 0
        %2838 = vmatpush1.bf16.msra.mxu0 0
        %2839 = vmatprep.subr.bf16.mxu0 0
        %2840 = vmatpush1.bf16.msra.mxu0 0
        %2841 = vmatprep.subr.bf16.mxu0 0
        %2842 = vmatpush1.bf16.msra.mxu0 0
        %2843 = vmatprep.subr.bf16.mxu0 0
        %2844 = vmatpush1.bf16.msra.mxu0 0
        %2845 = vmatprep.subr.bf16.mxu0 0
        %2846 = vmatpush1.bf16.msra.mxu0 0
        %2847 = vmatprep.mubr.bf16.mxu0 0
        %2848 = vmatmul.mubr.bf16.gmra.mrb[0].mxu0 %v2773
        %v2849 = vpop.f32.mrb[0].mxu0
        %v2850 = vadd.f32 0.0, %v2849
        %v2851 = vpop.f32.mrb[0].mxu0
        %v2852 = vadd.f32 0.0, %v2851
        %v2853 = vpop.f32.mrb[0].mxu0
        %v2854 = vpop.f32.mrb[0].mxu0
        %2855 = vdwg.mxu0
        %v2856 = vadd.f32 %v2769, %v2809
        %v2857 = vadd.f32 %v2770, %v2811
        %v2858 = vadd.f32 %v2771, %v2850
        %v2859 = vadd.f32 %v2772, %v2852
        %v2860 = vxor.u32 %v2856, 2147483648
        %v2861 = vxor.u32 %v2857, 2147483648
        %v2862 = vxor.u32 %v2858, 2147483648
        %v2863 = vmul.f32 %v2860, 1.442695
        %v2864 = vpow.pop %v2863
        %v2865 = vmul.f32 %v2861, 1.442695
        %v2866 = vpow.pop %v2865
        %v2867 = vmul.f32 %v2862, 1.442695
        %v2868 = vpow.pop %v2867
        %v2869 = vadd.f32 %v2864, 1.0
        %v2870 = vadd.f32 %v2866, 1.0
        %v2871 = vadd.f32 %v2868, 1.0
        %v2872 = vrcp.pop %v2869
        %v2873 = vmul.f32 1.0, %v2872
        %v2874 = vrcp.pop %v2870
        %v2875 = vmul.f32 1.0, %v2874
        %v2876 = vrcp.pop %v2871
        %v2877 = vmul.f32 1.0, %v2876
        %v2878 = vtanh.pop %v2859
        %v2879 = vmul.f32 %v2875, %v2764
        %v2880 = vmul.f32 %v2873, %v2878
        %v2881 = vadd.f32 %v2879, %v2880
        %v2882 = vtanh.pop %v2881
        %v2883 = vmul.f32 %v2877, %v2882
        %s2884 = scalar_lea.vmem %s396, 16 [#allocation18]
        %2885 = vst [vmem:[%s2884] sm:$0xff] %v2883
        %v2886 = vld [vmem:[#allocation4 + $0x60] sm:$0xff]
        %v2887 = vld [vmem:[#allocation4 + $0x68] sm:$0xff]
        %v2888 = vld [vmem:[#allocation4 + $0x70] sm:$0xff]
        %v2889 = vld [vmem:[#allocation4 + $0x78] sm:$0xff]
        %v2890 = vpack.c.bf16 %v2883, %v2883
        %2891 = vmatprep.subr.bf16.mxu0 %v2478
        %2892 = vmatpush1.bf16.msra.mxu0 %v2477
        %2893 = vmatprep.subr.bf16.mxu0 %v2482
        %2894 = vmatpush1.bf16.msra.mxu0 %v2481
        %2895 = vmatprep.subr.bf16.mxu0 %v2486
        %2896 = vmatpush1.bf16.msra.mxu0 %v2485
        %2897 = vmatprep.subr.bf16.mxu0 %v2490
        %2898 = vmatpush1.bf16.msra.mxu0 %v2489
        %2899 = vmatprep.subr.bf16.mxu0 %v2494
        %2900 = vmatpush1.bf16.msra.mxu0 %v2493
        %2901 = vmatprep.subr.bf16.mxu0 %v2498
        %2902 = vmatpush1.bf16.msra.mxu0 %v2497
        %2903 = vmatprep.subr.bf16.mxu0 %v2502
        %2904 = vmatpush1.bf16.msra.mxu0 %v2501
        %2905 = vmatprep.subr.bf16.mxu0 %v2506
        %2906 = vmatpush1.bf16.msra.mxu0 %v2505
        %2907 = vmatprep.subr.bf16.mxu0 0
        %2908 = vmatpush1.bf16.msra.mxu0 0
        %2909 = vmatprep.subr.bf16.mxu0 0
        %2910 = vmatpush1.bf16.msra.mxu0 0
        %2911 = vmatprep.subr.bf16.mxu0 0
        %2912 = vmatpush1.bf16.msra.mxu0 0
        %2913 = vmatprep.subr.bf16.mxu0 0
        %2914 = vmatpush1.bf16.msra.mxu0 0
        %2915 = vmatprep.subr.bf16.mxu0 0
        %2916 = vmatpush1.bf16.msra.mxu0 0
        %2917 = vmatprep.subr.bf16.mxu0 0
        %2918 = vmatpush1.bf16.msra.mxu0 0
        %2919 = vmatprep.subr.bf16.mxu0 0
        %2920 = vmatpush1.bf16.msra.mxu0 0
        %2921 = vmatprep.subr.bf16.mxu0 0
        %2922 = vmatpush1.bf16.msra.mxu0 0
        %2923 = vmatprep.mubr.bf16.mxu0 0
        %2924 = vmatmul.mubr.bf16.gmra.mrb[0].mxu0 %v2890
        %v2925 = vpop.f32.mrb[0].mxu0
        %v2926 = vadd.f32 0.0, %v2925
        %v2927 = vpop.f32.mrb[0].mxu0
        %v2928 = vadd.f32 0.0, %v2927
        %v2929 = vpop.f32.mrb[0].mxu0
        %v2930 = vpop.f32.mrb[0].mxu0
        %2931 = vdwg.mxu0
        %2932 = vmatprep.subr.bf16.mxu0 %v2480
        %2933 = vmatpush1.bf16.msra.mxu0 %v2479
        %2934 = vmatprep.subr.bf16.mxu0 %v2484
        %2935 = vmatpush1.bf16.msra.mxu0 %v2483
        %2936 = vmatprep.subr.bf16.mxu0 %v2488
        %2937 = vmatpush1.bf16.msra.mxu0 %v2487
        %2938 = vmatprep.subr.bf16.mxu0 %v2492
        %2939 = vmatpush1.bf16.msra.mxu0 %v2491
        %2940 = vmatprep.subr.bf16.mxu0 %v2496
        %2941 = vmatpush1.bf16.msra.mxu0 %v2495
        %2942 = vmatprep.subr.bf16.mxu0 %v2500
        %2943 = vmatpush1.bf16.msra.mxu0 %v2499
        %2944 = vmatprep.subr.bf16.mxu0 %v2504
        %2945 = vmatpush1.bf16.msra.mxu0 %v2503
        %2946 = vmatprep.subr.bf16.mxu0 %v2508
        %2947 = vmatpush1.bf16.msra.mxu0 %v2507
        %2948 = vmatprep.subr.bf16.mxu0 0
        %2949 = vmatpush1.bf16.msra.mxu0 0
        %2950 = vmatprep.subr.bf16.mxu0 0
        %2951 = vmatpush1.bf16.msra.mxu0 0
        %2952 = vmatprep.subr.bf16.mxu0 0
        %2953 = vmatpush1.bf16.msra.mxu0 0
        %2954 = vmatprep.subr.bf16.mxu0 0
        %2955 = vmatpush1.bf16.msra.mxu0 0
        %2956 = vmatprep.subr.bf16.mxu0 0
        %2957 = vmatpush1.bf16.msra.mxu0 0
        %2958 = vmatprep.subr.bf16.mxu0 0
        %2959 = vmatpush1.bf16.msra.mxu0 0
        %2960 = vmatprep.subr.bf16.mxu0 0
        %2961 = vmatpush1.bf16.msra.mxu0 0
        %2962 = vmatprep.subr.bf16.mxu0 0
        %2963 = vmatpush1.bf16.msra.mxu0 0
        %2964 = vmatprep.mubr.bf16.mxu0 0
        %2965 = vmatmul.mubr.bf16.gmra.mrb[0].mxu0 %v2890
        %v2966 = vpop.f32.mrb[0].mxu0
        %v2967 = vadd.f32 0.0, %v2966
        %v2968 = vpop.f32.mrb[0].mxu0
        %v2969 = vadd.f32 0.0, %v2968
        %v2970 = vpop.f32.mrb[0].mxu0
        %v2971 = vpop.f32.mrb[0].mxu0
        %2972 = vdwg.mxu0
        %v2973 = vadd.f32 %v2886, %v2926
        %v2974 = vadd.f32 %v2887, %v2928
        %v2975 = vadd.f32 %v2888, %v2967
        %v2976 = vadd.f32 %v2889, %v2969
        %v2977 = vxor.u32 %v2973, 2147483648
        %v2978 = vxor.u32 %v2974, 2147483648
        %v2979 = vxor.u32 %v2975, 2147483648
        %v2980 = vmul.f32 %v2977, 1.442695
        %v2981 = vpow.pop %v2980
        %v2982 = vmul.f32 %v2978, 1.442695
        %v2983 = vpow.pop %v2982
        %v2984 = vmul.f32 %v2979, 1.442695
        %v2985 = vpow.pop %v2984
        %v2986 = vadd.f32 %v2981, 1.0
        %v2987 = vadd.f32 %v2983, 1.0
        %v2988 = vadd.f32 %v2985, 1.0
        %v2989 = vrcp.pop %v2986
        %v2990 = vmul.f32 1.0, %v2989
        %v2991 = vrcp.pop %v2987
        %v2992 = vmul.f32 1.0, %v2991
        %v2993 = vrcp.pop %v2988
        %v2994 = vmul.f32 1.0, %v2993
        %v2995 = vtanh.pop %v2976
        %v2996 = vmul.f32 %v2992, %v2881
        %v2997 = vmul.f32 %v2990, %v2995
        %v2998 = vadd.f32 %v2996, %v2997
        %v2999 = vtanh.pop %v2998
        %v3000 = vmul.f32 %v2994, %v2999
        %s3001 = scalar_lea.vmem %s396, 24 [#allocation18]
        %3002 = vst [vmem:[%s3001] sm:$0xff] %v3000
        %v3003 = vld [vmem:[#allocation4 + $0x80] sm:$0xff]
        %v3004 = vld [vmem:[#allocation4 + $0x88] sm:$0xff]
        %v3005 = vld [vmem:[#allocation4 + $0x90] sm:$0xff]
        %v3006 = vld [vmem:[#allocation4 + $0x98] sm:$0xff]
        %v3007 = vpack.c.bf16 %v3000, %v3000
        %3008 = vmatprep.subr.bf16.mxu0 %v2478
        %3009 = vmatpush1.bf16.msra.mxu0 %v2477
        %3010 = vmatprep.subr.bf16.mxu0 %v2482
        %3011 = vmatpush1.bf16.msra.mxu0 %v2481
        %3012 = vmatprep.subr.bf16.mxu0 %v2486
        %3013 = vmatpush1.bf16.msra.mxu0 %v2485
        %3014 = vmatprep.subr.bf16.mxu0 %v2490
        %3015 = vmatpush1.bf16.msra.mxu0 %v2489
        %3016 = vmatprep.subr.bf16.mxu0 %v2494
        %3017 = vmatpush1.bf16.msra.mxu0 %v2493
        %3018 = vmatprep.subr.bf16.mxu0 %v2498
        %3019 = vmatpush1.bf16.msra.mxu0 %v2497
        %3020 = vmatprep.subr.bf16.mxu0 %v2502
        %3021 = vmatpush1.bf16.msra.mxu0 %v2501
        %3022 = vmatprep.subr.bf16.mxu0 %v2506
        %3023 = vmatpush1.bf16.msra.mxu0 %v2505
        %3024 = vmatprep.subr.bf16.mxu0 0
        %3025 = vmatpush1.bf16.msra.mxu0 0
        %3026 = vmatprep.subr.bf16.mxu0 0
        %3027 = vmatpush1.bf16.msra.mxu0 0
        %3028 = vmatprep.subr.bf16.mxu0 0
        %3029 = vmatpush1.bf16.msra.mxu0 0
        %3030 = vmatprep.subr.bf16.mxu0 0
        %3031 = vmatpush1.bf16.msra.mxu0 0
        %3032 = vmatprep.subr.bf16.mxu0 0
        %3033 = vmatpush1.bf16.msra.mxu0 0
        %3034 = vmatprep.subr.bf16.mxu0 0
        %3035 = vmatpush1.bf16.msra.mxu0 0
        %3036 = vmatprep.subr.bf16.mxu0 0
        %3037 = vmatpush1.bf16.msra.mxu0 0
        %3038 = vmatprep.subr.bf16.mxu0 0
        %3039 = vmatpush1.bf16.msra.mxu0 0
        %3040 = vmatprep.mubr.bf16.mxu0 0
        %3041 = vmatmul.mubr.bf16.gmra.mrb[0].mxu0 %v3007
        %v3042 = vpop.f32.mrb[0].mxu0
        %v3043 = vadd.f32 0.0, %v3042
        %v3044 = vpop.f32.mrb[0].mxu0
        %v3045 = vadd.f32 0.0, %v3044
        %v3046 = vpop.f32.mrb[0].mxu0
        %v3047 = vpop.f32.mrb[0].mxu0
        %3048 = vdwg.mxu0
        %3049 = vmatprep.subr.bf16.mxu0 %v2480
        %3050 = vmatpush1.bf16.msra.mxu0 %v2479
        %3051 = vmatprep.subr.bf16.mxu0 %v2484
        %3052 = vmatpush1.bf16.msra.mxu0 %v2483
        %3053 = vmatprep.subr.bf16.mxu0 %v2488
        %3054 = vmatpush1.bf16.msra.mxu0 %v2487
        %3055 = vmatprep.subr.bf16.mxu0 %v2492
        %3056 = vmatpush1.bf16.msra.mxu0 %v2491
        %3057 = vmatprep.subr.bf16.mxu0 %v2496
        %3058 = vmatpush1.bf16.msra.mxu0 %v2495
        %3059 = vmatprep.subr.bf16.mxu0 %v2500
        %3060 = vmatpush1.bf16.msra.mxu0 %v2499
        %3061 = vmatprep.subr.bf16.mxu0 %v2504
        %3062 = vmatpush1.bf16.msra.mxu0 %v2503
        %3063 = vmatprep.subr.bf16.mxu0 %v2508
        %3064 = vmatpush1.bf16.msra.mxu0 %v2507
        %3065 = vmatprep.subr.bf16.mxu0 0
        %3066 = vmatpush1.bf16.msra.mxu0 0
        %3067 = vmatprep.subr.bf16.mxu0 0
        %3068 = vmatpush1.bf16.msra.mxu0 0
        %3069 = vmatprep.subr.bf16.mxu0 0
        %3070 = vmatpush1.bf16.msra.mxu0 0
        %3071 = vmatprep.subr.bf16.mxu0 0
        %3072 = vmatpush1.bf16.msra.mxu0 0
        %3073 = vmatprep.subr.bf16.mxu0 0
        %3074 = vmatpush1.bf16.msra.mxu0 0
        %3075 = vmatprep.subr.bf16.mxu0 0
        %3076 = vmatpush1.bf16.msra.mxu0 0
        %3077 = vmatprep.subr.bf16.mxu0 0
        %3078 = vmatpush1.bf16.msra.mxu0 0
        %3079 = vmatprep.subr.bf16.mxu0 0
        %3080 = vmatpush1.bf16.msra.mxu0 0
        %3081 = vmatprep.mubr.bf16.mxu0 0
        %3082 = vmatmul.mubr.bf16.gmra.mrb[0].mxu0 %v3007
        %v3083 = vpop.f32.mrb[0].mxu0
        %v3084 = vadd.f32 0.0, %v3083
        %v3085 = vpop.f32.mrb[0].mxu0
        %v3086 = vadd.f32 0.0, %v3085
        %v3087 = vpop.f32.mrb[0].mxu0
        %v3088 = vpop.f32.mrb[0].mxu0
        %3089 = vdwg.mxu0
        %v3090 = vadd.f32 %v3003, %v3043
        %v3091 = vadd.f32 %v3004, %v3045
        %v3092 = vadd.f32 %v3005, %v3084
        %v3093 = vadd.f32 %v3006, %v3086
        %v3094 = vxor.u32 %v3090, 2147483648
        %v3095 = vxor.u32 %v3091, 2147483648
        %v3096 = vxor.u32 %v3092, 2147483648
        %v3097 = vmul.f32 %v3094, 1.442695
        %v3098 = vpow.pop %v3097
        %v3099 = vmul.f32 %v3095, 1.442695
        %v3100 = vpow.pop %v3099
        %v3101 = vmul.f32 %v3096, 1.442695
        %v3102 = vpow.pop %v3101
        %v3103 = vadd.f32 %v3098, 1.0
        %v3104 = vadd.f32 %v3100, 1.0
        %v3105 = vadd.f32 %v3102, 1.0
        %v3106 = vrcp.pop %v3103
        %v3107 = vmul.f32 1.0, %v3106
        %v3108 = vrcp.pop %v3104
        %v3109 = vmul.f32 1.0, %v3108
        %v3110 = vrcp.pop %v3105
        %v3111 = vmul.f32 1.0, %v3110
        %v3112 = vtanh.pop %v3093
        %v3113 = vmul.f32 %v3109, %v2998
        %v3114 = vmul.f32 %v3107, %v3112
        %v3115 = vadd.f32 %v3113, %v3114
        %v3116 = vtanh.pop %v3115
        %v3117 = vmul.f32 %v3111, %v3116
        %s3118 = scalar_lea.vmem %s396, 32 [#allocation18]
        %3119 = vst [vmem:[%s3118] sm:$0xff] %v3117
        %v3120 = vld [vmem:[#allocation4 + $0xa0] sm:$0xff]
        %v3121 = vld [vmem:[#allocation4 + $0xa8] sm:$0xff]
        %v3122 = vld [vmem:[#allocation4 + $0xb0] sm:$0xff]
        %v3123 = vld [vmem:[#allocation4 + $0xb8] sm:$0xff]
        %v3124 = vpack.c.bf16 %v3117, %v3117
        %3125 = vmatprep.subr.bf16.mxu0 %v2478
        %3126 = vmatpush1.bf16.msra.mxu0 %v2477
        %3127 = vmatprep.subr.bf16.mxu0 %v2482
        %3128 = vmatpush1.bf16.msra.mxu0 %v2481
        %3129 = vmatprep.subr.bf16.mxu0 %v2486
        %3130 = vmatpush1.bf16.msra.mxu0 %v2485
        %3131 = vmatprep.subr.bf16.mxu0 %v2490
        %3132 = vmatpush1.bf16.msra.mxu0 %v2489
        %3133 = vmatprep.subr.bf16.mxu0 %v2494
        %3134 = vmatpush1.bf16.msra.mxu0 %v2493
        %3135 = vmatprep.subr.bf16.mxu0 %v2498
        %3136 = vmatpush1.bf16.msra.mxu0 %v2497
        %3137 = vmatprep.subr.bf16.mxu0 %v2502
        %3138 = vmatpush1.bf16.msra.mxu0 %v2501
        %3139 = vmatprep.subr.bf16.mxu0 %v2506
        %3140 = vmatpush1.bf16.msra.mxu0 %v2505
        %3141 = vmatprep.subr.bf16.mxu0 0
        %3142 = vmatpush1.bf16.msra.mxu0 0
        %3143 = vmatprep.subr.bf16.mxu0 0
        %3144 = vmatpush1.bf16.msra.mxu0 0
        %3145 = vmatprep.subr.bf16.mxu0 0
        %3146 = vmatpush1.bf16.msra.mxu0 0
        %3147 = vmatprep.subr.bf16.mxu0 0
        %3148 = vmatpush1.bf16.msra.mxu0 0
        %3149 = vmatprep.subr.bf16.mxu0 0
        %3150 = vmatpush1.bf16.msra.mxu0 0
        %3151 = vmatprep.subr.bf16.mxu0 0
        %3152 = vmatpush1.bf16.msra.mxu0 0
        %3153 = vmatprep.subr.bf16.mxu0 0
        %3154 = vmatpush1.bf16.msra.mxu0 0
        %3155 = vmatprep.subr.bf16.mxu0 0
        %3156 = vmatpush1.bf16.msra.mxu0 0
        %3157 = vmatprep.mubr.bf16.mxu0 0
        %3158 = vmatmul.mubr.bf16.gmra.mrb[0].mxu0 %v3124
        %v3159 = vpop.f32.mrb[0].mxu0
        %v3160 = vadd.f32 0.0, %v3159
        %v3161 = vpop.f32.mrb[0].mxu0
        %v3162 = vadd.f32 0.0, %v3161
        %v3163 = vpop.f32.mrb[0].mxu0
        %v3164 = vpop.f32.mrb[0].mxu0
        %3165 = vdwg.mxu0
        %3166 = vmatprep.subr.bf16.mxu0 %v2480
        %3167 = vmatpush1.bf16.msra.mxu0 %v2479
        %3168 = vmatprep.subr.bf16.mxu0 %v2484
        %3169 = vmatpush1.bf16.msra.mxu0 %v2483
        %3170 = vmatprep.subr.bf16.mxu0 %v2488
        %3171 = vmatpush1.bf16.msra.mxu0 %v2487
        %3172 = vmatprep.subr.bf16.mxu0 %v2492
        %3173 = vmatpush1.bf16.msra.mxu0 %v2491
        %3174 = vmatprep.subr.bf16.mxu0 %v2496
        %3175 = vmatpush1.bf16.msra.mxu0 %v2495
        %3176 = vmatprep.subr.bf16.mxu0 %v2500
        %3177 = vmatpush1.bf16.msra.mxu0 %v2499
        %3178 = vmatprep.subr.bf16.mxu0 %v2504
        %3179 = vmatpush1.bf16.msra.mxu0 %v2503
        %3180 = vmatprep.subr.bf16.mxu0 %v2508
        %3181 = vmatpush1.bf16.msra.mxu0 %v2507
        %3182 = vmatprep.subr.bf16.mxu0 0
        %3183 = vmatpush1.bf16.msra.mxu0 0
        %3184 = vmatprep.subr.bf16.mxu0 0
        %3185 = vmatpush1.bf16.msra.mxu0 0
        %3186 = vmatprep.subr.bf16.mxu0 0
        %3187 = vmatpush1.bf16.msra.mxu0 0
        %3188 = vmatprep.subr.bf16.mxu0 0
        %3189 = vmatpush1.bf16.msra.mxu0 0
        %3190 = vmatprep.subr.bf16.mxu0 0
        %3191 = vmatpush1.bf16.msra.mxu0 0
        %3192 = vmatprep.subr.bf16.mxu0 0
        %3193 = vmatpush1.bf16.msra.mxu0 0
        %3194 = vmatprep.subr.bf16.mxu0 0
        %3195 = vmatpush1.bf16.msra.mxu0 0
        %3196 = vmatprep.subr.bf16.mxu0 0
        %3197 = vmatpush1.bf16.msra.mxu0 0
        %3198 = vmatprep.mubr.bf16.mxu0 0
        %3199 = vmatmul.mubr.bf16.gmra.mrb[0].mxu0 %v3124
        %v3200 = vpop.f32.mrb[0].mxu0
        %v3201 = vadd.f32 0.0, %v3200
        %v3202 = vpop.f32.mrb[0].mxu0
        %v3203 = vadd.f32 0.0, %v3202
        %v3204 = vpop.f32.mrb[0].mxu0
        %v3205 = vpop.f32.mrb[0].mxu0
        %3206 = vdwg.mxu0
        %v3207 = vadd.f32 %v3120, %v3160
        %v3208 = vadd.f32 %v3121, %v3162
        %v3209 = vadd.f32 %v3122, %v3201
        %v3210 = vadd.f32 %v3123, %v3203
        %v3211 = vxor.u32 %v3207, 2147483648
        %v3212 = vxor.u32 %v3208, 2147483648
        %v3213 = vxor.u32 %v3209, 2147483648
        %v3214 = vmul.f32 %v3211, 1.442695
        %v3215 = vpow.pop %v3214
        %v3216 = vmul.f32 %v3212, 1.442695
        %v3217 = vpow.pop %v3216
        %v3218 = vmul.f32 %v3213, 1.442695
        %v3219 = vpow.pop %v3218
        %v3220 = vadd.f32 %v3215, 1.0
        %v3221 = vadd.f32 %v3217, 1.0
        %v3222 = vadd.f32 %v3219, 1.0
        %v3223 = vrcp.pop %v3220
        %v3224 = vmul.f32 1.0, %v3223
        %v3225 = vrcp.pop %v3221
        %v3226 = vmul.f32 1.0, %v3225
        %v3227 = vrcp.pop %v3222
        %v3228 = vmul.f32 1.0, %v3227
        %v3229 = vtanh.pop %v3210
        %v3230 = vmul.f32 %v3226, %v3115
        %v3231 = vmul.f32 %v3224, %v3229
        %v3232 = vadd.f32 %v3230, %v3231
        %v3233 = vtanh.pop %v3232
        %v3234 = vmul.f32 %v3228, %v3233
        %s3235 = scalar_lea.vmem %s396, 40 [#allocation18]
        %3236 = vst [vmem:[%s3235] sm:$0xff] %v3234
        %v3237 = vld [vmem:[#allocation4 + $0xc0] sm:$0xff]
        %v3238 = vld [vmem:[#allocation4 + $0xc8] sm:$0xff]
        %v3239 = vld [vmem:[#allocation4 + $0xd0] sm:$0xff]
        %v3240 = vld [vmem:[#allocation4 + $0xd8] sm:$0xff]
        %v3241 = vpack.c.bf16 %v3234, %v3234
        %3242 = vmatprep.subr.bf16.mxu0 %v2478
        %3243 = vmatpush1.bf16.msra.mxu0 %v2477
        %3244 = vmatprep.subr.bf16.mxu0 %v2482
        %3245 = vmatpush1.bf16.msra.mxu0 %v2481
        %3246 = vmatprep.subr.bf16.mxu0 %v2486
        %3247 = vmatpush1.bf16.msra.mxu0 %v2485
        %3248 = vmatprep.subr.bf16.mxu0 %v2490
        %3249 = vmatpush1.bf16.msra.mxu0 %v2489
        %3250 = vmatprep.subr.bf16.mxu0 %v2494
        %3251 = vmatpush1.bf16.msra.mxu0 %v2493
        %3252 = vmatprep.subr.bf16.mxu0 %v2498
        %3253 = vmatpush1.bf16.msra.mxu0 %v2497
        %3254 = vmatprep.subr.bf16.mxu0 %v2502
        %3255 = vmatpush1.bf16.msra.mxu0 %v2501
        %3256 = vmatprep.subr.bf16.mxu0 %v2506
        %3257 = vmatpush1.bf16.msra.mxu0 %v2505
        %3258 = vmatprep.subr.bf16.mxu0 0
        %3259 = vmatpush1.bf16.msra.mxu0 0
        %3260 = vmatprep.subr.bf16.mxu0 0
        %3261 = vmatpush1.bf16.msra.mxu0 0
        %3262 = vmatprep.subr.bf16.mxu0 0
        %3263 = vmatpush1.bf16.msra.mxu0 0
        %3264 = vmatprep.subr.bf16.mxu0 0
        %3265 = vmatpush1.bf16.msra.mxu0 0
        %3266 = vmatprep.subr.bf16.mxu0 0
        %3267 = vmatpush1.bf16.msra.mxu0 0
        %3268 = vmatprep.subr.bf16.mxu0 0
        %3269 = vmatpush1.bf16.msra.mxu0 0
        %3270 = vmatprep.subr.bf16.mxu0 0
        %3271 = vmatpush1.bf16.msra.mxu0 0
        %3272 = vmatprep.subr.bf16.mxu0 0
        %3273 = vmatpush1.bf16.msra.mxu0 0
        %3274 = vmatprep.mubr.bf16.mxu0 0
        %3275 = vmatmul.mubr.bf16.gmra.mrb[0].mxu0 %v3241
        %v3276 = vpop.f32.mrb[0].mxu0
        %v3277 = vadd.f32 0.0, %v3276
        %v3278 = vpop.f32.mrb[0].mxu0
        %v3279 = vadd.f32 0.0, %v3278
        %v3280 = vpop.f32.mrb[0].mxu0
        %v3281 = vpop.f32.mrb[0].mxu0
        %3282 = vdwg.mxu0
        %3283 = vmatprep.subr.bf16.mxu0 %v2480
        %3284 = vmatpush1.bf16.msra.mxu0 %v2479
        %3285 = vmatprep.subr.bf16.mxu0 %v2484
        %3286 = vmatpush1.bf16.msra.mxu0 %v2483
        %3287 = vmatprep.subr.bf16.mxu0 %v2488
        %3288 = vmatpush1.bf16.msra.mxu0 %v2487
        %3289 = vmatprep.subr.bf16.mxu0 %v2492
        %3290 = vmatpush1.bf16.msra.mxu0 %v2491
        %3291 = vmatprep.subr.bf16.mxu0 %v2496
        %3292 = vmatpush1.bf16.msra.mxu0 %v2495
        %3293 = vmatprep.subr.bf16.mxu0 %v2500
        %3294 = vmatpush1.bf16.msra.mxu0 %v2499
        %3295 = vmatprep.subr.bf16.mxu0 %v2504
        %3296 = vmatpush1.bf16.msra.mxu0 %v2503
        %3297 = vmatprep.subr.bf16.mxu0 %v2508
        %3298 = vmatpush1.bf16.msra.mxu0 %v2507
        %3299 = vmatprep.subr.bf16.mxu0 0
        %3300 = vmatpush1.bf16.msra.mxu0 0
        %3301 = vmatprep.subr.bf16.mxu0 0
        %3302 = vmatpush1.bf16.msra.mxu0 0
        %3303 = vmatprep.subr.bf16.mxu0 0
        %3304 = vmatpush1.bf16.msra.mxu0 0
        %3305 = vmatprep.subr.bf16.mxu0 0
        %3306 = vmatpush1.bf16.msra.mxu0 0
        %3307 = vmatprep.subr.bf16.mxu0 0
        %3308 = vmatpush1.bf16.msra.mxu0 0
        %3309 = vmatprep.subr.bf16.mxu0 0
        %3310 = vmatpush1.bf16.msra.mxu0 0
        %3311 = vmatprep.subr.bf16.mxu0 0
        %3312 = vmatpush1.bf16.msra.mxu0 0
        %3313 = vmatprep.subr.bf16.mxu0 0
        %3314 = vmatpush1.bf16.msra.mxu0 0
        %3315 = vmatprep.mubr.bf16.mxu0 0
        %3316 = vmatmul.mubr.bf16.gmra.mrb[0].mxu0 %v3241
        %v3317 = vpop.f32.mrb[0].mxu0
        %v3318 = vadd.f32 0.0, %v3317
        %v3319 = vpop.f32.mrb[0].mxu0
        %v3320 = vadd.f32 0.0, %v3319
        %v3321 = vpop.f32.mrb[0].mxu0
        %v3322 = vpop.f32.mrb[0].mxu0
        %3323 = vdwg.mxu0
        %v3324 = vadd.f32 %v3237, %v3277
        %v3325 = vadd.f32 %v3238, %v3279
        %v3326 = vadd.f32 %v3239, %v3318
        %v3327 = vadd.f32 %v3240, %v3320
        %v3328 = vxor.u32 %v3324, 2147483648
        %v3329 = vxor.u32 %v3325, 2147483648
        %v3330 = vxor.u32 %v3326, 2147483648
        %v3331 = vmul.f32 %v3328, 1.442695
        %v3332 = vpow.pop %v3331
        %v3333 = vmul.f32 %v3329, 1.442695
        %v3334 = vpow.pop %v3333
        %v3335 = vmul.f32 %v3330, 1.442695
        %v3336 = vpow.pop %v3335
        %v3337 = vadd.f32 %v3332, 1.0
        %v3338 = vadd.f32 %v3334, 1.0
        %v3339 = vadd.f32 %v3336, 1.0
        %v3340 = vrcp.pop %v3337
        %v3341 = vmul.f32 1.0, %v3340
        %v3342 = vrcp.pop %v3338
        %v3343 = vmul.f32 1.0, %v3342
        %v3344 = vrcp.pop %v3339
        %v3345 = vmul.f32 1.0, %v3344
        %v3346 = vtanh.pop %v3327
        %v3347 = vmul.f32 %v3343, %v3232
        %v3348 = vmul.f32 %v3341, %v3346
        %v3349 = vadd.f32 %v3347, %v3348
        %v3350 = vtanh.pop %v3349
        %v3351 = vmul.f32 %v3345, %v3350
        %s3352 = scalar_lea.vmem %s396, 48 [#allocation18]
        %3353 = vst [vmem:[%s3352] sm:$0xff] %v3351
        %v3354 = vld [vmem:[#allocation4 + $0xe0] sm:$0xff]
        %v3355 = vld [vmem:[#allocation4 + $0xe8] sm:$0xff]
        %v3356 = vld [vmem:[#allocation4 + $0xf0] sm:$0xff]
        %v3357 = vld [vmem:[#allocation4 + $0xf8] sm:$0xff]
        %v3358 = vpack.c.bf16 %v3351, %v3351
        %3359 = vmatprep.subr.bf16.mxu0 %v2478
        %3360 = vmatpush1.bf16.msra.mxu0 %v2477
        %3361 = vmatprep.subr.bf16.mxu0 %v2482
        %3362 = vmatpush1.bf16.msra.mxu0 %v2481
        %3363 = vmatprep.subr.bf16.mxu0 %v2486
        %3364 = vmatpush1.bf16.msra.mxu0 %v2485
        %3365 = vmatprep.subr.bf16.mxu0 %v2490
        %3366 = vmatpush1.bf16.msra.mxu0 %v2489
        %3367 = vmatprep.subr.bf16.mxu0 %v2494
        %3368 = vmatpush1.bf16.msra.mxu0 %v2493
        %3369 = vmatprep.subr.bf16.mxu0 %v2498
        %3370 = vmatpush1.bf16.msra.mxu0 %v2497
        %3371 = vmatprep.subr.bf16.mxu0 %v2502
        %3372 = vmatpush1.bf16.msra.mxu0 %v2501
        %3373 = vmatprep.subr.bf16.mxu0 %v2506
        %3374 = vmatpush1.bf16.msra.mxu0 %v2505
        %3375 = vmatprep.subr.bf16.mxu0 0
        %3376 = vmatpush1.bf16.msra.mxu0 0
        %3377 = vmatprep.subr.bf16.mxu0 0
        %3378 = vmatpush1.bf16.msra.mxu0 0
        %3379 = vmatprep.subr.bf16.mxu0 0
        %3380 = vmatpush1.bf16.msra.mxu0 0
        %3381 = vmatprep.subr.bf16.mxu0 0
        %3382 = vmatpush1.bf16.msra.mxu0 0
        %3383 = vmatprep.subr.bf16.mxu0 0
        %3384 = vmatpush1.bf16.msra.mxu0 0
        %3385 = vmatprep.subr.bf16.mxu0 0
        %3386 = vmatpush1.bf16.msra.mxu0 0
        %3387 = vmatprep.subr.bf16.mxu0 0
        %3388 = vmatpush1.bf16.msra.mxu0 0
        %3389 = vmatprep.subr.bf16.mxu0 0
        %3390 = vmatpush1.bf16.msra.mxu0 0
        %3391 = vmatprep.mubr.bf16.mxu0 0
        %3392 = vmatmul.mubr.bf16.gmra.mrb[0].mxu0 %v3358
        %v3393 = vpop.f32.mrb[0].mxu0
        %v3394 = vadd.f32 0.0, %v3393
        %v3395 = vpop.f32.mrb[0].mxu0
        %v3396 = vadd.f32 0.0, %v3395
        %v3397 = vpop.f32.mrb[0].mxu0
        %v3398 = vpop.f32.mrb[0].mxu0
        %3399 = vdwg.mxu0
        %3400 = vmatprep.subr.bf16.mxu0 %v2480
        %3401 = vmatpush1.bf16.msra.mxu0 %v2479
        %3402 = vmatprep.subr.bf16.mxu0 %v2484
        %3403 = vmatpush1.bf16.msra.mxu0 %v2483
        %3404 = vmatprep.subr.bf16.mxu0 %v2488
        %3405 = vmatpush1.bf16.msra.mxu0 %v2487
        %3406 = vmatprep.subr.bf16.mxu0 %v2492
        %3407 = vmatpush1.bf16.msra.mxu0 %v2491
        %3408 = vmatprep.subr.bf16.mxu0 %v2496
        %3409 = vmatpush1.bf16.msra.mxu0 %v2495
        %3410 = vmatprep.subr.bf16.mxu0 %v2500
        %3411 = vmatpush1.bf16.msra.mxu0 %v2499
        %3412 = vmatprep.subr.bf16.mxu0 %v2504
        %3413 = vmatpush1.bf16.msra.mxu0 %v2503
        %3414 = vmatprep.subr.bf16.mxu0 %v2508
        %3415 = vmatpush1.bf16.msra.mxu0 %v2507
        %3416 = vmatprep.subr.bf16.mxu0 0
        %3417 = vmatpush1.bf16.msra.mxu0 0
        %3418 = vmatprep.subr.bf16.mxu0 0
        %3419 = vmatpush1.bf16.msra.mxu0 0
        %3420 = vmatprep.subr.bf16.mxu0 0
        %3421 = vmatpush1.bf16.msra.mxu0 0
        %3422 = vmatprep.subr.bf16.mxu0 0
        %3423 = vmatpush1.bf16.msra.mxu0 0
        %3424 = vmatprep.subr.bf16.mxu0 0
        %3425 = vmatpush1.bf16.msra.mxu0 0
        %3426 = vmatprep.subr.bf16.mxu0 0
        %3427 = vmatpush1.bf16.msra.mxu0 0
        %3428 = vmatprep.subr.bf16.mxu0 0
        %3429 = vmatpush1.bf16.msra.mxu0 0
        %3430 = vmatprep.subr.bf16.mxu0 0
        %3431 = vmatpush1.bf16.msra.mxu0 0
        %3432 = vmatprep.mubr.bf16.mxu0 0
        %3433 = vmatmul.mubr.bf16.gmra.mrb[0].mxu0 %v3358
        %v3434 = vpop.f32.mrb[0].mxu0
        %v3435 = vadd.f32 0.0, %v3434
        %v3436 = vpop.f32.mrb[0].mxu0
        %v3437 = vadd.f32 0.0, %v3436
        %v3438 = vpop.f32.mrb[0].mxu0
        %v3439 = vpop.f32.mrb[0].mxu0
        %3440 = vdwg.mxu0
        %v3441 = vadd.f32 %v3354, %v3394
        %v3442 = vadd.f32 %v3355, %v3396
        %v3443 = vadd.f32 %v3356, %v3435
        %v3444 = vadd.f32 %v3357, %v3437
        %v3445 = vxor.u32 %v3441, 2147483648
        %v3446 = vxor.u32 %v3442, 2147483648
        %v3447 = vxor.u32 %v3443, 2147483648
        %v3448 = vmul.f32 %v3445, 1.442695
        %v3449 = vpow.pop %v3448
        %v3450 = vmul.f32 %v3446, 1.442695
        %v3451 = vpow.pop %v3450
        %v3452 = vmul.f32 %v3447, 1.442695
        %v3453 = vpow.pop %v3452
        %v3454 = vadd.f32 %v3449, 1.0
        %v3455 = vadd.f32 %v3451, 1.0
        %v3456 = vadd.f32 %v3453, 1.0
        %v3457 = vrcp.pop %v3454
        %v3458 = vmul.f32 1.0, %v3457
        %v3459 = vrcp.pop %v3455
        %v3460 = vmul.f32 1.0, %v3459
        %v3461 = vrcp.pop %v3456
        %v3462 = vmul.f32 1.0, %v3461
        %v3463 = vtanh.pop %v3444
        %v3464 = vmul.f32 %v3460, %v3349
        %v3465 = vmul.f32 %v3458, %v3463
        %v3466 = vadd.f32 %v3464, %v3465
        %v3467 = vtanh.pop %v3466
        %v3468 = vmul.f32 %v3462, %v3467
        %s3469 = scalar_lea.vmem %s396, 56 [#allocation18]
        %3470 = vst [vmem:[%s3469] sm:$0xff] %v3468
        %3471 = vst [vmem:[%s2372] sm:$0xff] %v3468
        %3472 = vst [vmem:[%s2374] sm:$0xff] %v3466
        %s3473 = sand.u32 %s203, 1
        %s3474 = scalar_lea.sflag [#allocation8], %s3473
        %s3475 = sand.u32 %s203, 1
        %s3476 = smul.addr %s3475, 64
        %s3477 = scalar_lea.vmem [#allocation18], %s3476
        // Predicated region
        $region81: #{tpu_custom_call.1} parent=47 // pred_check
          %p3478 = pneg %p213
        $region82: #{tpu_custom_call.1} parent=47 // pred_check_branch
          %3480 = sbr.rel (%p3478) target = $region84
        $region83: #{tpu_custom_call.1} parent=47 // pred_region
          %s3481 = smul.u32 8, %s32
          %s3483 = ssub.s32 1024, 1024
          %3484 = vsyncadd %s3474, %s3483
          %s3485 = sadd.s32 %s31, %s3481
          %s3486 = smul.addr %s3485, 128
          %s3487 = scalar_lea.hbm %s7, %s3486
          %s3488 = sshll.u32 %s3477, 4
          %s3489 = int_to_ptr.vmem [resolvable:$true] %s3488
          %3494 = dma.vmem_to_hbm [thread:$0]  %s3489, 1024, %s3487, %s3474, 128, 128, 8
        $region84: #{tpu_custom_call.1} parent=47 // pred_fallthru
          _
      $region48: #{tpu_custom_call.1} parent=5 // pred_fallthru
        _
      %p3495 = scmp.le.s32.totalorder 2, %s22
      // Predicated region
      $region85: #{tpu_custom_call.1} parent=5 // pred_check
        %p3496 = pneg %p3495
      $region86: #{tpu_custom_call.1} parent=5 // pred_check_branch
        %3498 = sbr.rel (%p3496) target = $region88
      $region87: #{tpu_custom_call.1} parent=5 // pred_region
        %s3499 = ssub.s32 %s22, 2
        // Predicated region
        $region89: #{tpu_custom_call.1} parent=87 // pred_check
          %p3500 = pneg %p219
        $region90: #{tpu_custom_call.1} parent=87 // pred_check_branch
          %3502 = sbr.rel (%p3500) target = $region92
        $region91: #{tpu_custom_call.1} parent=87 // pred_region
          %s3503 = sand.u32 %s204, 1
          %s3504 = scalar_lea.sflag [#allocation8], %s3503
          %s3505 = sand.u32 %s204, 1
          %s3506 = smul.addr %s3505, 64
          %s3507 = scalar_lea.vmem [#allocation18], %s3506
          %3508 = dma.done %s3504, 1024
        $region92: #{tpu_custom_call.1} parent=87 // pred_fallthru
          _
      $region88: #{tpu_custom_call.1} parent=5 // pred_fallthru
        _
    $region6: #{tpu_custom_call.1} parent=1 // loop_footer
      %s26 = sadd.s32 1, %s22
    $region7: #{tpu_custom_call.1} parent=1 // loop_footer_branch
      %21 = sbr.rel target = $region3
    $region8: #{tpu_custom_call.1} parent=1 // loop_exit
      _
    %3509 = vsyncpa [#allocation7], 1
    %s3510 = scalar_lea.sflag [#allocation7], 1
    %3511 = vsyncpa %s3510, 1
    %3512 = vsyncpa [#allocation10], 1
    %3513 = vsyncpa [#allocation13], 1
    %3514 = vsyncpa [#allocation16], 1
    %3515 = vsyncpa [#allocation8], 1
    %s3516 = scalar_lea.sflag [#allocation8], 1
    %3517 = vsyncpa %s3516, 1

</llo_original>
